<compile_context>
chip_gen: v7x
topology: tpu7x:2x2x1
jax: 0.10.0
libtpu: 0.0.40
codegen_flags: <defaults>
</compile_context>

<pallas_src>
import functools

import jax
import jax.numpy as jnp
from jax.experimental import pallas as pl
from jax.experimental.pallas import tpu as pltpu


# -----------------------------------------------------------------------------
# In-kernel helpers
# -----------------------------------------------------------------------------
def _ln(h, gamma, beta, eps):
    mu = jnp.mean(h, axis=-1, keepdims=True)
    var = jnp.mean(jnp.square(h - mu), axis=-1, keepdims=True)
    return (h - mu) * jax.lax.rsqrt(var + eps) * gamma + beta


# -----------------------------------------------------------------------------
# Whole-decoder kernel.  Grid = (batch, layer); layer axis is sequential.
# -----------------------------------------------------------------------------
def _decoder_kernel(*refs, nhead, num_layers, D, scale, has_qpos, has_pos,
                    has_final_ln, with_inter, compute_dtype, eps):
    it = iter(refs)
    tgt_ref = next(it)                               # (1, Lq, D) f32  queries (this batch)
    mem_ref = next(it)                               # (1, Lk, D) f32  memory  (this batch)
    qp_ref = next(it) if has_qpos else None          # (1, Lq, D) f32
    pos_ref = next(it) if has_pos else None          # (1, Lk, D) f32
    wqkv_ref = next(it)                              # (1, 2, 3, D, D) bf16  [self|cross][q|k|v] W^T
    bqkv_ref = next(it)                              # (1, 2, 3, 1, D) f32
    wo_ref = next(it)                                # (1, 2, D, D)    bf16  W_o^T
    bo_ref = next(it)                                # (1, 2, 1, D)    f32
    lns_ref = next(it)                               # (1, 3, 2, 1, D) f32   [norm1|2|3][gamma|beta]
    w1_ref = next(it)                                # (1, D, DFF)     bf16
    b1_ref = next(it)                                # (1, 1, DFF)     f32
    w2_ref = next(it)                                # (1, DFF, D)     bf16
    b2_ref = next(it)                                # (1, 1, D)       f32
    fln_ref = next(it) if has_final_ln else None     # (2, 1, D)       f32
    o_ref = next(it)                                 # (1, Lq, D) f32  -- doubles as layer carry
    inter_ref = next(it) if with_inter else None     # (1, 1, Lq, D) f32
    attn_scr = next(it)                              # (Lq, D) f32 VMEM head-concat scratch

    l = pl.program_id(1)
    H = nhead
    Dh = D // H

    # Initialize the per-batch carry (output block stays VMEM-resident across layers).
    @pl.when(l == 0)
    def _init_carry():
        o_ref[0] = tgt_ref[0]

    x = o_ref[0]                                     # (Lq, D) f32 running activation
    qp = qp_ref[0] if has_qpos else None

    def mha(x_resid, q_in, k_in, v_in, sa, ln_idx):
        # Q/K/V projections: bf16 operands, f32 accumulation, f32 bias add.
        q2 = jnp.dot(q_in.astype(compute_dtype), wqkv_ref[0, sa, 0],
                     preferred_element_type=jnp.float32) + bqkv_ref[0, sa, 0]
        k2 = jnp.dot(k_in.astype(compute_dtype), wqkv_ref[0, sa, 1],
                     preferred_element_type=jnp.float32) + bqkv_ref[0, sa, 1]
        v2 = jnp.dot(v_in.astype(compute_dtype), wqkv_ref[0, sa, 2],
                     preferred_element_type=jnp.float32) + bqkv_ref[0, sa, 2]

        # Head split -> leading batch dim (H, L, Dh); one batched matmul for all heads.
        qs = jnp.stack([q2[:, h * Dh:(h + 1) * Dh] for h in range(H)], axis=0) * scale
        ks = jnp.stack([k2[:, h * Dh:(h + 1) * Dh] for h in range(H)], axis=0)
        vs = jnp.stack([v2[:, h * Dh:(h + 1) * Dh] for h in range(H)], axis=0)

        s = jnp.einsum('hqd,hkd->hqk', qs.astype(compute_dtype), ks.astype(compute_dtype),
                       preferred_element_type=jnp.float32)
        s = s - jnp.max(s, axis=-1, keepdims=True)
        p = jnp.exp(s)
        p = p / jnp.sum(p, axis=-1, keepdims=True)          # exact softmax (parity w/ torch)
        o = jnp.einsum('hqk,hkd->hqd', p.astype(compute_dtype), vs.astype(compute_dtype),
                       preferred_element_type=jnp.float32)   # (H, Lq, Dh)

        # Concatenate heads into contiguous columns of a VMEM scratch, then ONE
        # full-width out-projection (K = D) instead of nhead partial-K matmuls.
        for h in range(H):
            attn_scr[:, h * Dh:(h + 1) * Dh] = o[h]
        y = jnp.dot(attn_scr[...].astype(compute_dtype), wo_ref[0, sa],
                    preferred_element_type=jnp.float32) + bo_ref[0, sa]
        return _ln(x_resid + y, lns_ref[0, ln_idx, 0], lns_ref[0, ln_idx, 1], eps)

    # --- self-attention: q = k = x + query_pos, v = x -> add & norm1 ---
    q_in = (x + qp) if has_qpos else x
    x = mha(x, q_in, q_in, x, sa=0, ln_idx=0)

    # --- cross-attention: q = x + query_pos, k = memory + pos, v = memory -> add & norm2 ---
    mem = mem_ref[0]
    k_in = (mem + pos_ref[0]) if has_pos else mem
    q_in = (x + qp) if has_qpos else x
    x = mha(x, q_in, k_in, mem, sa=1, ln_idx=1)

    # --- FFN: linear1 -> relu -> linear2 -> add & norm3 ---
    h1 = jnp.dot(x.astype(compute_dtype), w1_ref[0],
                 preferred_element_type=jnp.float32) + b1_ref[0]
    h1 = jnp.maximum(h1, 0.0)
    y = jnp.dot(h1.astype(compute_dtype), w2_ref[0],
                preferred_element_type=jnp.float32) + b2_ref[0]
    x = _ln(x + y, lns_ref[0, 2, 0], lns_ref[0, 2, 1], eps)

    # Carry for the next layer (same VMEM block; written back to HBM once per batch).
    o_ref[0] = x

    if with_inter:
        inter_ref[0, 0] = _ln(x, fln_ref[0], fln_ref[1], eps)
    if has_final_ln:
        @pl.when(l == num_layers - 1)
        def _final_norm():
            o_ref[0] = _ln(x, fln_ref[0], fln_ref[1], eps)


# -----------------------------------------------------------------------------
# BlockSpec helpers
# -----------------------------------------------------------------------------
def _batch_spec(shape):
    # (B, L, D) activation: one batch block per grid step along the batch axis.
    return pl.BlockSpec((1,) + tuple(shape[1:]), lambda b, l: (b, 0, 0))


def _layer_spec(shape):
    # (num_layers, ...) stacked weights: stream one layer's block per inner grid step.
    n = len(shape) - 1
    return pl.BlockSpec((1,) + tuple(shape[1:]), lambda b, l, _n=n: (l,) + (0,) * _n)


# -----------------------------------------------------------------------------
# Wrapper: one pallas_call for the whole decoder forward
# -----------------------------------------------------------------------------
def transformer_decoder_forward(tgt, memory, dec_params, nhead, pos=None, query_pos=None,
                                return_intermediate=False, eps=1e-5):
    """tgt: (Lq, B, D), memory: (Lk, B, D); dec_params from prepare_decoder_params."""
    Lq, B, D = tgt.shape
    Lk = memory.shape[0]
    assert D % nhead == 0
    num_layers = int(dec_params["w1_t"].shape[0])
    final_ln = dec_params.get("final_ln")
    has_final_ln = final_ln is not None
    if return_intermediate:
        assert has_final_ln, "return_intermediate requires a final norm (as in the reference)"
    has_qpos = query_pos is not None
    has_pos = pos is not None
    compute_dtype = dec_params["wqkv_t"].dtype

    def to_batch_major(t):                    # (L, B, D) -> (B, L, D)
        return jnp.transpose(t, (1, 0, 2)).astype(jnp.float32)

    args, in_specs = [], []

    def add(a, spec):
        args.append(a)
        in_specs.append(spec)

    add(to_batch_major(tgt), _batch_spec((B, Lq, D)))
    add(to_batch_major(memory), _batch_spec((B, Lk, D)))
    if has_qpos:
        add(to_batch_major(query_pos), _batch_spec((B, Lq, D)))
    if has_pos:
        add(to_batch_major(pos), _batch_spec((B, Lk, D)))
    n_act = len(args)

    weight_names = ("wqkv_t", "bqkv", "wo_t", "bo", "lns", "w1_t", "b1", "w2_t", "b2")
    for name in weight_names:
        a = dec_params[name]
        add(a, _layer_spec(a.shape))
    if has_final_ln:
        add(final_ln, pl.BlockSpec(final_ln.shape, lambda b, l: (0, 0, 0)))

    out_shape = [jax.ShapeDtypeStruct((B, Lq, D), jnp.float32)]
    out_specs = [pl.BlockSpec((1, Lq, D), lambda b, l: (b, 0, 0))]
    if return_intermediate:
        out_shape.append(jax.ShapeDtypeStruct((num_layers, B, Lq, D), jnp.float32))
        out_specs.append(pl.BlockSpec((1, 1, Lq, D), lambda b, l: (l, b, 0, 0)))

    kernel = functools.partial(
        _decoder_kernel, nhead=nhead, num_layers=num_layers, D=D,
        scale=float(D // nhead) ** -0.5, has_qpos=has_qpos, has_pos=has_pos,
        has_final_ln=has_final_ln, with_inter=return_intermediate,
        compute_dtype=compute_dtype, eps=eps)

    # Explicit VMEM budget (review item): resident activations + double-buffered
    # per-layer weight blocks + output/scratch blocks, with generous slack.
    def nbytes(a):
        return int(a.size) * a.dtype.itemsize
    act_bytes = sum(nbytes(a) for a in args[:n_act])
    layer_block_bytes = sum(nbytes(dec_params[n]) // num_layers for n in weight_names)
    out_block_bytes = (1 + int(return_intermediate)) * Lq * D * 4
    scratch_bytes = Lq * D * 4
    est = act_bytes + 2 * (layer_block_bytes + out_block_bytes) + scratch_bytes
    vmem_limit = int(min(max(4 * est, 16 * 1024 * 1024), 64 * 1024 * 1024))

    outs = pl.pallas_call(
        kernel,
        out_shape=tuple(out_shape) if return_intermediate else out_shape[0],
        grid_spec=pltpu.PrefetchScalarGridSpec(
            num_scalar_prefetch=0,
            grid=(B, num_layers),
            in_specs=in_specs,
            out_specs=tuple(out_specs) if return_intermediate else out_specs[0],
            scratch_shapes=[pltpu.VMEM((Lq, D), jnp.float32)]),
        compiler_params=pltpu.CompilerParams(
            dimension_semantics=("parallel", "arbitrary"),
            vmem_limit_bytes=vmem_limit),
    )(*args)

    if return_intermediate:
        _, inter = outs
        return jnp.transpose(inter, (0, 2, 1, 3))            # (NL, Lq, B, D)
    return jnp.transpose(outs, (1, 0, 2))                    # (Lq, B, D)


# -----------------------------------------------------------------------------
# Parameter preparation: transpose / stack / cast weights ONCE into kernel layout
# -----------------------------------------------------------------------------
def prepare_decoder_params(layers_raw, d, final_norm=None, compute_dtype=jnp.bfloat16):
    """Stack per-layer PyTorch-layout weights into layer-stacked, kernel-ready arrays.
    MXU-operand weights are pre-transposed (y = x @ W^T stored as W^T) and cast to
    `compute_dtype` (bf16); biases / LayerNorm params stay f32."""
    def qkv_t(p):
        w = p["in_proj_weight"]
        return jnp.stack([w[:d].T, w[d:2 * d].T, w[2 * d:].T], axis=0)     # (3, D, D)

    def per_layer(fn):
        return jnp.stack([fn(p) for p in layers_raw], axis=0)

    params = {
        "wqkv_t": per_layer(lambda p: jnp.stack(
            [qkv_t(p["self_attn"]), qkv_t(p["cross_attn"])], axis=0)).astype(compute_dtype),
        "bqkv": per_layer(lambda p: jnp.stack(
            [p["self_attn"]["in_proj_bias"].reshape(3, 1, d),
             p["cross_attn"]["in_proj_bias"].reshape(3, 1, d)], axis=0)).astype(jnp.float32),
        "wo_t": per_layer(lambda p: jnp.stack(
            [p["self_attn"]["out_proj_weight"].T,
             p["cross_attn"]["out_proj_weight"].T], axis=0)).astype(compute_dtype),
        "bo": per_layer(lambda p: jnp.stack(
            [p["self_attn"]["out_proj_bias"].reshape(1, d),
             p["cross_attn"]["out_proj_bias"].reshape(1, d)], axis=0)).astype(jnp.float32),
        "lns": per_layer(lambda p: jnp.stack(
            [jnp.stack([p["norm1_w"], p["norm1_b"]], 0).reshape(2, 1, d),
             jnp.stack([p["norm2_w"], p["norm2_b"]], 0).reshape(2, 1, d),
             jnp.stack([p["norm3_w"], p["norm3_b"]], 0).reshape(2, 1, d)],
            axis=0)).astype(jnp.float32),
        "w1_t": per_layer(lambda p: p["linear1_w"].T).astype(compute_dtype),
        "b1": per_layer(lambda p: p["linear1_b"].reshape(1, -1)).astype(jnp.float32),
        "w2_t": per_layer(lambda p: p["linear2_w"].T).astype(compute_dtype),
        "b2": per_layer(lambda p: p["linear2_b"].reshape(1, -1)).astype(jnp.float32),
    }
    if final_norm is not None:
        gamma, beta = final_norm
        params["final_ln"] = jnp.stack([gamma, beta], 0).reshape(2, 1, d).astype(jnp.float32)
    return params


# -----------------------------------------------------------------------------
# Deterministic parameter initialization (PyTorch tensor conventions)
# -----------------------------------------------------------------------------
def _init_mha(key, d):
    k1, k2, k3, k4 = jax.random.split(key, 4)
    s = 0.05
    return {
        "in_proj_weight": s * jax.random.normal(k1, (3 * d, d), jnp.float32),
        "in_proj_bias": s * jax.random.normal(k2, (3 * d,), jnp.float32),
        "out_proj_weight": s * jax.random.normal(k3, (d, d), jnp.float32),
        "out_proj_bias": s * jax.random.normal(k4, (d,), jnp.float32),
    }


def _init_layer(key, d, dff):
    ks = jax.random.split(key, 6)
    s = 0.05
    return {
        "self_attn": _init_mha(ks[0], d),
        "cross_attn": _init_mha(ks[1], d),
        "linear1_w": s * jax.random.normal(ks[2], (dff, d), jnp.float32),
        "linear1_b": s * jax.random.normal(ks[3], (dff,), jnp.float32),
        "linear2_w": s * jax.random.normal(ks[4], (d, dff), jnp.float32),
        "linear2_b": s * jax.random.normal(ks[5], (d,), jnp.float32),
        "norm1_w": jnp.ones((d,), jnp.float32), "norm1_b": jnp.zeros((d,), jnp.float32),
        "norm2_w": jnp.ones((d,), jnp.float32), "norm2_b": jnp.zeros((d,), jnp.float32),
        "norm3_w": jnp.ones((d,), jnp.float32), "norm3_b": jnp.zeros((d,), jnp.float32),
    }


# -----------------------------------------------------------------------------
if __name__ == "__main__":
    d_model, nhead, dff = 32, 4, 64
    num_layers = 2
    Lq, Lk, B = 8, 16, 2          # num_queries, memory length, batch

    root = jax.random.PRNGKey(0)
    k_tgt, k_mem, k_pos, k_qpos, k_par = jax.random.split(root, 5)

    tgt = jax.random.normal(k_tgt, (Lq, B, d_model), jnp.float32)
    memory = jax.random.normal(k_mem, (Lk, B, d_model), jnp.float32)
    pos = jax.random.normal(k_pos, (Lk, B, d_model), jnp.float32)
    query_pos = jax.random.normal(k_qpos, (Lq, B, d_model), jnp.float32)

    layer_keys = jax.random.split(k_par, num_layers)
    layers_raw = [_init_layer(k, d_model, dff) for k in layer_keys]
    dec_params = prepare_decoder_params(
        layers_raw, d_model,
        final_norm=(jnp.ones((d_model,), jnp.float32), jnp.zeros((d_model,), jnp.float32)),
        compute_dtype=jnp.bfloat16)

    out = transformer_decoder_forward(
        tgt, memory, dec_params, nhead,
        pos=pos, query_pos=query_pos, return_intermediate=False)
    out = jax.block_until_ready(out)

    assert out.shape == (Lq, B, d_model) and out.dtype == jnp.float32
    assert bool(jnp.all(jnp.isfinite(out)))
    print("KERNEL_OK")
</pallas_src>

<mosaic_0001>
module attributes {stable_mosaic.version = 11 : i64} {
  func.func @_decoder_kernel(%arg0: i32, %arg1: i32, %arg2: memref<1x8x32xf32, #tpu.memory_space<vmem>>, %arg3: memref<1x16x32xf32, #tpu.memory_space<vmem>>, %arg4: memref<1x8x32xf32, #tpu.memory_space<vmem>>, %arg5: memref<1x16x32xf32, #tpu.memory_space<vmem>>, %arg6: memref<1x2x3x32x32xbf16, #tpu.memory_space<vmem>>, %arg7: memref<1x2x3x1x32xf32, #tpu.memory_space<vmem>>, %arg8: memref<1x2x32x32xbf16, #tpu.memory_space<vmem>>, %arg9: memref<1x2x1x32xf32, #tpu.memory_space<vmem>>, %arg10: memref<1x3x2x1x32xf32, #tpu.memory_space<vmem>>, %arg11: memref<1x32x64xbf16, #tpu.memory_space<vmem>>, %arg12: memref<1x1x64xf32, #tpu.memory_space<vmem>>, %arg13: memref<1x64x32xbf16, #tpu.memory_space<vmem>>, %arg14: memref<1x1x32xf32, #tpu.memory_space<vmem>>, %arg15: memref<2x1x32xf32, #tpu.memory_space<vmem>>, %arg16: memref<1x8x32xf32, #tpu.memory_space<vmem>>, %arg17: memref<8x32xf32, #tpu.memory_space<vmem>>) attributes {dimension_semantics = [#tpu.dimension_semantics<parallel>, #tpu.dimension_semantics<arbitrary>], iteration_bounds = array<i64: 2, 2>, scalar_prefetch = 0 : i64, scratch_operands = 1 : i64, tpu.core_type = #tpu.core_type<tc>, window_params = [{transform_indices = @transform_0, window_bounds = array<i64: 1, 8, 32>}, {transform_indices = @transform_1, window_bounds = array<i64: 1, 16, 32>}, {transform_indices = @transform_2, window_bounds = array<i64: 1, 8, 32>}, {transform_indices = @transform_3, window_bounds = array<i64: 1, 16, 32>}, {transform_indices = @transform_4, window_bounds = array<i64: 1, 2, 3, 32, 32>}, {transform_indices = @transform_5, window_bounds = array<i64: 1, 2, 3, 1, 32>}, {transform_indices = @transform_6, window_bounds = array<i64: 1, 2, 32, 32>}, {transform_indices = @transform_7, window_bounds = array<i64: 1, 2, 1, 32>}, {transform_indices = @transform_8, window_bounds = array<i64: 1, 3, 2, 1, 32>}, {transform_indices = @transform_9, window_bounds = array<i64: 1, 32, 64>}, {transform_indices = @transform_10, window_bounds = array<i64: 1, 1, 64>}, {transform_indices = @transform_11, window_bounds = array<i64: 1, 64, 32>}, {transform_indices = @transform_12, window_bounds = array<i64: 1, 1, 32>}, {pipeline_mode = #tpu.pipeline_mode<synchronous>, transform_indices = @transform_13, window_bounds = array<i64: 2, 1, 32>}, {transform_indices = @transform_14, window_bounds = array<i64: 1, 8, 32>}]} {
    %c0_i32 = arith.constant 0 : i32
    %0 = arith.cmpi eq, %arg1, %c0_i32 : i32
    %1 = arith.extui %0 : i1 to i32
    %c0_i32_0 = arith.constant 0 : i32
    %2 = arith.cmpi ne, %1, %c0_i32_0 : i32
    scf.if %2 {
      %c0_184 = arith.constant 0 : index
      %c0_185 = arith.constant 0 : index
      %c0_186 = arith.constant 0 : index
      %297 = vector.load %arg2[%c0_184, %c0_185, %c0_186] : memref<1x8x32xf32, #tpu.memory_space<vmem>>, vector<1x8x32xf32>
      %298 = vector.shape_cast %297 : vector<1x8x32xf32> to vector<8x32xf32>
      %c0_187 = arith.constant 0 : index
      %c0_188 = arith.constant 0 : index
      %c0_189 = arith.constant 0 : index
      %299 = vector.load %arg16[%c0_187, %c0_188, %c0_189] : memref<1x8x32xf32, #tpu.memory_space<vmem>>, vector<1x8x32xf32>
      %300 = vector.shape_cast %299 : vector<1x8x32xf32> to vector<8x32xf32>
      %301 = vector.shape_cast %298 : vector<8x32xf32> to vector<1x8x32xf32>
      tpu.vector_store %arg16[%c0_187, %c0_188, %c0_189], %301 {strides = array<i32>} : memref<1x8x32xf32, #tpu.memory_space<vmem>>, vector<1x8x32xf32>,
    } else {
    }
    %c0 = arith.constant 0 : index
    %c0_1 = arith.constant 0 : index
    %c0_2 = arith.constant 0 : index
    %3 = vector.load %arg16[%c0, %c0_1, %c0_2] : memref<1x8x32xf32, #tpu.memory_space<vmem>>, vector<1x8x32xf32>
    %4 = vector.shape_cast %3 : vector<1x8x32xf32> to vector<8x32xf32>
    %c0_3 = arith.constant 0 : index
    %c0_4 = arith.constant 0 : index
    %c0_5 = arith.constant 0 : index
    %5 = vector.load %arg4[%c0_3, %c0_4, %c0_5] : memref<1x8x32xf32, #tpu.memory_space<vmem>>, vector<1x8x32xf32>
    %6 = vector.shape_cast %5 : vector<1x8x32xf32> to vector<8x32xf32>
    %7 = arith.addf %4, %6 : vector<8x32xf32>
    %8 = arith.truncf %7 : vector<8x32xf32> to vector<8x32xbf16>
    %c0_6 = arith.constant 0 : index
    %c0_7 = arith.constant 0 : index
    %c0_8 = arith.constant 0 : index
    %c0_9 = arith.constant 0 : index
    %c0_10 = arith.constant 0 : index
    %9 = vector.load %arg6[%c0_6, %c0_7, %c0_8, %c0_9, %c0_10] : memref<1x2x3x32x32xbf16, #tpu.memory_space<vmem>>, vector<1x1x1x32x32xbf16>
    %10 = vector.shape_cast %9 : vector<1x1x1x32x32xbf16> to vector<32x32xbf16>
    %cst = arith.constant dense<0.000000e+00> : vector<8x32xf32>
    %11 = tpu.matmul %8, %10, %cst {dimension_numbers = #tpu.dot_dimension_numbers<[1], [0], [0], [1], [0, 0, 1, 1], [], []>} : vector<8x32xbf16>, vector<32x32xbf16>, vector<8x32xf32> -> vector<8x32xf32>
    %c0_11 = arith.constant 0 : index
    %c0_12 = arith.constant 0 : index
    %c0_13 = arith.constant 0 : index
    %c0_14 = arith.constant 0 : index
    %c0_15 = arith.constant 0 : index
    %12 = vector.load %arg7[%c0_11, %c0_12, %c0_13, %c0_14, %c0_15] : memref<1x2x3x1x32xf32, #tpu.memory_space<vmem>>, vector<1x1x1x1x32xf32>
    %13 = vector.shape_cast %12 : vector<1x1x1x1x32xf32> to vector<1x32xf32>
    %14 = vector.broadcast %13 : vector<1x32xf32> to vector<8x32xf32>
    %15 = arith.addf %11, %14 : vector<8x32xf32>
    %16 = arith.truncf %7 : vector<8x32xf32> to vector<8x32xbf16>
    %c0_16 = arith.constant 0 : index
    %c0_17 = arith.constant 0 : index
    %c1 = arith.constant 1 : index
    %c0_18 = arith.constant 0 : index
    %c0_19 = arith.constant 0 : index
    %17 = vector.load %arg6[%c0_16, %c0_17, %c1, %c0_18, %c0_19] : memref<1x2x3x32x32xbf16, #tpu.memory_space<vmem>>, vector<1x1x1x32x32xbf16>
    %18 = vector.shape_cast %17 : vector<1x1x1x32x32xbf16> to vector<32x32xbf16>
    %cst_20 = arith.constant dense<0.000000e+00> : vector<8x32xf32>
    %19 = tpu.matmul %16, %18, %cst_20 {dimension_numbers = #tpu.dot_dimension_numbers<[1], [0], [0], [1], [0, 0, 1, 1], [], []>} : vector<8x32xbf16>, vector<32x32xbf16>, vector<8x32xf32> -> vector<8x32xf32>
    %c0_21 = arith.constant 0 : index
    %c0_22 = arith.constant 0 : index
    %c1_23 = arith.constant 1 : index
    %c0_24 = arith.constant 0 : index
    %c0_25 = arith.constant 0 : index
    %20 = vector.load %arg7[%c0_21, %c0_22, %c1_23, %c0_24, %c0_25] : memref<1x2x3x1x32xf32, #tpu.memory_space<vmem>>, vector<1x1x1x1x32xf32>
    %21 = vector.shape_cast %20 : vector<1x1x1x1x32xf32> to vector<1x32xf32>
    %22 = vector.broadcast %21 : vector<1x32xf32> to vector<8x32xf32>
    %23 = arith.addf %19, %22 : vector<8x32xf32>
    %24 = arith.truncf %4 : vector<8x32xf32> to vector<8x32xbf16>
    %c0_26 = arith.constant 0 : index
    %c0_27 = arith.constant 0 : index
    %c2 = arith.constant 2 : index
    %c0_28 = arith.constant 0 : index
    %c0_29 = arith.constant 0 : index
    %25 = vector.load %arg6[%c0_26, %c0_27, %c2, %c0_28, %c0_29] : memref<1x2x3x32x32xbf16, #tpu.memory_space<vmem>>, vector<1x1x1x32x32xbf16>
    %26 = vector.shape_cast %25 : vector<1x1x1x32x32xbf16> to vector<32x32xbf16>
    %cst_30 = arith.constant dense<0.000000e+00> : vector<8x32xf32>
    %27 = tpu.matmul %24, %26, %cst_30 {dimension_numbers = #tpu.dot_dimension_numbers<[1], [0], [0], [1], [0, 0, 1, 1], [], []>} : vector<8x32xbf16>, vector<32x32xbf16>, vector<8x32xf32> -> vector<8x32xf32>
    %c0_31 = arith.constant 0 : index
    %c0_32 = arith.constant 0 : index
    %c2_33 = arith.constant 2 : index
    %c0_34 = arith.constant 0 : index
    %c0_35 = arith.constant 0 : index
    %28 = vector.load %arg7[%c0_31, %c0_32, %c2_33, %c0_34, %c0_35] : memref<1x2x3x1x32xf32, #tpu.memory_space<vmem>>, vector<1x1x1x1x32xf32>
    %29 = vector.shape_cast %28 : vector<1x1x1x1x32xf32> to vector<1x32xf32>
    %30 = vector.broadcast %29 : vector<1x32xf32> to vector<8x32xf32>
    %31 = arith.addf %27, %30 : vector<8x32xf32>
    %32 = vector.extract_strided_slice %15 {offsets = [0, 0], sizes = [8, 8], strides = [1, 1]} : vector<8x32xf32> to vector<8x8xf32>
    %33 = vector.extract_strided_slice %15 {offsets = [0, 8], sizes = [8, 8], strides = [1, 1]} : vector<8x32xf32> to vector<8x8xf32>
    %34 = vector.extract_strided_slice %15 {offsets = [0, 16], sizes = [8, 8], strides = [1, 1]} : vector<8x32xf32> to vector<8x8xf32>
    %35 = vector.extract_strided_slice %15 {offsets = [0, 24], sizes = [8, 8], strides = [1, 1]} : vector<8x32xf32> to vector<8x8xf32>
    %36 = vector.shape_cast %32 : vector<8x8xf32> to vector<1x8x8xf32>
    %37 = vector.shape_cast %33 : vector<8x8xf32> to vector<1x8x8xf32>
    %38 = vector.shape_cast %34 : vector<8x8xf32> to vector<1x8x8xf32>
    %39 = vector.shape_cast %35 : vector<8x8xf32> to vector<1x8x8xf32>
    %40 = tpu.concatenate %36, %37, %38, %39 in 0 : vector<1x8x8xf32>, vector<1x8x8xf32>, vector<1x8x8xf32>, vector<1x8x8xf32> -> vector<4x8x8xf32>
    %cst_36 = arith.constant 0.353553385 : f32
    %41 = vector.broadcast %cst_36 : f32 to vector<4x8x8xf32>
    %42 = arith.mulf %40, %41 : vector<4x8x8xf32>
    %43 = vector.extract_strided_slice %23 {offsets = [0, 0], sizes = [8, 8], strides = [1, 1]} : vector<8x32xf32> to vector<8x8xf32>
    %44 = vector.extract_strided_slice %23 {offsets = [0, 8], sizes = [8, 8], strides = [1, 1]} : vector<8x32xf32> to vector<8x8xf32>
    %45 = vector.extract_strided_slice %23 {offsets = [0, 16], sizes = [8, 8], strides = [1, 1]} : vector<8x32xf32> to vector<8x8xf32>
    %46 = vector.extract_strided_slice %23 {offsets = [0, 24], sizes = [8, 8], strides = [1, 1]} : vector<8x32xf32> to vector<8x8xf32>
    %47 = vector.shape_cast %43 : vector<8x8xf32> to vector<1x8x8xf32>
    %48 = vector.shape_cast %44 : vector<8x8xf32> to vector<1x8x8xf32>
    %49 = vector.shape_cast %45 : vector<8x8xf32> to vector<1x8x8xf32>
    %50 = vector.shape_cast %46 : vector<8x8xf32> to vector<1x8x8xf32>
    %51 = tpu.concatenate %47, %48, %49, %50 in 0 : vector<1x8x8xf32>, vector<1x8x8xf32>, vector<1x8x8xf32>, vector<1x8x8xf32> -> vector<4x8x8xf32>
    %52 = vector.extract_strided_slice %31 {offsets = [0, 0], sizes = [8, 8], strides = [1, 1]} : vector<8x32xf32> to vector<8x8xf32>
    %53 = vector.extract_strided_slice %31 {offsets = [0, 8], sizes = [8, 8], strides = [1, 1]} : vector<8x32xf32> to vector<8x8xf32>
    %54 = vector.extract_strided_slice %31 {offsets = [0, 16], sizes = [8, 8], strides = [1, 1]} : vector<8x32xf32> to vector<8x8xf32>
    %55 = vector.extract_strided_slice %31 {offsets = [0, 24], sizes = [8, 8], strides = [1, 1]} : vector<8x32xf32> to vector<8x8xf32>
    %56 = vector.shape_cast %52 : vector<8x8xf32> to vector<1x8x8xf32>
    %57 = vector.shape_cast %53 : vector<8x8xf32> to vector<1x8x8xf32>
    %58 = vector.shape_cast %54 : vector<8x8xf32> to vector<1x8x8xf32>
    %59 = vector.shape_cast %55 : vector<8x8xf32> to vector<1x8x8xf32>
    %60 = tpu.concatenate %56, %57, %58, %59 in 0 : vector<1x8x8xf32>, vector<1x8x8xf32>, vector<1x8x8xf32>, vector<1x8x8xf32> -> vector<4x8x8xf32>
    %61 = arith.truncf %42 : vector<4x8x8xf32> to vector<4x8x8xbf16>
    %62 = arith.truncf %51 : vector<4x8x8xf32> to vector<4x8x8xbf16>
    "tpu.trace_start"() <{level = 10 : i32, message = "hqd,hkd->hqk"}> : () -> ()
    %cst_37 = arith.constant dense<0.000000e+00> : vector<4x8x8xf32>
    %63 = tpu.matmul %61, %62, %cst_37 {dimension_numbers = #tpu.dot_dimension_numbers<[2], [2], [1], [1], [0, 0, 0, 1, 1, 1], [0], [0]>} : vector<4x8x8xbf16>, vector<4x8x8xbf16>, vector<4x8x8xf32> -> vector<4x8x8xf32>
    "tpu.trace_stop"() : () -> ()
    %cst_38 = arith.constant dense<0xFF800000> : vector<4x8xf32>
    %64 = vector.multi_reduction <maximumf>, %63, %cst_38 [2] : vector<4x8x8xf32> to vector<4x8xf32>
    %65 = vector.shape_cast %64 : vector<4x8xf32> to vector<4x8x1xf32>
    %66 = vector.broadcast %65 : vector<4x8x1xf32> to vector<4x8x8xf32>
    %67 = arith.subf %63, %66 : vector<4x8x8xf32>
    %68 = math.exp %67 : vector<4x8x8xf32>
    %cst_39 = arith.constant dense<0.000000e+00> : vector<4x8xf32>
    %69 = vector.multi_reduction <add>, %68, %cst_39 [2] : vector<4x8x8xf32> to vector<4x8xf32>
    %70 = vector.shape_cast %69 : vector<4x8xf32> to vector<4x8x1xf32>
    %71 = vector.broadcast %70 : vector<4x8x1xf32> to vector<4x8x8xf32>
    %72 = arith.divf %68, %71 : vector<4x8x8xf32>
    %73 = arith.truncf %72 : vector<4x8x8xf32> to vector<4x8x8xbf16>
    %74 = arith.truncf %60 : vector<4x8x8xf32> to vector<4x8x8xbf16>
    "tpu.trace_start"() <{level = 10 : i32, message = "hqk,hkd->hqd"}> : () -> ()
    %cst_40 = arith.constant dense<0.000000e+00> : vector<4x8x8xf32>
    %75 = tpu.matmul %73, %74, %cst_40 {dimension_numbers = #tpu.dot_dimension_numbers<[2], [1], [1], [2], [0, 0, 0, 1, 1, 2], [0], [0]>} : vector<4x8x8xbf16>, vector<4x8x8xbf16>, vector<4x8x8xf32> -> vector<4x8x8xf32>
    "tpu.trace_stop"() : () -> ()
    %76 = vector.extract_strided_slice %75 {offsets = [0, 0, 0], sizes = [1, 8, 8], strides = [1, 1, 1]} : vector<4x8x8xf32> to vector<1x8x8xf32>
    %77 = vector.shape_cast %76 : vector<1x8x8xf32> to vector<8x8xf32>
    %c0_41 = arith.constant 0 : index
    %c0_42 = arith.constant 0 : index
    %78 = vector.load %arg17[%c0_41, %c0_42] : memref<8x32xf32, #tpu.memory_space<vmem>>, vector<8x8xf32>
    tpu.vector_store %arg17[%c0_41, %c0_42], %77 {strides = array<i32>} : memref<8x32xf32, #tpu.memory_space<vmem>>, vector<8x8xf32>,
    %79 = vector.extract_strided_slice %75 {offsets = [1, 0, 0], sizes = [1, 8, 8], strides = [1, 1, 1]} : vector<4x8x8xf32> to vector<1x8x8xf32>
    %80 = vector.shape_cast %79 : vector<1x8x8xf32> to vector<8x8xf32>
    %c0_43 = arith.constant 0 : index
    %c8 = arith.constant 8 : index
    %81 = vector.load %arg17[%c0_43, %c8] : memref<8x32xf32, #tpu.memory_space<vmem>>, vector<8x8xf32>
    tpu.vector_store %arg17[%c0_43, %c8], %80 {strides = array<i32>} : memref<8x32xf32, #tpu.memory_space<vmem>>, vector<8x8xf32>,
    %82 = vector.extract_strided_slice %75 {offsets = [2, 0, 0], sizes = [1, 8, 8], strides = [1, 1, 1]} : vector<4x8x8xf32> to vector<1x8x8xf32>
    %83 = vector.shape_cast %82 : vector<1x8x8xf32> to vector<8x8xf32>
    %c0_44 = arith.constant 0 : index
    %c16 = arith.constant 16 : index
    %84 = vector.load %arg17[%c0_44, %c16] : memref<8x32xf32, #tpu.memory_space<vmem>>, vector<8x8xf32>
    tpu.vector_store %arg17[%c0_44, %c16], %83 {strides = array<i32>} : memref<8x32xf32, #tpu.memory_space<vmem>>, vector<8x8xf32>,
    %85 = vector.extract_strided_slice %75 {offsets = [3, 0, 0], sizes = [1, 8, 8], strides = [1, 1, 1]} : vector<4x8x8xf32> to vector<1x8x8xf32>
    %86 = vector.shape_cast %85 : vector<1x8x8xf32> to vector<8x8xf32>
    %c0_45 = arith.constant 0 : index
    %c24 = arith.constant 24 : index
    %87 = vector.load %arg17[%c0_45, %c24] : memref<8x32xf32, #tpu.memory_space<vmem>>, vector<8x8xf32>
    tpu.vector_store %arg17[%c0_45, %c24], %86 {strides = array<i32>} : memref<8x32xf32, #tpu.memory_space<vmem>>, vector<8x8xf32>,
    %c0_46 = arith.constant 0 : index
    %c0_47 = arith.constant 0 : index
    %88 = vector.load %arg17[%c0_46, %c0_47] : memref<8x32xf32, #tpu.memory_space<vmem>>, vector<8x32xf32>
    %89 = arith.truncf %88 : vector<8x32xf32> to vector<8x32xbf16>
    %c0_48 = arith.constant 0 : index
    %c0_49 = arith.constant 0 : index
    %c0_50 = arith.constant 0 : index
    %c0_51 = arith.constant 0 : index
    %90 = vector.load %arg8[%c0_48, %c0_49, %c0_50, %c0_51] : memref<1x2x32x32xbf16, #tpu.memory_space<vmem>>, vector<1x1x32x32xbf16>
    %91 = vector.shape_cast %90 : vector<1x1x32x32xbf16> to vector<32x32xbf16>
    %cst_52 = arith.constant dense<0.000000e+00> : vector<8x32xf32>
    %92 = tpu.matmul %89, %91, %cst_52 {dimension_numbers = #tpu.dot_dimension_numbers<[1], [0], [0], [1], [0, 0, 1, 1], [], []>} : vector<8x32xbf16>, vector<32x32xbf16>, vector<8x32xf32> -> vector<8x32xf32>
    %c0_53 = arith.constant 0 : index
    %c0_54 = arith.constant 0 : index
    %c0_55 = arith.constant 0 : index
    %c0_56 = arith.constant 0 : index
    %93 = vector.load %arg9[%c0_53, %c0_54, %c0_55, %c0_56] : memref<1x2x1x32xf32, #tpu.memory_space<vmem>>, vector<1x1x1x32xf32>
    %94 = vector.shape_cast %93 : vector<1x1x1x32xf32> to vector<1x32xf32>
    %95 = vector.broadcast %94 : vector<1x32xf32> to vector<8x32xf32>
    %96 = arith.addf %92, %95 : vector<8x32xf32>
    %97 = arith.addf %4, %96 : vector<8x32xf32>
    %c0_57 = arith.constant 0 : index
    %c0_58 = arith.constant 0 : index
    %c0_59 = arith.constant 0 : index
    %c0_60 = arith.constant 0 : index
    %c0_61 = arith.constant 0 : index
    %98 = vector.load %arg10[%c0_57, %c0_58, %c0_59, %c0_60, %c0_61] : memref<1x3x2x1x32xf32, #tpu.memory_space<vmem>>, vector<1x1x1x1x32xf32>
    %99 = vector.shape_cast %98 : vector<1x1x1x1x32xf32> to vector<1x32xf32>
    %c0_62 = arith.constant 0 : index
    %c0_63 = arith.constant 0 : index
    %c1_64 = arith.constant 1 : index
    %c0_65 = arith.constant 0 : index
    %c0_66 = arith.constant 0 : index
    %100 = vector.load %arg10[%c0_62, %c0_63, %c1_64, %c0_65, %c0_66] : memref<1x3x2x1x32xf32, #tpu.memory_space<vmem>>, vector<1x1x1x1x32xf32>
    %101 = vector.shape_cast %100 : vector<1x1x1x1x32xf32> to vector<1x32xf32>
    %cst_67 = arith.constant dense<0.000000e+00> : vector<8xf32>
    %102 = vector.multi_reduction <add>, %97, %cst_67 [1] : vector<8x32xf32> to vector<8xf32>
    %103 = vector.shape_cast %102 : vector<8xf32> to vector<8x1xf32>
    %cst_68 = arith.constant 3.200000e+01 : f32
    %104 = vector.broadcast %cst_68 : f32 to vector<8x1xf32>
    %105 = arith.divf %103, %104 : vector<8x1xf32>
    %106 = vector.broadcast %105 : vector<8x1xf32> to vector<8x32xf32>
    %107 = arith.subf %97, %106 : vector<8x32xf32>
    %108 = arith.mulf %107, %107 : vector<8x32xf32>
    %cst_69 = arith.constant dense<0.000000e+00> : vector<8xf32>
    %109 = vector.multi_reduction <add>, %108, %cst_69 [1] : vector<8x32xf32> to vector<8xf32>
    %110 = vector.shape_cast %109 : vector<8xf32> to vector<8x1xf32>
    %cst_70 = arith.constant 3.200000e+01 : f32
    %111 = vector.broadcast %cst_70 : f32 to vector<8x1xf32>
    %112 = arith.divf %110, %111 : vector<8x1xf32>
    %113 = vector.broadcast %105 : vector<8x1xf32> to vector<8x32xf32>
    %114 = arith.subf %97, %113 : vector<8x32xf32>
    %cst_71 = arith.constant 9.99999974E-6 : f32
    %115 = vector.broadcast %cst_71 : f32 to vector<8x1xf32>
    %116 = arith.addf %112, %115 : vector<8x1xf32>
    %117 = math.rsqrt %116 : vector<8x1xf32>
    %118 = vector.broadcast %117 : vector<8x1xf32> to vector<8x32xf32>
    %119 = arith.mulf %114, %118 : vector<8x32xf32>
    %120 = vector.broadcast %99 : vector<1x32xf32> to vector<8x32xf32>
    %121 = arith.mulf %119, %120 : vector<8x32xf32>
    %122 = vector.broadcast %101 : vector<1x32xf32> to vector<8x32xf32>
    %123 = arith.addf %121, %122 : vector<8x32xf32>
    %c0_72 = arith.constant 0 : index
    %c0_73 = arith.constant 0 : index
    %c0_74 = arith.constant 0 : index
    %124 = vector.load %arg3[%c0_72, %c0_73, %c0_74] : memref<1x16x32xf32, #tpu.memory_space<vmem>>, vector<1x16x32xf32>
    %125 = vector.shape_cast %124 : vector<1x16x32xf32> to vector<16x32xf32>
    %c0_75 = arith.constant 0 : index
    %c0_76 = arith.constant 0 : index
    %c0_77 = arith.constant 0 : index
    %126 = vector.load %arg5[%c0_75, %c0_76, %c0_77] : memref<1x16x32xf32, #tpu.memory_space<vmem>>, vector<1x16x32xf32>
    %127 = vector.shape_cast %126 : vector<1x16x32xf32> to vector<16x32xf32>
    %128 = arith.addf %125, %127 : vector<16x32xf32>
    %129 = arith.addf %123, %6 : vector<8x32xf32>
    %130 = arith.truncf %129 : vector<8x32xf32> to vector<8x32xbf16>
    %c0_78 = arith.constant 0 : index
    %c1_79 = arith.constant 1 : index
    %c0_80 = arith.constant 0 : index
    %c0_81 = arith.constant 0 : index
    %c0_82 = arith.constant 0 : index
    %131 = vector.load %arg6[%c0_78, %c1_79, %c0_80, %c0_81, %c0_82] : memref<1x2x3x32x32xbf16, #tpu.memory_space<vmem>>, vector<1x1x1x32x32xbf16>
    %132 = vector.shape_cast %131 : vector<1x1x1x32x32xbf16> to vector<32x32xbf16>
    %cst_83 = arith.constant dense<0.000000e+00> : vector<8x32xf32>
    %133 = tpu.matmul %130, %132, %cst_83 {dimension_numbers = #tpu.dot_dimension_numbers<[1], [0], [0], [1], [0, 0, 1, 1], [], []>} : vector<8x32xbf16>, vector<32x32xbf16>, vector<8x32xf32> -> vector<8x32xf32>
    %c0_84 = arith.constant 0 : index
    %c1_85 = arith.constant 1 : index
    %c0_86 = arith.constant 0 : index
    %c0_87 = arith.constant 0 : index
    %c0_88 = arith.constant 0 : index
    %134 = vector.load %arg7[%c0_84, %c1_85, %c0_86, %c0_87, %c0_88] : memref<1x2x3x1x32xf32, #tpu.memory_space<vmem>>, vector<1x1x1x1x32xf32>
    %135 = vector.shape_cast %134 : vector<1x1x1x1x32xf32> to vector<1x32xf32>
    %136 = vector.broadcast %135 : vector<1x32xf32> to vector<8x32xf32>
    %137 = arith.addf %133, %136 : vector<8x32xf32>
    %138 = arith.truncf %128 : vector<16x32xf32> to vector<16x32xbf16>
    %c0_89 = arith.constant 0 : index
    %c1_90 = arith.constant 1 : index
    %c1_91 = arith.constant 1 : index
    %c0_92 = arith.constant 0 : index
    %c0_93 = arith.constant 0 : index
    %139 = vector.load %arg6[%c0_89, %c1_90, %c1_91, %c0_92, %c0_93] : memref<1x2x3x32x32xbf16, #tpu.memory_space<vmem>>, vector<1x1x1x32x32xbf16>
    %140 = vector.shape_cast %139 : vector<1x1x1x32x32xbf16> to vector<32x32xbf16>
    %cst_94 = arith.constant dense<0.000000e+00> : vector<16x32xf32>
    %141 = tpu.matmul %138, %140, %cst_94 {dimension_numbers = #tpu.dot_dimension_numbers<[1], [0], [0], [1], [0, 0, 1, 1], [], []>} : vector<16x32xbf16>, vector<32x32xbf16>, vector<16x32xf32> -> vector<16x32xf32>
    %c0_95 = arith.constant 0 : index
    %c1_96 = arith.constant 1 : index
    %c1_97 = arith.constant 1 : index
    %c0_98 = arith.constant 0 : index
    %c0_99 = arith.constant 0 : index
    %142 = vector.load %arg7[%c0_95, %c1_96, %c1_97, %c0_98, %c0_99] : memref<1x2x3x1x32xf32, #tpu.memory_space<vmem>>, vector<1x1x1x1x32xf32>
    %143 = vector.shape_cast %142 : vector<1x1x1x1x32xf32> to vector<1x32xf32>
    %144 = vector.broadcast %143 : vector<1x32xf32> to vector<16x32xf32>
    %145 = arith.addf %141, %144 : vector<16x32xf32>
    %146 = arith.truncf %125 : vector<16x32xf32> to vector<16x32xbf16>
    %c0_100 = arith.constant 0 : index
    %c1_101 = arith.constant 1 : index
    %c2_102 = arith.constant 2 : index
    %c0_103 = arith.constant 0 : index
    %c0_104 = arith.constant 0 : index
    %147 = vector.load %arg6[%c0_100, %c1_101, %c2_102, %c0_103, %c0_104] : memref<1x2x3x32x32xbf16, #tpu.memory_space<vmem>>, vector<1x1x1x32x32xbf16>
    %148 = vector.shape_cast %147 : vector<1x1x1x32x32xbf16> to vector<32x32xbf16>
    %cst_105 = arith.constant dense<0.000000e+00> : vector<16x32xf32>
    %149 = tpu.matmul %146, %148, %cst_105 {dimension_numbers = #tpu.dot_dimension_numbers<[1], [0], [0], [1], [0, 0, 1, 1], [], []>} : vector<16x32xbf16>, vector<32x32xbf16>, vector<16x32xf32> -> vector<16x32xf32>
    %c0_106 = arith.constant 0 : index
    %c1_107 = arith.constant 1 : index
    %c2_108 = arith.constant 2 : index
    %c0_109 = arith.constant 0 : index
    %c0_110 = arith.constant 0 : index
    %150 = vector.load %arg7[%c0_106, %c1_107, %c2_108, %c0_109, %c0_110] : memref<1x2x3x1x32xf32, #tpu.memory_space<vmem>>, vector<1x1x1x1x32xf32>
    %151 = vector.shape_cast %150 : vector<1x1x1x1x32xf32> to vector<1x32xf32>
    %152 = vector.broadcast %151 : vector<1x32xf32> to vector<16x32xf32>
    %153 = arith.addf %149, %152 : vector<16x32xf32>
    %154 = vector.extract_strided_slice %137 {offsets = [0, 0], sizes = [8, 8], strides = [1, 1]} : vector<8x32xf32> to vector<8x8xf32>
    %155 = vector.extract_strided_slice %137 {offsets = [0, 8], sizes = [8, 8], strides = [1, 1]} : vector<8x32xf32> to vector<8x8xf32>
    %156 = vector.extract_strided_slice %137 {offsets = [0, 16], sizes = [8, 8], strides = [1, 1]} : vector<8x32xf32> to vector<8x8xf32>
    %157 = vector.extract_strided_slice %137 {offsets = [0, 24], sizes = [8, 8], strides = [1, 1]} : vector<8x32xf32> to vector<8x8xf32>
    %158 = vector.shape_cast %154 : vector<8x8xf32> to vector<1x8x8xf32>
    %159 = vector.shape_cast %155 : vector<8x8xf32> to vector<1x8x8xf32>
    %160 = vector.shape_cast %156 : vector<8x8xf32> to vector<1x8x8xf32>
    %161 = vector.shape_cast %157 : vector<8x8xf32> to vector<1x8x8xf32>
    %162 = tpu.concatenate %158, %159, %160, %161 in 0 : vector<1x8x8xf32>, vector<1x8x8xf32>, vector<1x8x8xf32>, vector<1x8x8xf32> -> vector<4x8x8xf32>
    %cst_111 = arith.constant 0.353553385 : f32
    %163 = vector.broadcast %cst_111 : f32 to vector<4x8x8xf32>
    %164 = arith.mulf %162, %163 : vector<4x8x8xf32>
    %165 = vector.extract_strided_slice %145 {offsets = [0, 0], sizes = [16, 8], strides = [1, 1]} : vector<16x32xf32> to vector<16x8xf32>
    %166 = vector.extract_strided_slice %145 {offsets = [0, 8], sizes = [16, 8], strides = [1, 1]} : vector<16x32xf32> to vector<16x8xf32>
    %167 = vector.extract_strided_slice %145 {offsets = [0, 16], sizes = [16, 8], strides = [1, 1]} : vector<16x32xf32> to vector<16x8xf32>
    %168 = vector.extract_strided_slice %145 {offsets = [0, 24], sizes = [16, 8], strides = [1, 1]} : vector<16x32xf32> to vector<16x8xf32>
    %169 = vector.shape_cast %165 : vector<16x8xf32> to vector<1x16x8xf32>
    %170 = vector.shape_cast %166 : vector<16x8xf32> to vector<1x16x8xf32>
    %171 = vector.shape_cast %167 : vector<16x8xf32> to vector<1x16x8xf32>
    %172 = vector.shape_cast %168 : vector<16x8xf32> to vector<1x16x8xf32>
    %173 = tpu.concatenate %169, %170, %171, %172 in 0 : vector<1x16x8xf32>, vector<1x16x8xf32>, vector<1x16x8xf32>, vector<1x16x8xf32> -> vector<4x16x8xf32>
    %174 = vector.extract_strided_slice %153 {offsets = [0, 0], sizes = [16, 8], strides = [1, 1]} : vector<16x32xf32> to vector<16x8xf32>
    %175 = vector.extract_strided_slice %153 {offsets = [0, 8], sizes = [16, 8], strides = [1, 1]} : vector<16x32xf32> to vector<16x8xf32>
    %176 = vector.extract_strided_slice %153 {offsets = [0, 16], sizes = [16, 8], strides = [1, 1]} : vector<16x32xf32> to vector<16x8xf32>
    %177 = vector.extract_strided_slice %153 {offsets = [0, 24], sizes = [16, 8], strides = [1, 1]} : vector<16x32xf32> to vector<16x8xf32>
    %178 = vector.shape_cast %174 : vector<16x8xf32> to vector<1x16x8xf32>
    %179 = vector.shape_cast %175 : vector<16x8xf32> to vector<1x16x8xf32>
    %180 = vector.shape_cast %176 : vector<16x8xf32> to vector<1x16x8xf32>
    %181 = vector.shape_cast %177 : vector<16x8xf32> to vector<1x16x8xf32>
    %182 = tpu.concatenate %178, %179, %180, %181 in 0 : vector<1x16x8xf32>, vector<1x16x8xf32>, vector<1x16x8xf32>, vector<1x16x8xf32> -> vector<4x16x8xf32>
    %183 = arith.truncf %164 : vector<4x8x8xf32> to vector<4x8x8xbf16>
    %184 = arith.truncf %173 : vector<4x16x8xf32> to vector<4x16x8xbf16>
    "tpu.trace_start"() <{level = 10 : i32, message = "hqd,hkd->hqk"}> : () -> ()
    %cst_112 = arith.constant dense<0.000000e+00> : vector<4x8x16xf32>
    %185 = tpu.matmul %183, %184, %cst_112 {dimension_numbers = #tpu.dot_dimension_numbers<[2], [2], [1], [1], [0, 0, 0, 1, 1, 1], [0], [0]>} : vector<4x8x8xbf16>, vector<4x16x8xbf16>, vector<4x8x16xf32> -> vector<4x8x16xf32>
    "tpu.trace_stop"() : () -> ()
    %cst_113 = arith.constant dense<0xFF800000> : vector<4x8xf32>
    %186 = vector.multi_reduction <maximumf>, %185, %cst_113 [2] : vector<4x8x16xf32> to vector<4x8xf32>
    %187 = vector.shape_cast %186 : vector<4x8xf32> to vector<4x8x1xf32>
    %188 = vector.broadcast %187 : vector<4x8x1xf32> to vector<4x8x16xf32>
    %189 = arith.subf %185, %188 : vector<4x8x16xf32>
    %190 = math.exp %189 : vector<4x8x16xf32>
    %cst_114 = arith.constant dense<0.000000e+00> : vector<4x8xf32>
    %191 = vector.multi_reduction <add>, %190, %cst_114 [2] : vector<4x8x16xf32> to vector<4x8xf32>
    %192 = vector.shape_cast %191 : vector<4x8xf32> to vector<4x8x1xf32>
    %193 = vector.broadcast %192 : vector<4x8x1xf32> to vector<4x8x16xf32>
    %194 = arith.divf %190, %193 : vector<4x8x16xf32>
    %195 = arith.truncf %194 : vector<4x8x16xf32> to vector<4x8x16xbf16>
    %196 = arith.truncf %182 : vector<4x16x8xf32> to vector<4x16x8xbf16>
    "tpu.trace_start"() <{level = 10 : i32, message = "hqk,hkd->hqd"}> : () -> ()
    %cst_115 = arith.constant dense<0.000000e+00> : vector<4x8x8xf32>
    %197 = tpu.matmul %195, %196, %cst_115 {dimension_numbers = #tpu.dot_dimension_numbers<[2], [1], [1], [2], [0, 0, 0, 1, 1, 2], [0], [0]>} : vector<4x8x16xbf16>, vector<4x16x8xbf16>, vector<4x8x8xf32> -> vector<4x8x8xf32>
    "tpu.trace_stop"() : () -> ()
    %198 = vector.extract_strided_slice %197 {offsets = [0, 0, 0], sizes = [1, 8, 8], strides = [1, 1, 1]} : vector<4x8x8xf32> to vector<1x8x8xf32>
    %199 = vector.shape_cast %198 : vector<1x8x8xf32> to vector<8x8xf32>
    %c0_116 = arith.constant 0 : index
    %c0_117 = arith.constant 0 : index
    %200 = vector.load %arg17[%c0_116, %c0_117] : memref<8x32xf32, #tpu.memory_space<vmem>>, vector<8x8xf32>
    tpu.vector_store %arg17[%c0_116, %c0_117], %199 {strides = array<i32>} : memref<8x32xf32, #tpu.memory_space<vmem>>, vector<8x8xf32>,
    %201 = vector.extract_strided_slice %197 {offsets = [1, 0, 0], sizes = [1, 8, 8], strides = [1, 1, 1]} : vector<4x8x8xf32> to vector<1x8x8xf32>
    %202 = vector.shape_cast %201 : vector<1x8x8xf32> to vector<8x8xf32>
    %c0_118 = arith.constant 0 : index
    %c8_119 = arith.constant 8 : index
    %203 = vector.load %arg17[%c0_118, %c8_119] : memref<8x32xf32, #tpu.memory_space<vmem>>, vector<8x8xf32>
    tpu.vector_store %arg17[%c0_118, %c8_119], %202 {strides = array<i32>} : memref<8x32xf32, #tpu.memory_space<vmem>>, vector<8x8xf32>,
    %204 = vector.extract_strided_slice %197 {offsets = [2, 0, 0], sizes = [1, 8, 8], strides = [1, 1, 1]} : vector<4x8x8xf32> to vector<1x8x8xf32>
    %205 = vector.shape_cast %204 : vector<1x8x8xf32> to vector<8x8xf32>
    %c0_120 = arith.constant 0 : index
    %c16_121 = arith.constant 16 : index
    %206 = vector.load %arg17[%c0_120, %c16_121] : memref<8x32xf32, #tpu.memory_space<vmem>>, vector<8x8xf32>
    tpu.vector_store %arg17[%c0_120, %c16_121], %205 {strides = array<i32>} : memref<8x32xf32, #tpu.memory_space<vmem>>, vector<8x8xf32>,
    %207 = vector.extract_strided_slice %197 {offsets = [3, 0, 0], sizes = [1, 8, 8], strides = [1, 1, 1]} : vector<4x8x8xf32> to vector<1x8x8xf32>
    %208 = vector.shape_cast %207 : vector<1x8x8xf32> to vector<8x8xf32>
    %c0_122 = arith.constant 0 : index
    %c24_123 = arith.constant 24 : index
    %209 = vector.load %arg17[%c0_122, %c24_123] : memref<8x32xf32, #tpu.memory_space<vmem>>, vector<8x8xf32>
    tpu.vector_store %arg17[%c0_122, %c24_123], %208 {strides = array<i32>} : memref<8x32xf32, #tpu.memory_space<vmem>>, vector<8x8xf32>,
    %c0_124 = arith.constant 0 : index
    %c0_125 = arith.constant 0 : index
    %210 = vector.load %arg17[%c0_124, %c0_125] : memref<8x32xf32, #tpu.memory_space<vmem>>, vector<8x32xf32>
    %211 = arith.truncf %210 : vector<8x32xf32> to vector<8x32xbf16>
    %c0_126 = arith.constant 0 : index
    %c1_127 = arith.constant 1 : index
    %c0_128 = arith.constant 0 : index
    %c0_129 = arith.constant 0 : index
    %212 = vector.load %arg8[%c0_126, %c1_127, %c0_128, %c0_129] : memref<1x2x32x32xbf16, #tpu.memory_space<vmem>>, vector<1x1x32x32xbf16>
    %213 = vector.shape_cast %212 : vector<1x1x32x32xbf16> to vector<32x32xbf16>
    %cst_130 = arith.constant dense<0.000000e+00> : vector<8x32xf32>
    %214 = tpu.matmul %211, %213, %cst_130 {dimension_numbers = #tpu.dot_dimension_numbers<[1], [0], [0], [1], [0, 0, 1, 1], [], []>} : vector<8x32xbf16>, vector<32x32xbf16>, vector<8x32xf32> -> vector<8x32xf32>
    %c0_131 = arith.constant 0 : index
    %c1_132 = arith.constant 1 : index
    %c0_133 = arith.constant 0 : index
    %c0_134 = arith.constant 0 : index
    %215 = vector.load %arg9[%c0_131, %c1_132, %c0_133, %c0_134] : memref<1x2x1x32xf32, #tpu.memory_space<vmem>>, vector<1x1x1x32xf32>
    %216 = vector.shape_cast %215 : vector<1x1x1x32xf32> to vector<1x32xf32>
    %217 = vector.broadcast %216 : vector<1x32xf32> to vector<8x32xf32>
    %218 = arith.addf %214, %217 : vector<8x32xf32>
    %219 = arith.addf %123, %218 : vector<8x32xf32>
    %c0_135 = arith.constant 0 : index
    %c1_136 = arith.constant 1 : index
    %c0_137 = arith.constant 0 : index
    %c0_138 = arith.constant 0 : index
    %c0_139 = arith.constant 0 : index
    %220 = vector.load %arg10[%c0_135, %c1_136, %c0_137, %c0_138, %c0_139] : memref<1x3x2x1x32xf32, #tpu.memory_space<vmem>>, vector<1x1x1x1x32xf32>
    %221 = vector.shape_cast %220 : vector<1x1x1x1x32xf32> to vector<1x32xf32>
    %c0_140 = arith.constant 0 : index
    %c1_141 = arith.constant 1 : index
    %c1_142 = arith.constant 1 : index
    %c0_143 = arith.constant 0 : index
    %c0_144 = arith.constant 0 : index
    %222 = vector.load %arg10[%c0_140, %c1_141, %c1_142, %c0_143, %c0_144] : memref<1x3x2x1x32xf32, #tpu.memory_space<vmem>>, vector<1x1x1x1x32xf32>
    %223 = vector.shape_cast %222 : vector<1x1x1x1x32xf32> to vector<1x32xf32>
    %cst_145 = arith.constant dense<0.000000e+00> : vector<8xf32>
    %224 = vector.multi_reduction <add>, %219, %cst_145 [1] : vector<8x32xf32> to vector<8xf32>
    %225 = vector.shape_cast %224 : vector<8xf32> to vector<8x1xf32>
    %cst_146 = arith.constant 3.200000e+01 : f32
    %226 = vector.broadcast %cst_146 : f32 to vector<8x1xf32>
    %227 = arith.divf %225, %226 : vector<8x1xf32>
    %228 = vector.broadcast %227 : vector<8x1xf32> to vector<8x32xf32>
    %229 = arith.subf %219, %228 : vector<8x32xf32>
    %230 = arith.mulf %229, %229 : vector<8x32xf32>
    %cst_147 = arith.constant dense<0.000000e+00> : vector<8xf32>
    %231 = vector.multi_reduction <add>, %230, %cst_147 [1] : vector<8x32xf32> to vector<8xf32>
    %232 = vector.shape_cast %231 : vector<8xf32> to vector<8x1xf32>
    %cst_148 = arith.constant 3.200000e+01 : f32
    %233 = vector.broadcast %cst_148 : f32 to vector<8x1xf32>
    %234 = arith.divf %232, %233 : vector<8x1xf32>
    %235 = vector.broadcast %227 : vector<8x1xf32> to vector<8x32xf32>
    %236 = arith.subf %219, %235 : vector<8x32xf32>
    %cst_149 = arith.constant 9.99999974E-6 : f32
    %237 = vector.broadcast %cst_149 : f32 to vector<8x1xf32>
    %238 = arith.addf %234, %237 : vector<8x1xf32>
    %239 = math.rsqrt %238 : vector<8x1xf32>
    %240 = vector.broadcast %239 : vector<8x1xf32> to vector<8x32xf32>
    %241 = arith.mulf %236, %240 : vector<8x32xf32>
    %242 = vector.broadcast %221 : vector<1x32xf32> to vector<8x32xf32>
    %243 = arith.mulf %241, %242 : vector<8x32xf32>
    %244 = vector.broadcast %223 : vector<1x32xf32> to vector<8x32xf32>
    %245 = arith.addf %243, %244 : vector<8x32xf32>
    %246 = arith.truncf %245 : vector<8x32xf32> to vector<8x32xbf16>
    %c0_150 = arith.constant 0 : index
    %c0_151 = arith.constant 0 : index
    %c0_152 = arith.constant 0 : index
    %247 = vector.load %arg11[%c0_150, %c0_151, %c0_152] : memref<1x32x64xbf16, #tpu.memory_space<vmem>>, vector<1x32x64xbf16>
    %248 = vector.shape_cast %247 : vector<1x32x64xbf16> to vector<32x64xbf16>
    %cst_153 = arith.constant dense<0.000000e+00> : vector<8x64xf32>
    %249 = tpu.matmul %246, %248, %cst_153 {dimension_numbers = #tpu.dot_dimension_numbers<[1], [0], [0], [1], [0, 0, 1, 1], [], []>} : vector<8x32xbf16>, vector<32x64xbf16>, vector<8x64xf32> -> vector<8x64xf32>
    %c0_154 = arith.constant 0 : index
    %c0_155 = arith.constant 0 : index
    %c0_156 = arith.constant 0 : index
    %250 = vector.load %arg12[%c0_154, %c0_155, %c0_156] : memref<1x1x64xf32, #tpu.memory_space<vmem>>, vector<1x1x64xf32>
    %251 = vector.shape_cast %250 : vector<1x1x64xf32> to vector<1x64xf32>
    %252 = vector.broadcast %251 : vector<1x64xf32> to vector<8x64xf32>
    %253 = arith.addf %249, %252 : vector<8x64xf32>
    %cst_157 = arith.constant 0.000000e+00 : f32
    %254 = vector.broadcast %cst_157 : f32 to vector<8x64xf32>
    %255 = arith.maximumf %253, %254 : vector<8x64xf32>
    %256 = arith.truncf %255 : vector<8x64xf32> to vector<8x64xbf16>
    %c0_158 = arith.constant 0 : index
    %c0_159 = arith.constant 0 : index
    %c0_160 = arith.constant 0 : index
    %257 = vector.load %arg13[%c0_158, %c0_159, %c0_160] : memref<1x64x32xbf16, #tpu.memory_space<vmem>>, vector<1x64x32xbf16>
    %258 = vector.shape_cast %257 : vector<1x64x32xbf16> to vector<64x32xbf16>
    %cst_161 = arith.constant dense<0.000000e+00> : vector<8x32xf32>
    %259 = tpu.matmul %256, %258, %cst_161 {dimension_numbers = #tpu.dot_dimension_numbers<[1], [0], [0], [1], [0, 0, 1, 1], [], []>} : vector<8x64xbf16>, vector<64x32xbf16>, vector<8x32xf32> -> vector<8x32xf32>
    %c0_162 = arith.constant 0 : index
    %c0_163 = arith.constant 0 : index
    %c0_164 = arith.constant 0 : index
    %260 = vector.load %arg14[%c0_162, %c0_163, %c0_164] : memref<1x1x32xf32, #tpu.memory_space<vmem>>, vector<1x1x32xf32>
    %261 = vector.shape_cast %260 : vector<1x1x32xf32> to vector<1x32xf32>
    %262 = vector.broadcast %261 : vector<1x32xf32> to vector<8x32xf32>
    %263 = arith.addf %259, %262 : vector<8x32xf32>
    %264 = arith.addf %245, %263 : vector<8x32xf32>
    %c0_165 = arith.constant 0 : index
    %c2_166 = arith.constant 2 : index
    %c0_167 = arith.constant 0 : index
    %c0_168 = arith.constant 0 : index
    %c0_169 = arith.constant 0 : index
    %265 = vector.load %arg10[%c0_165, %c2_166, %c0_167, %c0_168, %c0_169] : memref<1x3x2x1x32xf32, #tpu.memory_space<vmem>>, vector<1x1x1x1x32xf32>
    %266 = vector.shape_cast %265 : vector<1x1x1x1x32xf32> to vector<1x32xf32>
    %c0_170 = arith.constant 0 : index
    %c2_171 = arith.constant 2 : index
    %c1_172 = arith.constant 1 : index
    %c0_173 = arith.constant 0 : index
    %c0_174 = arith.constant 0 : index
    %267 = vector.load %arg10[%c0_170, %c2_171, %c1_172, %c0_173, %c0_174] : memref<1x3x2x1x32xf32, #tpu.memory_space<vmem>>, vector<1x1x1x1x32xf32>
    %268 = vector.shape_cast %267 : vector<1x1x1x1x32xf32> to vector<1x32xf32>
    %cst_175 = arith.constant dense<0.000000e+00> : vector<8xf32>
    %269 = vector.multi_reduction <add>, %264, %cst_175 [1] : vector<8x32xf32> to vector<8xf32>
    %270 = vector.shape_cast %269 : vector<8xf32> to vector<8x1xf32>
    %cst_176 = arith.constant 3.200000e+01 : f32
    %271 = vector.broadcast %cst_176 : f32 to vector<8x1xf32>
    %272 = arith.divf %270, %271 : vector<8x1xf32>
    %273 = vector.broadcast %272 : vector<8x1xf32> to vector<8x32xf32>
    %274 = arith.subf %264, %273 : vector<8x32xf32>
    %275 = arith.mulf %274, %274 : vector<8x32xf32>
    %cst_177 = arith.constant dense<0.000000e+00> : vector<8xf32>
    %276 = vector.multi_reduction <add>, %275, %cst_177 [1] : vector<8x32xf32> to vector<8xf32>
    %277 = vector.shape_cast %276 : vector<8xf32> to vector<8x1xf32>
    %cst_178 = arith.constant 3.200000e+01 : f32
    %278 = vector.broadcast %cst_178 : f32 to vector<8x1xf32>
    %279 = arith.divf %277, %278 : vector<8x1xf32>
    %280 = vector.broadcast %272 : vector<8x1xf32> to vector<8x32xf32>
    %281 = arith.subf %264, %280 : vector<8x32xf32>
    %cst_179 = arith.constant 9.99999974E-6 : f32
    %282 = vector.broadcast %cst_179 : f32 to vector<8x1xf32>
    %283 = arith.addf %279, %282 : vector<8x1xf32>
    %284 = math.rsqrt %283 : vector<8x1xf32>
    %285 = vector.broadcast %284 : vector<8x1xf32> to vector<8x32xf32>
    %286 = arith.mulf %281, %285 : vector<8x32xf32>
    %287 = vector.broadcast %266 : vector<1x32xf32> to vector<8x32xf32>
    %288 = arith.mulf %286, %287 : vector<8x32xf32>
    %289 = vector.broadcast %268 : vector<1x32xf32> to vector<8x32xf32>
    %290 = arith.addf %288, %289 : vector<8x32xf32>
    %c0_180 = arith.constant 0 : index
    %c0_181 = arith.constant 0 : index
    %c0_182 = arith.constant 0 : index
    %291 = vector.load %arg16[%c0_180, %c0_181, %c0_182] : memref<1x8x32xf32, #tpu.memory_space<vmem>>, vector<1x8x32xf32>
    %292 = vector.shape_cast %291 : vector<1x8x32xf32> to vector<8x32xf32>
    %293 = vector.shape_cast %290 : vector<8x32xf32> to vector<1x8x32xf32>
    tpu.vector_store %arg16[%c0_180, %c0_181, %c0_182], %293 {strides = array<i32>} : memref<1x8x32xf32, #tpu.memory_space<vmem>>, vector<1x8x32xf32>,
    %c1_i32 = arith.constant 1 : i32
    %294 = arith.cmpi eq, %arg1, %c1_i32 : i32
    %295 = arith.extui %294 : i1 to i32
    %c0_i32_183 = arith.constant 0 : i32
    %296 = arith.cmpi ne, %295, %c0_i32_183 : i32
    scf.if %296 {
      %c0_184 = arith.constant 0 : index
      %c0_185 = arith.constant 0 : index
      %c0_186 = arith.constant 0 : index
      %297 = vector.load %arg15[%c0_184, %c0_185, %c0_186] : memref<2x1x32xf32, #tpu.memory_space<vmem>>, vector<1x1x32xf32>
      %298 = vector.shape_cast %297 : vector<1x1x32xf32> to vector<1x32xf32>
      %c1_187 = arith.constant 1 : index
      %c0_188 = arith.constant 0 : index
      %c0_189 = arith.constant 0 : index
      %299 = vector.load %arg15[%c1_187, %c0_188, %c0_189] : memref<2x1x32xf32, #tpu.memory_space<vmem>>, vector<1x1x32xf32>
      %300 = vector.shape_cast %299 : vector<1x1x32xf32> to vector<1x32xf32>
      %cst_190 = arith.constant dense<0.000000e+00> : vector<8xf32>
      %301 = vector.multi_reduction <add>, %290, %cst_190 [1] : vector<8x32xf32> to vector<8xf32>
      %302 = vector.shape_cast %301 : vector<8xf32> to vector<8x1xf32>
      %cst_191 = arith.constant 3.200000e+01 : f32
      %303 = vector.broadcast %cst_191 : f32 to vector<8x1xf32>
      %304 = arith.divf %302, %303 : vector<8x1xf32>
      %305 = vector.broadcast %304 : vector<8x1xf32> to vector<8x32xf32>
      %306 = arith.subf %290, %305 : vector<8x32xf32>
      %307 = arith.mulf %306, %306 : vector<8x32xf32>
      %cst_192 = arith.constant dense<0.000000e+00> : vector<8xf32>
      %308 = vector.multi_reduction <add>, %307, %cst_192 [1] : vector<8x32xf32> to vector<8xf32>
      %309 = vector.shape_cast %308 : vector<8xf32> to vector<8x1xf32>
      %cst_193 = arith.constant 3.200000e+01 : f32
      %310 = vector.broadcast %cst_193 : f32 to vector<8x1xf32>
      %311 = arith.divf %309, %310 : vector<8x1xf32>
      %312 = vector.broadcast %304 : vector<8x1xf32> to vector<8x32xf32>
      %313 = arith.subf %290, %312 : vector<8x32xf32>
      %cst_194 = arith.constant 9.99999974E-6 : f32
      %314 = vector.broadcast %cst_194 : f32 to vector<8x1xf32>
      %315 = arith.addf %311, %314 : vector<8x1xf32>
      %316 = math.rsqrt %315 : vector<8x1xf32>
      %317 = vector.broadcast %316 : vector<8x1xf32> to vector<8x32xf32>
      %318 = arith.mulf %313, %317 : vector<8x32xf32>
      %319 = vector.broadcast %298 : vector<1x32xf32> to vector<8x32xf32>
      %320 = arith.mulf %318, %319 : vector<8x32xf32>
      %321 = vector.broadcast %300 : vector<1x32xf32> to vector<8x32xf32>
      %322 = arith.addf %320, %321 : vector<8x32xf32>
      %c0_195 = arith.constant 0 : index
      %c0_196 = arith.constant 0 : index
      %c0_197 = arith.constant 0 : index
      %323 = vector.load %arg16[%c0_195, %c0_196, %c0_197] : memref<1x8x32xf32, #tpu.memory_space<vmem>>, vector<1x8x32xf32>
      %324 = vector.shape_cast %323 : vector<1x8x32xf32> to vector<8x32xf32>
      %325 = vector.shape_cast %322 : vector<8x32xf32> to vector<1x8x32xf32>
      tpu.vector_store %arg16[%c0_195, %c0_196, %c0_197], %325 {strides = array<i32>} : memref<1x8x32xf32, #tpu.memory_space<vmem>>, vector<1x8x32xf32>,
    } else {
    }
    return
  }
  func.func @transform_0(%arg0: i32, %arg1: i32) -> (i32, i32, i32) {
    %c0_i32 = arith.constant 0 : i32
    %c0_i32_0 = arith.constant 0 : i32
    %c0_i32_1 = arith.constant 0 : i32
    return %arg0, %c0_i32, %c0_i32_0 : i32, i32, i32
  }
  func.func @transform_1(%arg0: i32, %arg1: i32) -> (i32, i32, i32) {
    %c0_i32 = arith.constant 0 : i32
    %c0_i32_0 = arith.constant 0 : i32
    %c0_i32_1 = arith.constant 0 : i32
    return %arg0, %c0_i32, %c0_i32_0 : i32, i32, i32
  }
  func.func @transform_2(%arg0: i32, %arg1: i32) -> (i32, i32, i32) {
    %c0_i32 = arith.constant 0 : i32
    %c0_i32_0 = arith.constant 0 : i32
    %c0_i32_1 = arith.constant 0 : i32
    return %arg0, %c0_i32, %c0_i32_0 : i32, i32, i32
  }
  func.func @transform_3(%arg0: i32, %arg1: i32) -> (i32, i32, i32) {
    %c0_i32 = arith.constant 0 : i32
    %c0_i32_0 = arith.constant 0 : i32
    %c0_i32_1 = arith.constant 0 : i32
    return %arg0, %c0_i32, %c0_i32_0 : i32, i32, i32
  }
  func.func @transform_4(%arg0: i32, %arg1: i32) -> (i32, i32, i32, i32, i32) {
    %c0_i32 = arith.constant 0 : i32
    %c0_i32_0 = arith.constant 0 : i32
    %c0_i32_1 = arith.constant 0 : i32
    %c0_i32_2 = arith.constant 0 : i32
    %c0_i32_3 = arith.constant 0 : i32
    return %arg1, %c0_i32, %c0_i32_0, %c0_i32_1, %c0_i32_2 : i32, i32, i32, i32, i32
  }
  func.func @transform_5(%arg0: i32, %arg1: i32) -> (i32, i32, i32, i32, i32) {
    %c0_i32 = arith.constant 0 : i32
    %c0_i32_0 = arith.constant 0 : i32
    %c0_i32_1 = arith.constant 0 : i32
    %c0_i32_2 = arith.constant 0 : i32
    %c0_i32_3 = arith.constant 0 : i32
    return %arg1, %c0_i32, %c0_i32_0, %c0_i32_1, %c0_i32_2 : i32, i32, i32, i32, i32
  }
  func.func @transform_6(%arg0: i32, %arg1: i32) -> (i32, i32, i32, i32) {
    %c0_i32 = arith.constant 0 : i32
    %c0_i32_0 = arith.constant 0 : i32
    %c0_i32_1 = arith.constant 0 : i32
    %c0_i32_2 = arith.constant 0 : i32
    return %arg1, %c0_i32, %c0_i32_0, %c0_i32_1 : i32, i32, i32, i32
  }
  func.func @transform_7(%arg0: i32, %arg1: i32) -> (i32, i32, i32, i32) {
    %c0_i32 = arith.constant 0 : i32
    %c0_i32_0 = arith.constant 0 : i32
    %c0_i32_1 = arith.constant 0 : i32
    %c0_i32_2 = arith.constant 0 : i32
    return %arg1, %c0_i32, %c0_i32_0, %c0_i32_1 : i32, i32, i32, i32
  }
  func.func @transform_8(%arg0: i32, %arg1: i32) -> (i32, i32, i32, i32, i32) {
    %c0_i32 = arith.constant 0 : i32
    %c0_i32_0 = arith.constant 0 : i32
    %c0_i32_1 = arith.constant 0 : i32
    %c0_i32_2 = arith.constant 0 : i32
    %c0_i32_3 = arith.constant 0 : i32
    return %arg1, %c0_i32, %c0_i32_0, %c0_i32_1, %c0_i32_2 : i32, i32, i32, i32, i32
  }
  func.func @transform_9(%arg0: i32, %arg1: i32) -> (i32, i32, i32) {
    %c0_i32 = arith.constant 0 : i32
    %c0_i32_0 = arith.constant 0 : i32
    %c0_i32_1 = arith.constant 0 : i32
    return %arg1, %c0_i32, %c0_i32_0 : i32, i32, i32
  }
  func.func @transform_10(%arg0: i32, %arg1: i32) -> (i32, i32, i32) {
    %c0_i32 = arith.constant 0 : i32
    %c0_i32_0 = arith.constant 0 : i32
    %c0_i32_1 = arith.constant 0 : i32
    return %arg1, %c0_i32, %c0_i32_0 : i32, i32, i32
  }
  func.func @transform_11(%arg0: i32, %arg1: i32) -> (i32, i32, i32) {
    %c0_i32 = arith.constant 0 : i32
    %c0_i32_0 = arith.constant 0 : i32
    %c0_i32_1 = arith.constant 0 : i32
    return %arg1, %c0_i32, %c0_i32_0 : i32, i32, i32
  }
  func.func @transform_12(%arg0: i32, %arg1: i32) -> (i32, i32, i32) {
    %c0_i32 = arith.constant 0 : i32
    %c0_i32_0 = arith.constant 0 : i32
    %c0_i32_1 = arith.constant 0 : i32
    return %arg1, %c0_i32, %c0_i32_0 : i32, i32, i32
  }
  func.func @transform_13(%arg0: i32, %arg1: i32) -> (i32, i32, i32) {
    %c0_i32 = arith.constant 0 : i32
    %c0_i32_0 = arith.constant 0 : i32
    %c0_i32_1 = arith.constant 0 : i32
    %c0_i32_2 = arith.constant 0 : i32
    return %c0_i32, %c0_i32_0, %c0_i32_1 : i32, i32, i32
  }
  func.func @transform_14(%arg0: i32, %arg1: i32) -> (i32, i32, i32) {
    %c0_i32 = arith.constant 0 : i32
    %c0_i32_0 = arith.constant 0 : i32
    %c0_i32_1 = arith.constant 0 : i32
    return %arg0, %c0_i32, %c0_i32_0 : i32, i32, i32
  }
}

</mosaic_0001>

<llo_original>
// kernel: tpu_custom_call.1
$region0: #{tpu_custom_call.1}
  #allocation0 [shape = 'u32[]', space=smem, size = 0x4, offset = 0x4, fixed_abs, tag = 'smem constant byte address 0x4 - core index']
  #allocation1 [shape = 'u32[144,128]{1,0:T(1,128)}', space=vmem, size = 0x12000, scoped, tag = 'internal scratch']
  #allocation2 [shape = 'f32[8,32]{1,0:T(8,128)}', space=vmem, size = 0x1000, scoped, tag = 'scratch operand']
  %s0 = inlined_call_operand.hbm [shape: f32[2,8,32], index: 0, kind: input, shape index: {}]
  %s1 = inlined_call_operand.vmem [shape: f32[2,16,32], index: 1, kind: input, shape index: {}]
  %s2 = inlined_call_operand.hbm [shape: f32[2,8,32], index: 2, kind: input, shape index: {}]
  %s3 = inlined_call_operand.hbm [shape: f32[2,16,32], index: 3, kind: input, shape index: {}]
  %s4 = inlined_call_operand.hbm [shape: bf16[2,2,3,32,32], index: 4, kind: input, shape index: {}]
  %s5 = inlined_call_operand.hbm [shape: f32[2,2,3,1,32], index: 5, kind: input, shape index: {}]
  %s6 = inlined_call_operand.vmem [shape: bf16[2,2,32,32], index: 6, kind: input, shape index: {}]
  %s7 = inlined_call_operand.vmem [shape: f32[2,2,1,32], index: 7, kind: input, shape index: {}]
  %s8 = inlined_call_operand.hbm [shape: f32[2,3,2,1,32], index: 8, kind: input, shape index: {}]
  %s9 = inlined_call_operand.hbm [shape: bf16[2,32,64], index: 9, kind: input, shape index: {}]
  %s10 = inlined_call_operand.vmem [shape: f32[2,1,64], index: 10, kind: input, shape index: {}]
  %s11 = inlined_call_operand.vmem [shape: bf16[2,64,32], index: 11, kind: input, shape index: {}]
  %s12 = inlined_call_operand.vmem [shape: f32[2,1,32], index: 12, kind: input, shape index: {}]
  %s13 = inlined_call_operand.vmem [shape: f32[2,1,32], index: 13, kind: input, shape index: {}]
  %s14 = inlined_call_operand.hbm [shape: f32[2,8,32], index: 14, kind: output, shape index: {}]
  %s15 = sld [smem:[#allocation0]]
  $region125: #{tpu_custom_call.1} parent=0
    _
  %s17 = ssub.s32 1, %s15
  %s18 = scalar_select 0, %s17, %s15
  $region1: #{tpu_custom_call.1} parent=0
    #allocation3 [shape = 'u8[8192]{0}', space=vmem, size = 0x2000, scoped, tag = 'input window, operand 0']
    #allocation4 [shape = 's32[2]{0}', space=sflag, size = 0x8, scoped, tag = 'scoped memory for tpu_custom_call.1']
    #allocation5 [shape = 's32[2]{0}', space=sflag, size = 0x8, scoped, tag = 'scoped memory for tpu_custom_call.1']
    #allocation6 [shape = 'u8[8192]{0}', space=vmem, size = 0x2000, scoped, tag = 'input window, operand 2']
    #allocation7 [shape = 's32[2]{0}', space=sflag, size = 0x8, scoped, tag = 'scoped memory for tpu_custom_call.1']
    #allocation8 [shape = 'u8[16384]{0}', space=vmem, size = 0x4000, scoped, tag = 'input window, operand 3']
    #allocation9 [shape = 'u8[98304]{0}', space=vmem, size = 0x18000, scoped, tag = 'input window, operand 4']
    #allocation10 [shape = 's32[2]{0}', space=sflag, size = 0x8, scoped, tag = 'scoped memory for tpu_custom_call.1']
    #allocation11 [shape = 'u8[6144]{0}', space=vmem, size = 0x1800, scoped, tag = 'input window, operand 5']
    #allocation12 [shape = 'u8[6144]{0}', space=vmem, size = 0x1800, scoped, tag = 'input window, operand 8']
    #allocation13 [shape = 's32[2]{0}', space=sflag, size = 0x8, scoped, tag = 'scoped memory for tpu_custom_call.1']
    #allocation14 [shape = 'u8[16384]{0}', space=vmem, size = 0x4000, scoped, tag = 'input window, operand 9']
    #allocation15 [shape = 'u8[8192]{0}', space=vmem, size = 0x2000, scoped, tag = 'output window, operand 0']
    %19 = vsyncpa [#allocation4], 0
    %s20 = scalar_lea.sflag [#allocation4], 1
    %21 = vsyncpa %s20, 0
    %22 = vsyncpa [#allocation7], 0
    %s23 = scalar_lea.sflag [#allocation7], 1
    %24 = vsyncpa %s23, 0
    %25 = vsyncpa [#allocation10], 0
    %s26 = scalar_lea.sflag [#allocation10], 1
    %27 = vsyncpa %s26, 0
    %28 = vsyncpa [#allocation13], 0
    %s29 = scalar_lea.sflag [#allocation13], 1
    %30 = vsyncpa %s29, 0
    %31 = vsyncpa [#allocation5], 0
    %s32 = scalar_lea.sflag [#allocation5], 1
    %33 = vsyncpa %s32, 0
    loop: start=0, step=1, limit=6
    $region2: #{tpu_custom_call.1} parent=1 // loop_pre_header
      _
    $region3: #{tpu_custom_call.1} parent=1 // loop_header
      %s35 = sphi 0, %s39
      %p36 = scmp.ge.s32.totalorder %s35, 6
      %s42 = sphi 0, %s54
      %s43 = sphi 0, %s50
      %s44 = sphi 0, %s42
      %s45 = sphi 0, %s43
      %s46 = sphi 0, %s44
      %s47 = sphi 0, %s45
      %s57 = sphi 0, %s59
      %s60 = sphi 0, %s57
      %s61 = sphi 0, %s60
      %s77 = sphi 0, %s61
      %s83 = sphi 0, %s85
      %s86 = sphi 0, %s83
      %s87 = sphi 0, %s86
      %s103 = sphi 0, %s87
      %s109 = sphi 0, %s111
      %s112 = sphi 0, %s109
      %s113 = sphi 0, %s112
      %s129 = sphi 0, %s113
      %s135 = sphi 0, %s137
      %s138 = sphi 0, %s135
      %s139 = sphi 0, %s138
      %s155 = sphi 0, %s139
      %s161 = sphi 0, %s163
      %s164 = sphi 0, %s161
      %s165 = sphi 0, %s164
      %s181 = sphi 0, %s165
      %s187 = sphi 0, %s189
      %s190 = sphi 0, %s187
      %s191 = sphi 0, %s190
      %s207 = sphi 0, %s191
      %s213 = sphi 0, %s215
      %s216 = sphi 0, %s213
      %s217 = sphi 0, %s216
      %s233 = sphi 0, %s217
      %s239 = sphi 0, %s241
      %s242 = sphi 0, %s239
      %s243 = sphi 0, %s242
      %s259 = sphi 0, %s243
      %s265 = sphi 0, %s267
      %s268 = sphi 0, %s265
      %s269 = sphi 0, %s268
      %s285 = sphi 0, %s269
      %s291 = sphi 0, %s293
      %s294 = sphi 0, %s291
      %s295 = sphi 0, %s294
      %s311 = sphi 0, %s295
      %s317 = sphi 0, %s319
      %s320 = sphi 0, %s317
      %s321 = sphi 0, %s320
      %s337 = sphi 0, %s321
      %s343 = sphi 0, %s345
      %s346 = sphi 0, %s343
      %s347 = sphi 0, %s346
      %s363 = sphi 0, %s347
      %s369 = sphi 0, %s371
      %s372 = sphi 0, %s369
      %s373 = sphi 0, %s372
      %s389 = sphi 0, %s373
      %s393 = sphi 0, %s393
      %s395 = sphi 0, %s393
      %s396 = sphi 0, %s395
      %s410 = sphi 0, %s396
      %s416 = sphi 0, %s418
      %s419 = sphi 0, %s416
      %s420 = sphi 0, %s419
      %s436 = sphi 0, %s420
    $region4: #{tpu_custom_call.1} parent=1 // loop_header_branch
      %38 = sbr.rel (%p36) target = $region8
    $region5: #{tpu_custom_call.1} parent=1 // loop_body
      %s40 = ssub.s32 %s35, 1
      %s41 = ssub.s32 %s35, 2
      %s48 = sadd.s32 1, %s43
      %p49 = scmp.ge.s32.totalorder %s48, 2
      %s50 = scalar_select %p49, 0, %s48
      %s51 = sadd.s32 1, %s42
      %s52 = scalar_select %p49, %s51, %s42
      %p53 = scmp.ge.s32.totalorder %s52, 2
      %s54 = scalar_select %p53, 0, %s52
      %s55 = ssub.s32 %s42, %s54
      %p56 = scmp.eq.s32.totalorder %s55, 0
      %s58 = sadd.s32 %s57, 1
      %s59 = scalar_select %p56, %s57, %s58
      %p62 = pneg %p56
      %p63 = scmp.eq.s32.totalorder %s35, 3
      %p64 = por %p62, %p63
      %p65 = scmp.ne.s32.totalorder %s57, %s60
      %p66 = scmp.eq.s32.totalorder %s35, 0
      %p67 = por %p65, %p66
      %p68 = scmp.ne.s32.totalorder %s57, %s60
      %p69 = scmp.eq.s32.totalorder %s40, 3
      %p70 = por %p68, %p69
      %p71 = scmp.ne.s32.totalorder %s60, %s61
      %p72 = scmp.eq.s32.totalorder %s40, 0
      %p73 = por %p71, %p72
      %p74 = scmp.ne.s32.totalorder %s60, %s61
      %p75 = scmp.eq.s32.totalorder %s41, 3
      %p76 = por %p74, %p75
      %p78 = scmp.ne.s32.totalorder %s61, %s77
      %p79 = scmp.eq.s32.totalorder %s41, 0
      %p80 = por %p78, %p79
      %s81 = ssub.s32 %s42, %s54
      %p82 = scmp.eq.s32.totalorder %s81, 0
      %s84 = sadd.s32 %s83, 1
      %s85 = scalar_select %p82, %s83, %s84
      %p88 = pneg %p82
      %p89 = scmp.eq.s32.totalorder %s35, 3
      %p90 = por %p88, %p89
      %p91 = scmp.ne.s32.totalorder %s83, %s86
      %p92 = scmp.eq.s32.totalorder %s35, 0
      %p93 = por %p91, %p92
      %p94 = scmp.ne.s32.totalorder %s83, %s86
      %p95 = scmp.eq.s32.totalorder %s40, 3
      %p96 = por %p94, %p95
      %p97 = scmp.ne.s32.totalorder %s86, %s87
      %p98 = scmp.eq.s32.totalorder %s40, 0
      %p99 = por %p97, %p98
      %p100 = scmp.ne.s32.totalorder %s86, %s87
      %p101 = scmp.eq.s32.totalorder %s41, 3
      %p102 = por %p100, %p101
      %p104 = scmp.ne.s32.totalorder %s87, %s103
      %p105 = scmp.eq.s32.totalorder %s41, 0
      %p106 = por %p104, %p105
      %s107 = ssub.s32 %s42, %s54
      %p108 = scmp.eq.s32.totalorder %s107, 0
      %s110 = sadd.s32 %s109, 1
      %s111 = scalar_select %p108, %s109, %s110
      %p114 = pneg %p108
      %p115 = scmp.eq.s32.totalorder %s35, 3
      %p116 = por %p114, %p115
      %p117 = scmp.ne.s32.totalorder %s109, %s112
      %p118 = scmp.eq.s32.totalorder %s35, 0
      %p119 = por %p117, %p118
      %p120 = scmp.ne.s32.totalorder %s109, %s112
      %p121 = scmp.eq.s32.totalorder %s40, 3
      %p122 = por %p120, %p121
      %p123 = scmp.ne.s32.totalorder %s112, %s113
      %p124 = scmp.eq.s32.totalorder %s40, 0
      %p125 = por %p123, %p124
      %p126 = scmp.ne.s32.totalorder %s112, %s113
      %p127 = scmp.eq.s32.totalorder %s41, 3
      %p128 = por %p126, %p127
      %p130 = scmp.ne.s32.totalorder %s113, %s129
      %p131 = scmp.eq.s32.totalorder %s41, 0
      %p132 = por %p130, %p131
      %s133 = ssub.s32 %s42, %s54
      %p134 = scmp.eq.s32.totalorder %s133, 0
      %s136 = sadd.s32 %s135, 1
      %s137 = scalar_select %p134, %s135, %s136
      %p140 = pneg %p134
      %p141 = scmp.eq.s32.totalorder %s35, 3
      %p142 = por %p140, %p141
      %p143 = scmp.ne.s32.totalorder %s135, %s138
      %p144 = scmp.eq.s32.totalorder %s35, 0
      %p145 = por %p143, %p144
      %p146 = scmp.ne.s32.totalorder %s135, %s138
      %p147 = scmp.eq.s32.totalorder %s40, 3
      %p148 = por %p146, %p147
      %p149 = scmp.ne.s32.totalorder %s138, %s139
      %p150 = scmp.eq.s32.totalorder %s40, 0
      %p151 = por %p149, %p150
      %p152 = scmp.ne.s32.totalorder %s138, %s139
      %p153 = scmp.eq.s32.totalorder %s41, 3
      %p154 = por %p152, %p153
      %p156 = scmp.ne.s32.totalorder %s139, %s155
      %p157 = scmp.eq.s32.totalorder %s41, 0
      %p158 = por %p156, %p157
      %s159 = ssub.s32 %s43, %s50
      %p160 = scmp.eq.s32.totalorder %s159, 0
      %s162 = sadd.s32 %s161, 1
      %s163 = scalar_select %p160, %s161, %s162
      %p166 = pneg %p160
      %p167 = scmp.eq.s32.totalorder %s35, 3
      %p168 = por %p166, %p167
      %p169 = scmp.ne.s32.totalorder %s161, %s164
      %p170 = scmp.eq.s32.totalorder %s35, 0
      %p171 = por %p169, %p170
      %p172 = scmp.ne.s32.totalorder %s161, %s164
      %p173 = scmp.eq.s32.totalorder %s40, 3
      %p174 = por %p172, %p173
      %p175 = scmp.ne.s32.totalorder %s164, %s165
      %p176 = scmp.eq.s32.totalorder %s40, 0
      %p177 = por %p175, %p176
      %p178 = scmp.ne.s32.totalorder %s164, %s165
      %p179 = scmp.eq.s32.totalorder %s41, 3
      %p180 = por %p178, %p179
      %p182 = scmp.ne.s32.totalorder %s165, %s181
      %p183 = scmp.eq.s32.totalorder %s41, 0
      %p184 = por %p182, %p183
      %s185 = ssub.s32 %s43, %s50
      %p186 = scmp.eq.s32.totalorder %s185, 0
      %s188 = sadd.s32 %s187, 1
      %s189 = scalar_select %p186, %s187, %s188
      %p192 = pneg %p186
      %p193 = scmp.eq.s32.totalorder %s35, 3
      %p194 = por %p192, %p193
      %p195 = scmp.ne.s32.totalorder %s187, %s190
      %p196 = scmp.eq.s32.totalorder %s35, 0
      %p197 = por %p195, %p196
      %p198 = scmp.ne.s32.totalorder %s187, %s190
      %p199 = scmp.eq.s32.totalorder %s40, 3
      %p200 = por %p198, %p199
      %p201 = scmp.ne.s32.totalorder %s190, %s191
      %p202 = scmp.eq.s32.totalorder %s40, 0
      %p203 = por %p201, %p202
      %p204 = scmp.ne.s32.totalorder %s190, %s191
      %p205 = scmp.eq.s32.totalorder %s41, 3
      %p206 = por %p204, %p205
      %p208 = scmp.ne.s32.totalorder %s191, %s207
      %p209 = scmp.eq.s32.totalorder %s41, 0
      %p210 = por %p208, %p209
      %s211 = ssub.s32 %s43, %s50
      %p212 = scmp.eq.s32.totalorder %s211, 0
      %s214 = sadd.s32 %s213, 1
      %s215 = scalar_select %p212, %s213, %s214
      %p218 = pneg %p212
      %p219 = scmp.eq.s32.totalorder %s35, 3
      %p220 = por %p218, %p219
      %p221 = scmp.ne.s32.totalorder %s213, %s216
      %p222 = scmp.eq.s32.totalorder %s35, 0
      %p223 = por %p221, %p222
      %p224 = scmp.ne.s32.totalorder %s213, %s216
      %p225 = scmp.eq.s32.totalorder %s40, 3
      %p226 = por %p224, %p225
      %p227 = scmp.ne.s32.totalorder %s216, %s217
      %p228 = scmp.eq.s32.totalorder %s40, 0
      %p229 = por %p227, %p228
      %p230 = scmp.ne.s32.totalorder %s216, %s217
      %p231 = scmp.eq.s32.totalorder %s41, 3
      %p232 = por %p230, %p231
      %p234 = scmp.ne.s32.totalorder %s217, %s233
      %p235 = scmp.eq.s32.totalorder %s41, 0
      %p236 = por %p234, %p235
      %s237 = ssub.s32 %s43, %s50
      %p238 = scmp.eq.s32.totalorder %s237, 0
      %s240 = sadd.s32 %s239, 1
      %s241 = scalar_select %p238, %s239, %s240
      %p244 = pneg %p238
      %p245 = scmp.eq.s32.totalorder %s35, 3
      %p246 = por %p244, %p245
      %p247 = scmp.ne.s32.totalorder %s239, %s242
      %p248 = scmp.eq.s32.totalorder %s35, 0
      %p249 = por %p247, %p248
      %p250 = scmp.ne.s32.totalorder %s239, %s242
      %p251 = scmp.eq.s32.totalorder %s40, 3
      %p252 = por %p250, %p251
      %p253 = scmp.ne.s32.totalorder %s242, %s243
      %p254 = scmp.eq.s32.totalorder %s40, 0
      %p255 = por %p253, %p254
      %p256 = scmp.ne.s32.totalorder %s242, %s243
      %p257 = scmp.eq.s32.totalorder %s41, 3
      %p258 = por %p256, %p257
      %p260 = scmp.ne.s32.totalorder %s243, %s259
      %p261 = scmp.eq.s32.totalorder %s41, 0
      %p262 = por %p260, %p261
      %s263 = ssub.s32 %s43, %s50
      %p264 = scmp.eq.s32.totalorder %s263, 0
      %s266 = sadd.s32 %s265, 1
      %s267 = scalar_select %p264, %s265, %s266
      %p270 = pneg %p264
      %p271 = scmp.eq.s32.totalorder %s35, 3
      %p272 = por %p270, %p271
      %p273 = scmp.ne.s32.totalorder %s265, %s268
      %p274 = scmp.eq.s32.totalorder %s35, 0
      %p275 = por %p273, %p274
      %p276 = scmp.ne.s32.totalorder %s265, %s268
      %p277 = scmp.eq.s32.totalorder %s40, 3
      %p278 = por %p276, %p277
      %p279 = scmp.ne.s32.totalorder %s268, %s269
      %p280 = scmp.eq.s32.totalorder %s40, 0
      %p281 = por %p279, %p280
      %p282 = scmp.ne.s32.totalorder %s268, %s269
      %p283 = scmp.eq.s32.totalorder %s41, 3
      %p284 = por %p282, %p283
      %p286 = scmp.ne.s32.totalorder %s269, %s285
      %p287 = scmp.eq.s32.totalorder %s41, 0
      %p288 = por %p286, %p287
      %s289 = ssub.s32 %s43, %s50
      %p290 = scmp.eq.s32.totalorder %s289, 0
      %s292 = sadd.s32 %s291, 1
      %s293 = scalar_select %p290, %s291, %s292
      %p296 = pneg %p290
      %p297 = scmp.eq.s32.totalorder %s35, 3
      %p298 = por %p296, %p297
      %p299 = scmp.ne.s32.totalorder %s291, %s294
      %p300 = scmp.eq.s32.totalorder %s35, 0
      %p301 = por %p299, %p300
      %p302 = scmp.ne.s32.totalorder %s291, %s294
      %p303 = scmp.eq.s32.totalorder %s40, 3
      %p304 = por %p302, %p303
      %p305 = scmp.ne.s32.totalorder %s294, %s295
      %p306 = scmp.eq.s32.totalorder %s40, 0
      %p307 = por %p305, %p306
      %p308 = scmp.ne.s32.totalorder %s294, %s295
      %p309 = scmp.eq.s32.totalorder %s41, 3
      %p310 = por %p308, %p309
      %p312 = scmp.ne.s32.totalorder %s295, %s311
      %p313 = scmp.eq.s32.totalorder %s41, 0
      %p314 = por %p312, %p313
      %s315 = ssub.s32 %s43, %s50
      %p316 = scmp.eq.s32.totalorder %s315, 0
      %s318 = sadd.s32 %s317, 1
      %s319 = scalar_select %p316, %s317, %s318
      %p322 = pneg %p316
      %p323 = scmp.eq.s32.totalorder %s35, 3
      %p324 = por %p322, %p323
      %p325 = scmp.ne.s32.totalorder %s317, %s320
      %p326 = scmp.eq.s32.totalorder %s35, 0
      %p327 = por %p325, %p326
      %p328 = scmp.ne.s32.totalorder %s317, %s320
      %p329 = scmp.eq.s32.totalorder %s40, 3
      %p330 = por %p328, %p329
      %p331 = scmp.ne.s32.totalorder %s320, %s321
      %p332 = scmp.eq.s32.totalorder %s40, 0
      %p333 = por %p331, %p332
      %p334 = scmp.ne.s32.totalorder %s320, %s321
      %p335 = scmp.eq.s32.totalorder %s41, 3
      %p336 = por %p334, %p335
      %p338 = scmp.ne.s32.totalorder %s321, %s337
      %p339 = scmp.eq.s32.totalorder %s41, 0
      %p340 = por %p338, %p339
      %s341 = ssub.s32 %s43, %s50
      %p342 = scmp.eq.s32.totalorder %s341, 0
      %s344 = sadd.s32 %s343, 1
      %s345 = scalar_select %p342, %s343, %s344
      %p348 = pneg %p342
      %p349 = scmp.eq.s32.totalorder %s35, 3
      %p350 = por %p348, %p349
      %p351 = scmp.ne.s32.totalorder %s343, %s346
      %p352 = scmp.eq.s32.totalorder %s35, 0
      %p353 = por %p351, %p352
      %p354 = scmp.ne.s32.totalorder %s343, %s346
      %p355 = scmp.eq.s32.totalorder %s40, 3
      %p356 = por %p354, %p355
      %p357 = scmp.ne.s32.totalorder %s346, %s347
      %p358 = scmp.eq.s32.totalorder %s40, 0
      %p359 = por %p357, %p358
      %p360 = scmp.ne.s32.totalorder %s346, %s347
      %p361 = scmp.eq.s32.totalorder %s41, 3
      %p362 = por %p360, %p361
      %p364 = scmp.ne.s32.totalorder %s347, %s363
      %p365 = scmp.eq.s32.totalorder %s41, 0
      %p366 = por %p364, %p365
      %s367 = ssub.s32 %s43, %s50
      %p368 = scmp.eq.s32.totalorder %s367, 0
      %s370 = sadd.s32 %s369, 1
      %s371 = scalar_select %p368, %s369, %s370
      %p374 = pneg %p368
      %p375 = scmp.eq.s32.totalorder %s35, 3
      %p376 = por %p374, %p375
      %p377 = scmp.ne.s32.totalorder %s369, %s372
      %p378 = scmp.eq.s32.totalorder %s35, 0
      %p379 = por %p377, %p378
      %p380 = scmp.ne.s32.totalorder %s369, %s372
      %p381 = scmp.eq.s32.totalorder %s40, 3
      %p382 = por %p380, %p381
      %p383 = scmp.ne.s32.totalorder %s372, %s373
      %p384 = scmp.eq.s32.totalorder %s40, 0
      %p385 = por %p383, %p384
      %p386 = scmp.ne.s32.totalorder %s372, %s373
      %p387 = scmp.eq.s32.totalorder %s41, 3
      %p388 = por %p386, %p387
      %p390 = scmp.ne.s32.totalorder %s373, %s389
      %p391 = scmp.eq.s32.totalorder %s41, 0
      %p392 = por %p390, %p391
      %s394 = sadd.s32 %s393, 1
      %p397 = scmp.eq.s32.totalorder %s35, 3
      %p398 = scmp.ne.s32.totalorder %s393, %s395
      %p399 = scmp.eq.s32.totalorder %s35, 0
      %p400 = por %p398, %p399
      %p401 = scmp.ne.s32.totalorder %s393, %s395
      %p402 = scmp.eq.s32.totalorder %s40, 3
      %p403 = por %p401, %p402
      %p404 = scmp.ne.s32.totalorder %s395, %s396
      %p405 = scmp.eq.s32.totalorder %s40, 0
      %p406 = por %p404, %p405
      %p407 = scmp.ne.s32.totalorder %s395, %s396
      %p408 = scmp.eq.s32.totalorder %s41, 3
      %p409 = por %p407, %p408
      %p411 = scmp.ne.s32.totalorder %s396, %s410
      %p412 = scmp.eq.s32.totalorder %s41, 0
      %p413 = por %p411, %p412
      %s414 = ssub.s32 %s42, %s54
      %p415 = scmp.eq.s32.totalorder %s414, 0
      %s417 = sadd.s32 %s416, 1
      %s418 = scalar_select %p415, %s416, %s417
      %p421 = pneg %p415
      %p422 = scmp.eq.s32.totalorder %s35, 3
      %p423 = por %p421, %p422
      %p424 = scmp.ne.s32.totalorder %s416, %s419
      %p425 = scmp.eq.s32.totalorder %s35, 0
      %p426 = por %p424, %p425
      %p427 = scmp.ne.s32.totalorder %s416, %s419
      %p428 = scmp.eq.s32.totalorder %s40, 3
      %p429 = por %p427, %p428
      %p430 = scmp.ne.s32.totalorder %s419, %s420
      %p431 = scmp.eq.s32.totalorder %s40, 0
      %p432 = por %p430, %p431
      %p433 = scmp.ne.s32.totalorder %s419, %s420
      %p434 = scmp.eq.s32.totalorder %s41, 3
      %p435 = por %p433, %p434
      %p437 = scmp.ne.s32.totalorder %s420, %s436
      %p438 = scmp.eq.s32.totalorder %s41, 0
      %p439 = por %p437, %p438
      %p440 = scmp.le.s32.totalorder 1, %s35
      %p441 = scmp.lt.s32.totalorder %s35, 5
      %p442 = pnand %p440, %p441
      %p443 = pneg %p442
      // Predicated region
      $region9: #{tpu_custom_call.1} parent=5 // pred_check
        _
      $region10: #{tpu_custom_call.1} parent=5 // pred_check_branch
        %445 = sbr.rel (%p442) target = $region12
      $region11: #{tpu_custom_call.1} parent=5 // pred_region
        %s446 = ssub.s32 %s35, 1
        // Predicated region
        $region13: #{tpu_custom_call.1} parent=11 // pred_check
          %p447 = pneg %p406
        $region14: #{tpu_custom_call.1} parent=11 // pred_check_branch
          %449 = sbr.rel (%p447) target = $region16
        $region15: #{tpu_custom_call.1} parent=11 // pred_region
          _
        $region16: #{tpu_custom_call.1} parent=11 // pred_fallthru
          _
      $region12: #{tpu_custom_call.1} parent=5 // pred_fallthru
        _
      %p450 = scmp.lt.s32.totalorder %s35, 4
      // Predicated region
      $region17: #{tpu_custom_call.1} parent=5 // pred_check
        %p451 = pneg %p450
      $region18: #{tpu_custom_call.1} parent=5 // pred_check_branch
        %453 = sbr.rel (%p451) target = $region20
      $region19: #{tpu_custom_call.1} parent=5 // pred_region
        // Predicated region
        $region21: #{tpu_custom_call.1} parent=19 // pred_check
          %p454 = pneg %p67
        $region22: #{tpu_custom_call.1} parent=19 // pred_check_branch
          %456 = sbr.rel (%p454) target = $region24
        $region23: #{tpu_custom_call.1} parent=19 // pred_region
          %s457 = sand.u32 %s57, 1
          %s458 = scalar_lea.sflag [#allocation4], %s457
          %s459 = sand.u32 %s57, 1
          %s460 = smul.addr %s459, 8
          %s461 = scalar_lea.vmem [#allocation3], %s460
          %s463 = ssub.s32 128, 128
          %464 = vsyncadd %s458, %s463
          %s465 = smul.addr %s42, 128
          %s466 = scalar_lea.hbm %s0, %s465
          %s468 = sshll.u32 %s461, 4
          %s469 = int_to_ptr.vmem [resolvable:$true] %s468
          %471 = dma.hbm_to_vmem [thread:$0]  %s466, 128, %s469, %s458
        $region24: #{tpu_custom_call.1} parent=19 // pred_fallthru
          _
        // Predicated region
        $region25: #{tpu_custom_call.1} parent=19 // pred_check
          %p472 = pneg %p93
        $region26: #{tpu_custom_call.1} parent=19 // pred_check_branch
          %474 = sbr.rel (%p472) target = $region28
        $region27: #{tpu_custom_call.1} parent=19 // pred_region
          %p475 = scmp.lt.s32.totalorder %s42, 1
          %s476 = scalar_select %p475, %s42, 1
          %s477 = smul.addr %s476, 2
          %s478 = smul.addr %s477, 8
          %s479 = scalar_lea.vmem %s1, %s478
        $region28: #{tpu_custom_call.1} parent=19 // pred_fallthru
          _
        // Predicated region
        $region29: #{tpu_custom_call.1} parent=19 // pred_check
          %p480 = pneg %p119
        $region30: #{tpu_custom_call.1} parent=19 // pred_check_branch
          %482 = sbr.rel (%p480) target = $region32
        $region31: #{tpu_custom_call.1} parent=19 // pred_region
          %s483 = sand.u32 %s35, 1
          %s484 = scalar_lea.sflag [#allocation7], %s483
          %s485 = sand.u32 %s109, 1
          %s486 = smul.addr %s485, 8
          %s487 = scalar_lea.vmem [#allocation6], %s486
          %s489 = ssub.s32 128, 128
          %490 = vsyncadd %s484, %s489
          %s491 = smul.addr %s42, 128
          %s492 = scalar_lea.hbm %s2, %s491
          %s494 = sshll.u32 %s487, 4
          %s495 = int_to_ptr.vmem [resolvable:$true] %s494
          %497 = dma.hbm_to_vmem [thread:$0]  %s492, 128, %s495, %s484
        $region32: #{tpu_custom_call.1} parent=19 // pred_fallthru
          _
        // Predicated region
        $region33: #{tpu_custom_call.1} parent=19 // pred_check
          %p498 = pneg %p145
        $region34: #{tpu_custom_call.1} parent=19 // pred_check_branch
          %500 = sbr.rel (%p498) target = $region36
        $region35: #{tpu_custom_call.1} parent=19 // pred_region
          %s501 = sand.u32 %s35, 1
          %s502 = scalar_lea.sflag [#allocation7], %s501
          %s503 = sand.u32 %s135, 1
          %s504 = smul.addr %s503, 16
          %s505 = scalar_lea.vmem [#allocation8], %s504
          %s507 = ssub.s32 256, 256
          %508 = vsyncadd %s502, %s507
          %s509 = smul.addr %s42, 2
          %s510 = smul.addr %s509, 128
          %s511 = scalar_lea.hbm %s3, %s510
          %s512 = sshll.u32 %s505, 4
          %s513 = int_to_ptr.vmem [resolvable:$true] %s512
          %518 = dma.hbm_to_vmem [thread:$0]  %s511, 256, %s513, %s502, 128, 128, 8
        $region36: #{tpu_custom_call.1} parent=19 // pred_fallthru
          _
        // Predicated region
        $region37: #{tpu_custom_call.1} parent=19 // pred_check
          %p519 = pneg %p171
        $region38: #{tpu_custom_call.1} parent=19 // pred_check_branch
          %521 = sbr.rel (%p519) target = $region40
        $region39: #{tpu_custom_call.1} parent=19 // pred_region
          %s522 = sand.u32 %s35, 1
          %s523 = scalar_lea.sflag [#allocation10], %s522
          %s524 = sand.u32 %s161, 1
          %s525 = smul.addr %s524, 96
          %s526 = scalar_lea.vmem [#allocation9], %s525
          %s528 = ssub.s32 1536, 1536
          %529 = vsyncadd %s523, %s528
          %s530 = smul.addr %s43, 24
          %s531 = smul.addr %s530, 64
          %s532 = scalar_lea.hbm %s4, %s531
          %s533 = sshll.u32 %s526, 4
          %s534 = int_to_ptr.vmem [resolvable:$true] %s533
          %539 = dma.hbm_to_vmem [thread:$0]  %s532, 1536, %s534, %s523, 64, 64, 4
        $region40: #{tpu_custom_call.1} parent=19 // pred_fallthru
          _
        // Predicated region
        $region41: #{tpu_custom_call.1} parent=19 // pred_check
          %p540 = pneg %p197
        $region42: #{tpu_custom_call.1} parent=19 // pred_check_branch
          %542 = sbr.rel (%p540) target = $region44
        $region43: #{tpu_custom_call.1} parent=19 // pred_region
          %s543 = sand.u32 %s35, 1
          %s544 = scalar_lea.sflag [#allocation10], %s543
          %s545 = sand.u32 %s187, 1
          %s546 = smul.addr %s545, 6
          %s547 = scalar_lea.vmem [#allocation11], %s546
          %s549 = ssub.s32 96, 96
          %550 = vsyncadd %s544, %s549
          %s551 = smul.addr %s43, 6
          %s552 = smul.addr %s551, 16
          %s553 = scalar_lea.hbm %s5, %s552
          %s554 = sshll.u32 %s547, 4
          %s555 = int_to_ptr.vmem [resolvable:$true] %s554
          %560 = dma.hbm_to_vmem [thread:$0]  %s553, 96, %s555, %s544, 16, 16, 1
        $region44: #{tpu_custom_call.1} parent=19 // pred_fallthru
          _
        // Predicated region
        $region45: #{tpu_custom_call.1} parent=19 // pred_check
          %p561 = pneg %p223
        $region46: #{tpu_custom_call.1} parent=19 // pred_check_branch
          %563 = sbr.rel (%p561) target = $region48
        $region47: #{tpu_custom_call.1} parent=19 // pred_region
          %p564 = scmp.lt.s32.totalorder %s43, 1
          %s565 = scalar_select %p564, %s43, 1
          %s566 = smul.addr %s565, 8
          %s567 = smul.addr %s566, 4
          %s568 = scalar_lea.vmem %s6, %s567
        $region48: #{tpu_custom_call.1} parent=19 // pred_fallthru
          _
        // Predicated region
        $region49: #{tpu_custom_call.1} parent=19 // pred_check
          %p569 = pneg %p249
        $region50: #{tpu_custom_call.1} parent=19 // pred_check_branch
          %571 = sbr.rel (%p569) target = $region52
        $region51: #{tpu_custom_call.1} parent=19 // pred_region
          %p572 = scmp.lt.s32.totalorder %s43, 1
          %s573 = scalar_select %p572, %s43, 1
          %s574 = smul.addr %s573, 2
          %s575 = scalar_lea.vmem %s7, %s574
        $region52: #{tpu_custom_call.1} parent=19 // pred_fallthru
          _
        // Predicated region
        $region53: #{tpu_custom_call.1} parent=19 // pred_check
          %p576 = pneg %p275
        $region54: #{tpu_custom_call.1} parent=19 // pred_check_branch
          %578 = sbr.rel (%p576) target = $region56
        $region55: #{tpu_custom_call.1} parent=19 // pred_region
          %s579 = sand.u32 %s35, 1
          %s580 = scalar_lea.sflag [#allocation13], %s579
          %s581 = sand.u32 %s265, 1
          %s582 = smul.addr %s581, 6
          %s583 = scalar_lea.vmem [#allocation12], %s582
          %s585 = ssub.s32 96, 96
          %586 = vsyncadd %s580, %s585
          %s587 = smul.addr %s43, 6
          %s588 = smul.addr %s587, 16
          %s589 = scalar_lea.hbm %s8, %s588
          %s590 = sshll.u32 %s583, 4
          %s591 = int_to_ptr.vmem [resolvable:$true] %s590
          %596 = dma.hbm_to_vmem [thread:$0]  %s589, 96, %s591, %s580, 16, 16, 1
        $region56: #{tpu_custom_call.1} parent=19 // pred_fallthru
          _
        // Predicated region
        $region57: #{tpu_custom_call.1} parent=19 // pred_check
          %p597 = pneg %p301
        $region58: #{tpu_custom_call.1} parent=19 // pred_check_branch
          %599 = sbr.rel (%p597) target = $region60
        $region59: #{tpu_custom_call.1} parent=19 // pred_region
          %s600 = sand.u32 %s35, 1
          %s601 = scalar_lea.sflag [#allocation13], %s600
          %s602 = sand.u32 %s291, 1
          %s603 = smul.addr %s602, 16
          %s604 = scalar_lea.vmem [#allocation14], %s603
          %s606 = ssub.s32 256, 256
          %607 = vsyncadd %s601, %s606
          %s608 = smul.addr %s43, 4
          %s609 = smul.addr %s608, 64
          %s610 = scalar_lea.hbm %s9, %s609
          %s611 = sshll.u32 %s604, 4
          %s612 = int_to_ptr.vmem [resolvable:$true] %s611
          %617 = dma.hbm_to_vmem [thread:$0]  %s610, 256, %s612, %s601, 64, 64, 4
        $region60: #{tpu_custom_call.1} parent=19 // pred_fallthru
          _
        // Predicated region
        $region61: #{tpu_custom_call.1} parent=19 // pred_check
          %p618 = pneg %p327
        $region62: #{tpu_custom_call.1} parent=19 // pred_check_branch
          %620 = sbr.rel (%p618) target = $region64
        $region63: #{tpu_custom_call.1} parent=19 // pred_region
          %p621 = scmp.lt.s32.totalorder %s43, 1
          %s622 = scalar_select %p621, %s43, 1
          %s623 = scalar_lea.vmem %s10, %s622
        $region64: #{tpu_custom_call.1} parent=19 // pred_fallthru
          _
        // Predicated region
        $region65: #{tpu_custom_call.1} parent=19 // pred_check
          %p624 = pneg %p353
        $region66: #{tpu_custom_call.1} parent=19 // pred_check_branch
          %626 = sbr.rel (%p624) target = $region68
        $region67: #{tpu_custom_call.1} parent=19 // pred_region
          %p627 = scmp.lt.s32.totalorder %s43, 1
          %s628 = scalar_select %p627, %s43, 1
          %s629 = smul.addr %s628, 8
          %s630 = smul.addr %s629, 4
          %s631 = scalar_lea.vmem %s11, %s630
        $region68: #{tpu_custom_call.1} parent=19 // pred_fallthru
          _
        // Predicated region
        $region69: #{tpu_custom_call.1} parent=19 // pred_check
          %p632 = pneg %p379
        $region70: #{tpu_custom_call.1} parent=19 // pred_check_branch
          %634 = sbr.rel (%p632) target = $region72
        $region71: #{tpu_custom_call.1} parent=19 // pred_region
          %p635 = scmp.lt.s32.totalorder %s43, 1
          %s636 = scalar_select %p635, %s43, 1
          %s637 = scalar_lea.vmem %s12, %s636
        $region72: #{tpu_custom_call.1} parent=19 // pred_fallthru
          _
      $region20: #{tpu_custom_call.1} parent=5 // pred_fallthru
        _
      %p638 = scmp.le.s32.totalorder 1, %s35
      %p639 = scmp.lt.s32.totalorder %s35, 5
      %p640 = pnand %p638, %p639
      %p641 = pneg %p640
      // Predicated region
      $region73: #{tpu_custom_call.1} parent=5 // pred_check
        _
      $region74: #{tpu_custom_call.1} parent=5 // pred_check_branch
        %643 = sbr.rel (%p640) target = $region76
      $region75: #{tpu_custom_call.1} parent=5 // pred_region
        %s644 = ssub.s32 %s35, 1
        %s645 = sand.u32 %s60, 1
        %s646 = scalar_lea.sflag [#allocation4], %s645
        %s647 = sand.u32 %s60, 1
        %s648 = smul.addr %s647, 8
        %s649 = scalar_lea.vmem [#allocation3], %s648
        // Predicated region
        $region77: #{tpu_custom_call.1} parent=75 // pred_check
          %p650 = pneg %p73
        $region78: #{tpu_custom_call.1} parent=75 // pred_check_branch
          %652 = sbr.rel (%p650) target = $region80
        $region79: #{tpu_custom_call.1} parent=75 // pred_region
          %653 = dma.done %s646, 128
        $region80: #{tpu_custom_call.1} parent=75 // pred_fallthru
          _
        %s654 = sand.u32 %s40, 1
        %s655 = scalar_lea.sflag [#allocation7], %s654
        %s656 = sand.u32 %s112, 1
        %s657 = smul.addr %s656, 8
        %s658 = scalar_lea.vmem [#allocation6], %s657
        // Predicated region
        $region81: #{tpu_custom_call.1} parent=75 // pred_check
          %p659 = pneg %p125
        $region82: #{tpu_custom_call.1} parent=75 // pred_check_branch
          %661 = sbr.rel (%p659) target = $region84
        $region83: #{tpu_custom_call.1} parent=75 // pred_region
          %662 = dma.done %s655, 128
        $region84: #{tpu_custom_call.1} parent=75 // pred_fallthru
          _
        %s663 = sand.u32 %s40, 1
        %s664 = scalar_lea.sflag [#allocation7], %s663
        %s665 = sand.u32 %s138, 1
        %s666 = smul.addr %s665, 16
        %s667 = scalar_lea.vmem [#allocation8], %s666
        // Predicated region
        $region85: #{tpu_custom_call.1} parent=75 // pred_check
          %p668 = pneg %p151
        $region86: #{tpu_custom_call.1} parent=75 // pred_check_branch
          %670 = sbr.rel (%p668) target = $region88
        $region87: #{tpu_custom_call.1} parent=75 // pred_region
          %671 = dma.done %s664, 256
        $region88: #{tpu_custom_call.1} parent=75 // pred_fallthru
          _
        %s672 = sand.u32 %s40, 1
        %s673 = scalar_lea.sflag [#allocation10], %s672
        %s674 = sand.u32 %s164, 1
        %s675 = smul.addr %s674, 96
        %s676 = scalar_lea.vmem [#allocation9], %s675
        // Predicated region
        $region89: #{tpu_custom_call.1} parent=75 // pred_check
          %p677 = pneg %p177
        $region90: #{tpu_custom_call.1} parent=75 // pred_check_branch
          %679 = sbr.rel (%p677) target = $region92
        $region91: #{tpu_custom_call.1} parent=75 // pred_region
          %680 = dma.done %s673, 1536
        $region92: #{tpu_custom_call.1} parent=75 // pred_fallthru
          _
        %s681 = sand.u32 %s40, 1
        %s682 = scalar_lea.sflag [#allocation10], %s681
        %s683 = sand.u32 %s190, 1
        %s684 = smul.addr %s683, 6
        %s685 = scalar_lea.vmem [#allocation11], %s684
        // Predicated region
        $region93: #{tpu_custom_call.1} parent=75 // pred_check
          %p686 = pneg %p203
        $region94: #{tpu_custom_call.1} parent=75 // pred_check_branch
          %688 = sbr.rel (%p686) target = $region96
        $region95: #{tpu_custom_call.1} parent=75 // pred_region
          %689 = dma.done %s682, 96
        $region96: #{tpu_custom_call.1} parent=75 // pred_fallthru
          _
        %s690 = sand.u32 %s40, 1
        %s691 = scalar_lea.sflag [#allocation13], %s690
        %s692 = sand.u32 %s268, 1
        %s693 = smul.addr %s692, 6
        %s694 = scalar_lea.vmem [#allocation12], %s693
        // Predicated region
        $region97: #{tpu_custom_call.1} parent=75 // pred_check
          %p695 = pneg %p281
        $region98: #{tpu_custom_call.1} parent=75 // pred_check_branch
          %697 = sbr.rel (%p695) target = $region100
        $region99: #{tpu_custom_call.1} parent=75 // pred_region
          %698 = dma.done %s691, 96
        $region100: #{tpu_custom_call.1} parent=75 // pred_fallthru
          _
        %s699 = sand.u32 %s40, 1
        %s700 = scalar_lea.sflag [#allocation13], %s699
        %s701 = sand.u32 %s294, 1
        %s702 = smul.addr %s701, 16
        %s703 = scalar_lea.vmem [#allocation14], %s702
        // Predicated region
        $region101: #{tpu_custom_call.1} parent=75 // pred_check
          %p704 = pneg %p307
        $region102: #{tpu_custom_call.1} parent=75 // pred_check_branch
          %706 = sbr.rel (%p704) target = $region104
        $region103: #{tpu_custom_call.1} parent=75 // pred_region
          %707 = dma.done %s700, 256
        $region104: #{tpu_custom_call.1} parent=75 // pred_fallthru
          _
        %s708 = sand.u32 %s60, 1
        %s709 = scalar_lea.sflag [#allocation4], %s708
        %s710 = sand.u32 %s60, 1
        %s711 = smul.addr %s710, 8
        %s712 = scalar_lea.vmem [#allocation3], %s711
        %p713 = pneg %p73
        %p714 = pneg %p70
        %p715 = scmp.lt.s32.totalorder %s44, 1
        %s716 = scalar_select %p715, %s44, 1
        %s717 = smul.addr %s716, 2
        %s718 = smul.addr %s717, 8
        %s719 = scalar_lea.vmem %s1, %s718
        %p720 = pneg %p99
        %p721 = pneg %p96
        %s722 = sand.u32 %s40, 1
        %s723 = scalar_lea.sflag [#allocation7], %s722
        %s724 = sand.u32 %s112, 1
        %s725 = smul.addr %s724, 8
        %s726 = scalar_lea.vmem [#allocation6], %s725
        %p727 = pneg %p125
        %p728 = pneg %p122
        %s729 = sand.u32 %s40, 1
        %s730 = scalar_lea.sflag [#allocation7], %s729
        %s731 = sand.u32 %s138, 1
        %s732 = smul.addr %s731, 16
        %s733 = scalar_lea.vmem [#allocation8], %s732
        %p734 = pneg %p151
        %p735 = pneg %p148
        %s736 = sand.u32 %s40, 1
        %s737 = scalar_lea.sflag [#allocation10], %s736
        %s738 = sand.u32 %s164, 1
        %s739 = smul.addr %s738, 96
        %s740 = scalar_lea.vmem [#allocation9], %s739
        %p741 = pneg %p177
        %p742 = pneg %p174
        %s743 = sand.u32 %s40, 1
        %s744 = scalar_lea.sflag [#allocation10], %s743
        %s745 = sand.u32 %s190, 1
        %s746 = smul.addr %s745, 6
        %s747 = scalar_lea.vmem [#allocation11], %s746
        %p748 = pneg %p203
        %p749 = pneg %p200
        %p750 = scmp.lt.s32.totalorder %s45, 1
        %s751 = scalar_select %p750, %s45, 1
        %s752 = smul.addr %s751, 8
        %s753 = smul.addr %s752, 4
        %s754 = scalar_lea.vmem %s6, %s753
        %p755 = pneg %p229
        %p756 = pneg %p226
        %p757 = scmp.lt.s32.totalorder %s45, 1
        %s758 = scalar_select %p757, %s45, 1
        %s759 = smul.addr %s758, 2
        %s760 = scalar_lea.vmem %s7, %s759
        %p761 = pneg %p255
        %p762 = pneg %p252
        %s763 = sand.u32 %s40, 1
        %s764 = scalar_lea.sflag [#allocation13], %s763
        %s765 = sand.u32 %s268, 1
        %s766 = smul.addr %s765, 6
        %s767 = scalar_lea.vmem [#allocation12], %s766
        %p768 = pneg %p281
        %p769 = pneg %p278
        %s770 = sand.u32 %s40, 1
        %s771 = scalar_lea.sflag [#allocation13], %s770
        %s772 = sand.u32 %s294, 1
        %s773 = smul.addr %s772, 16
        %s774 = scalar_lea.vmem [#allocation14], %s773
        %p775 = pneg %p307
        %p776 = pneg %p304
        %p777 = scmp.lt.s32.totalorder %s45, 1
        %s778 = scalar_select %p777, %s45, 1
        %s779 = scalar_lea.vmem %s10, %s778
        %p780 = pneg %p333
        %p781 = pneg %p330
        %p782 = scmp.lt.s32.totalorder %s45, 1
        %s783 = scalar_select %p782, %s45, 1
        %s784 = smul.addr %s783, 8
        %s785 = smul.addr %s784, 4
        %s786 = scalar_lea.vmem %s11, %s785
        %p787 = pneg %p359
        %p788 = pneg %p356
        %p789 = scmp.lt.s32.totalorder %s45, 1
        %s790 = scalar_select %p789, %s45, 1
        %s791 = scalar_lea.vmem %s12, %s790
        %p792 = pneg %p385
        %p793 = pneg %p382
        %p794 = pneg %p406
        %p795 = pneg %p403
        %p796 = pneg %p432
        %p797 = pneg %p429
        %s798 = sand.u32 %s419, 1
        %s799 = scalar_lea.sflag [#allocation5], %s798
        %s800 = sand.u32 %s419, 1
        %s801 = smul.addr %s800, 8
        %s802 = scalar_lea.vmem [#allocation15], %s801
        %p803 = scmp.lt.s32.totalorder %s44, 1
        %s804 = scalar_select %p803, %s44, 1
        %s805 = smul.addr %s804, 2
        %s806 = smul.addr %s805, 8
        %s807 = scalar_lea.vmem %s1, %s806
        %p808 = scmp.lt.s32.totalorder %s45, 1
        %s809 = scalar_select %p808, %s45, 1
        %s810 = smul.addr %s809, 8
        %s811 = smul.addr %s810, 4
        %s812 = scalar_lea.vmem %s6, %s811
        %p813 = scmp.lt.s32.totalorder %s45, 1
        %s814 = scalar_select %p813, %s45, 1
        %s815 = smul.addr %s814, 2
        %s816 = scalar_lea.vmem %s7, %s815
        %p817 = scmp.lt.s32.totalorder %s45, 1
        %s818 = scalar_select %p817, %s45, 1
        %s819 = scalar_lea.vmem %s10, %s818
        %p820 = scmp.lt.s32.totalorder %s45, 1
        %s821 = scalar_select %p820, %s45, 1
        %s822 = smul.addr %s821, 8
        %s823 = smul.addr %s822, 4
        %s824 = scalar_lea.vmem %s11, %s823
        %p825 = scmp.lt.s32.totalorder %s45, 1
        %s826 = scalar_select %p825, %s45, 1
        %s827 = scalar_lea.vmem %s12, %s826
        %p829 = scmp.eq.s32.totalorder %s45, 0
        // Predicated region
        $region105: #{tpu_custom_call.1} parent=75 // pred_check
          %p830 = pneg %p829
        $region106: #{tpu_custom_call.1} parent=75 // pred_check_branch
          %832 = sbr.rel (%p830) target = $region108
        $region107: #{tpu_custom_call.1} parent=75 // pred_region
          %v833 = vld [vmem:[%s649] sm:$0xff]
          %vm834 = vcmask 261120
          %835 = vst.msk [vmem:[%s802] sm:$0xff] %vm834, %v833
        $region108: #{tpu_custom_call.1} parent=75 // pred_fallthru
          _
        %v836 = vld [vmem:[%s802] sm:$0xff]
        %v837 = vld [vmem:[%s658] sm:$0xff]
        %v838 = vadd.f32 %v836, %v837
        %v839 = vpack.c.bf16 %v838, %v838
        %v840 = vld [vmem:[%s676] sm:$0xf]
        %v841 = vld [vmem:[%s676 + $0x4] sm:$0xf]
        %v842 = vld [vmem:[%s676 + $0x8] sm:$0xf]
        %v843 = vld [vmem:[%s676 + $0xc] sm:$0xf]
        %v844 = vld [vmem:[%s685] sm:$0x1]
        %v846 = vlaneseq
        %v847 = vshrl.u32 %v846, 7
        %v848 = vsub.s32 0, %v847
        %v849 = vrot.slane %v844, %v848
        %v855 = vunpack.c.l.b16 %v840
        %v856 = vunpack.c.l.b16 %v841
        %v857 = vunpack.c.l.b16 %v842
        %v858 = vunpack.c.l.b16 %v843
        %v859 = vpack.c.b16 %v856, %v855
        %v860 = vpack.c.b16 %v858, %v857
        %vm863 = vcmask 261120
        %v865 = vsel %vm863, %v839, 0
        %867 = vmatprep.subr.bf16.mxu0 0
        %868 = vmatpush1.bf16.msra.mxu0 %v859
        %869 = vmatprep.subr.bf16.mxu0 0
        %870 = vmatpush1.bf16.msra.mxu0 %v860
        %871 = vmatprep.subr.bf16.mxu0 0
        %872 = vmatpush1.bf16.msra.mxu0 0
        %873 = vmatprep.subr.bf16.mxu0 0
        %874 = vmatpush1.bf16.msra.mxu0 0
        %875 = vmatprep.subr.bf16.mxu0 0
        %876 = vmatpush1.bf16.msra.mxu0 0
        %877 = vmatprep.subr.bf16.mxu0 0
        %878 = vmatpush1.bf16.msra.mxu0 0
        %879 = vmatprep.subr.bf16.mxu0 0
        %880 = vmatpush1.bf16.msra.mxu0 0
        %881 = vmatprep.subr.bf16.mxu0 0
        %882 = vmatpush1.bf16.msra.mxu0 0
        %883 = vmatprep.subr.bf16.mxu0 0
        %884 = vmatpush1.bf16.msra.mxu0 0
        %885 = vmatprep.subr.bf16.mxu0 0
        %886 = vmatpush1.bf16.msra.mxu0 0
        %887 = vmatprep.subr.bf16.mxu0 0
        %888 = vmatpush1.bf16.msra.mxu0 0
        %889 = vmatprep.subr.bf16.mxu0 0
        %890 = vmatpush1.bf16.msra.mxu0 0
        %891 = vmatprep.subr.bf16.mxu0 0
        %892 = vmatpush1.bf16.msra.mxu0 0
        %893 = vmatprep.subr.bf16.mxu0 0
        %894 = vmatpush1.bf16.msra.mxu0 0
        %895 = vmatprep.subr.bf16.mxu0 0
        %896 = vmatpush1.bf16.msra.mxu0 0
        %897 = vmatprep.subr.bf16.mxu0 0
        %898 = vmatpush1.bf16.msra.mxu0 0
        %899 = vmatprep.mubr.bf16.mxu0 0
        %900 = vmatmul.mubr.bf16.gmra.mrb[0].mxu0 %v865
        %v901 = vpop.f32.mrb[0].mxu0
        %v902 = vadd.f32 %v849, %v901
        %v903 = vpop.f32.mrb[0].mxu0
        %v904 = vpop.f32.mrb[0].mxu0
        %v905 = vpop.f32.mrb[0].mxu0
        %906 = vdwg.mxu0
        %s907 = scalar_lea.vmem %s676, 16 [#allocation9]
        %v908 = vld [vmem:[%s907] sm:$0xf]
        %v909 = vld [vmem:[%s907 + $0x4] sm:$0xf]
        %v910 = vld [vmem:[%s907 + $0x8] sm:$0xf]
        %v911 = vld [vmem:[%s907 + $0xc] sm:$0xf]
        %s912 = scalar_lea.vmem %s685, 1 [#allocation11]
        %v913 = vld [vmem:[%s912] sm:$0x1]
        %v915 = vlaneseq
        %v916 = vshrl.u32 %v915, 7
        %v917 = vsub.s32 0, %v916
        %v918 = vrot.slane %v913, %v917
        %v924 = vunpack.c.l.b16 %v908
        %v925 = vunpack.c.l.b16 %v909
        %v926 = vunpack.c.l.b16 %v910
        %v927 = vunpack.c.l.b16 %v911
        %v928 = vpack.c.b16 %v925, %v924
        %v929 = vpack.c.b16 %v927, %v926
        %932 = vmatprep.subr.bf16.mxu0 0
        %933 = vmatpush1.bf16.msra.mxu0 %v928
        %934 = vmatprep.subr.bf16.mxu0 0
        %935 = vmatpush1.bf16.msra.mxu0 %v929
        %936 = vmatprep.subr.bf16.mxu0 0
        %937 = vmatpush1.bf16.msra.mxu0 0
        %938 = vmatprep.subr.bf16.mxu0 0
        %939 = vmatpush1.bf16.msra.mxu0 0
        %940 = vmatprep.subr.bf16.mxu0 0
        %941 = vmatpush1.bf16.msra.mxu0 0
        %942 = vmatprep.subr.bf16.mxu0 0
        %943 = vmatpush1.bf16.msra.mxu0 0
        %944 = vmatprep.subr.bf16.mxu0 0
        %945 = vmatpush1.bf16.msra.mxu0 0
        %946 = vmatprep.subr.bf16.mxu0 0
        %947 = vmatpush1.bf16.msra.mxu0 0
        %948 = vmatprep.subr.bf16.mxu0 0
        %949 = vmatpush1.bf16.msra.mxu0 0
        %950 = vmatprep.subr.bf16.mxu0 0
        %951 = vmatpush1.bf16.msra.mxu0 0
        %952 = vmatprep.subr.bf16.mxu0 0
        %953 = vmatpush1.bf16.msra.mxu0 0
        %954 = vmatprep.subr.bf16.mxu0 0
        %955 = vmatpush1.bf16.msra.mxu0 0
        %956 = vmatprep.subr.bf16.mxu0 0
        %957 = vmatpush1.bf16.msra.mxu0 0
        %958 = vmatprep.subr.bf16.mxu0 0
        %959 = vmatpush1.bf16.msra.mxu0 0
        %960 = vmatprep.subr.bf16.mxu0 0
        %961 = vmatpush1.bf16.msra.mxu0 0
        %962 = vmatprep.subr.bf16.mxu0 0
        %963 = vmatpush1.bf16.msra.mxu0 0
        %964 = vmatprep.mubr.bf16.mxu0 0
        %965 = vmatmul.mubr.bf16.gmra.mrb[0].mxu0 %v865
        %v966 = vpop.f32.mrb[0].mxu0
        %v967 = vadd.f32 %v918, %v966
        %v968 = vpop.f32.mrb[0].mxu0
        %v969 = vpop.f32.mrb[0].mxu0
        %v970 = vpop.f32.mrb[0].mxu0
        %971 = vdwg.mxu0
        %v972 = vpack.c.bf16 %v836, %v836
        %s973 = scalar_lea.vmem %s676, 32 [#allocation9]
        %v974 = vld [vmem:[%s973] sm:$0xf]
        %v975 = vld [vmem:[%s973 + $0x4] sm:$0xf]
        %v976 = vld [vmem:[%s973 + $0x8] sm:$0xf]
        %v977 = vld [vmem:[%s973 + $0xc] sm:$0xf]
        %s978 = scalar_lea.vmem %s685, 2 [#allocation11]
        %v979 = vld [vmem:[%s978] sm:$0x1]
        %v981 = vlaneseq
        %v982 = vshrl.u32 %v981, 7
        %v983 = vsub.s32 0, %v982
        %v984 = vrot.slane %v979, %v983
        %v990 = vunpack.c.l.b16 %v974
        %v991 = vunpack.c.l.b16 %v975
        %v992 = vunpack.c.l.b16 %v976
        %v993 = vunpack.c.l.b16 %v977
        %v994 = vpack.c.b16 %v991, %v990
        %v995 = vpack.c.b16 %v993, %v992
        %v999 = vsel %vm863, %v972, 0
        %1001 = vmatprep.subr.bf16.mxu0 0
        %1002 = vmatpush1.bf16.msra.mxu0 %v994
        %1003 = vmatprep.subr.bf16.mxu0 0
        %1004 = vmatpush1.bf16.msra.mxu0 %v995
        %1005 = vmatprep.subr.bf16.mxu0 0
        %1006 = vmatpush1.bf16.msra.mxu0 0
        %1007 = vmatprep.subr.bf16.mxu0 0
        %1008 = vmatpush1.bf16.msra.mxu0 0
        %1009 = vmatprep.subr.bf16.mxu0 0
        %1010 = vmatpush1.bf16.msra.mxu0 0
        %1011 = vmatprep.subr.bf16.mxu0 0
        %1012 = vmatpush1.bf16.msra.mxu0 0
        %1013 = vmatprep.subr.bf16.mxu0 0
        %1014 = vmatpush1.bf16.msra.mxu0 0
        %1015 = vmatprep.subr.bf16.mxu0 0
        %1016 = vmatpush1.bf16.msra.mxu0 0
        %1017 = vmatprep.subr.bf16.mxu0 0
        %1018 = vmatpush1.bf16.msra.mxu0 0
        %1019 = vmatprep.subr.bf16.mxu0 0
        %1020 = vmatpush1.bf16.msra.mxu0 0
        %1021 = vmatprep.subr.bf16.mxu0 0
        %1022 = vmatpush1.bf16.msra.mxu0 0
        %1023 = vmatprep.subr.bf16.mxu0 0
        %1024 = vmatpush1.bf16.msra.mxu0 0
        %1025 = vmatprep.subr.bf16.mxu0 0
        %1026 = vmatpush1.bf16.msra.mxu0 0
        %1027 = vmatprep.subr.bf16.mxu0 0
        %1028 = vmatpush1.bf16.msra.mxu0 0
        %1029 = vmatprep.subr.bf16.mxu0 0
        %1030 = vmatpush1.bf16.msra.mxu0 0
        %1031 = vmatprep.subr.bf16.mxu0 0
        %1032 = vmatpush1.bf16.msra.mxu0 0
        %1033 = vmatprep.mubr.bf16.mxu0 0
        %1034 = vmatmul.mubr.bf16.gmra.mrb[0].mxu0 %v999
        %v1035 = vpop.f32.mrb[0].mxu0
        %v1036 = vadd.f32 %v984, %v1035
        %v1037 = vpop.f32.mrb[0].mxu0
        %v1038 = vpop.f32.mrb[0].mxu0
        %v1039 = vpop.f32.mrb[0].mxu0
        %1040 = vdwg.mxu0
        %1042 = vrot.lane.b32.xlu0 %v902, 120
        %v1043 = vpop.permute.xlu0 %1042
        %1045 = vrot.lane.b32.xlu0 %v902, 112
        %v1046 = vpop.permute.xlu0 %1045
        %1048 = vrot.lane.b32.xlu0 %v902, 104
        %v1049 = vpop.permute.xlu0 %1048
        %v1051 = vmul.f32 %v902, 0.35355338
        %v1052 = vmul.f32 %v1043, 0.35355338
        %v1053 = vmul.f32 %v1046, 0.35355338
        %v1054 = vmul.f32 %v1049, 0.35355338
        %1056 = vrot.lane.b32.xlu0 %v967, 120
        %v1057 = vpop.permute.xlu0 %1056
        %1059 = vrot.lane.b32.xlu0 %v967, 112
        %v1060 = vpop.permute.xlu0 %1059
        %1062 = vrot.lane.b32.xlu0 %v967, 104
        %v1063 = vpop.permute.xlu0 %1062
        %1066 = vrot.lane.b32.xlu0 %v1036, 120
        %v1067 = vpop.permute.xlu0 %1066
        %1069 = vrot.lane.b32.xlu0 %v1036, 112
        %v1070 = vpop.permute.xlu0 %1069
        %1072 = vrot.lane.b32.xlu0 %v1036, 104
        %v1073 = vpop.permute.xlu0 %1072
        %v1075 = vpack.c.bf16 %v1051, %v1051
        %v1076 = vpack.c.bf16 %v1052, %v1052
        %v1077 = vpack.c.bf16 %v1053, %v1053
        %v1078 = vpack.c.bf16 %v1054, %v1054
        %v1079 = vpack.c.bf16 %v967, %v967
        %v1080 = vpack.c.bf16 %v1057, %v1057
        %v1081 = vpack.c.bf16 %v1060, %v1060
        %v1082 = vpack.c.bf16 %v1063, %v1063
        %vm1083 = vcmask 64512
        %v1085 = vsel %vm1083, %v1075, 0
        %v1088 = vsel %vm1083, %v1079, 0
        %1090 = vmatprep.subr.bf16.mxu0 0
        %1091 = vmatpush1.bf16.xpose.msra.mxu0 %v1088
        %1092 = vmatprep.subr.bf16.mxu0 0
        %1093 = vmatpush1.bf16.xpose.msra.mxu0 0
        %1094 = vmatprep.subr.bf16.mxu0 0
        %1095 = vmatpush1.bf16.xpose.msra.mxu0 0
        %1096 = vmatprep.subr.bf16.mxu0 0
        %1097 = vmatpush1.bf16.xpose.msra.mxu0 0
        %1098 = vmatprep.subr.bf16.mxu0 0
        %1099 = vmatpush1.bf16.xpose.msra.mxu0 0
        %1100 = vmatprep.subr.bf16.mxu0 0
        %1101 = vmatpush1.bf16.xpose.msra.mxu0 0
        %1102 = vmatprep.subr.bf16.mxu0 0
        %1103 = vmatpush1.bf16.xpose.msra.mxu0 0
        %1104 = vmatprep.subr.bf16.mxu0 0
        %1105 = vmatpush1.bf16.xpose.msra.mxu0 0
        %1106 = vmatprep.subr.bf16.mxu0 0
        %1107 = vmatpush1.bf16.xpose.msra.mxu0 0
        %1108 = vmatprep.subr.bf16.mxu0 0
        %1109 = vmatpush1.bf16.xpose.msra.mxu0 0
        %1110 = vmatprep.subr.bf16.mxu0 0
        %1111 = vmatpush1.bf16.xpose.msra.mxu0 0
        %1112 = vmatprep.subr.bf16.mxu0 0
        %1113 = vmatpush1.bf16.xpose.msra.mxu0 0
        %1114 = vmatprep.subr.bf16.mxu0 0
        %1115 = vmatpush1.bf16.xpose.msra.mxu0 0
        %1116 = vmatprep.subr.bf16.mxu0 0
        %1117 = vmatpush1.bf16.xpose.msra.mxu0 0
        %1118 = vmatprep.subr.bf16.mxu0 0
        %1119 = vmatpush1.bf16.xpose.msra.mxu0 0
        %1120 = vmatprep.subr.bf16.mxu0 0
        %1121 = vmatpush1.bf16.xpose.msra.mxu0 0
        %1122 = vmatprep.mubr.bf16.mxu0 0
        %1123 = vmatmul.mubr.bf16.gmra.mrb[0].mxu0 %v1085
        %v1124 = vpop.f32.mrb[0].mxu0
        %v1125 = vadd.f32 0.0, %v1124
        %v1126 = vpop.f32.mrb[0].mxu0
        %v1127 = vpop.f32.mrb[0].mxu0
        %v1128 = vpop.f32.mrb[0].mxu0
        %1129 = vdwg.mxu0
        %v1131 = vsel %vm1083, %v1076, 0
        %v1134 = vsel %vm1083, %v1080, 0
        %1136 = vmatprep.subr.bf16.mxu0 0
        %1137 = vmatpush1.bf16.xpose.msra.mxu0 %v1134
        %1138 = vmatprep.subr.bf16.mxu0 0
        %1139 = vmatpush1.bf16.xpose.msra.mxu0 0
        %1140 = vmatprep.subr.bf16.mxu0 0
        %1141 = vmatpush1.bf16.xpose.msra.mxu0 0
        %1142 = vmatprep.subr.bf16.mxu0 0
        %1143 = vmatpush1.bf16.xpose.msra.mxu0 0
        %1144 = vmatprep.subr.bf16.mxu0 0
        %1145 = vmatpush1.bf16.xpose.msra.mxu0 0
        %1146 = vmatprep.subr.bf16.mxu0 0
        %1147 = vmatpush1.bf16.xpose.msra.mxu0 0
        %1148 = vmatprep.subr.bf16.mxu0 0
        %1149 = vmatpush1.bf16.xpose.msra.mxu0 0
        %1150 = vmatprep.subr.bf16.mxu0 0
        %1151 = vmatpush1.bf16.xpose.msra.mxu0 0
        %1152 = vmatprep.subr.bf16.mxu0 0
        %1153 = vmatpush1.bf16.xpose.msra.mxu0 0
        %1154 = vmatprep.subr.bf16.mxu0 0
        %1155 = vmatpush1.bf16.xpose.msra.mxu0 0
        %1156 = vmatprep.subr.bf16.mxu0 0
        %1157 = vmatpush1.bf16.xpose.msra.mxu0 0
        %1158 = vmatprep.subr.bf16.mxu0 0
        %1159 = vmatpush1.bf16.xpose.msra.mxu0 0
        %1160 = vmatprep.subr.bf16.mxu0 0
        %1161 = vmatpush1.bf16.xpose.msra.mxu0 0
        %1162 = vmatprep.subr.bf16.mxu0 0
        %1163 = vmatpush1.bf16.xpose.msra.mxu0 0
        %1164 = vmatprep.subr.bf16.mxu0 0
        %1165 = vmatpush1.bf16.xpose.msra.mxu0 0
        %1166 = vmatprep.subr.bf16.mxu0 0
        %1167 = vmatpush1.bf16.xpose.msra.mxu0 0
        %1168 = vmatprep.mubr.bf16.mxu0 0
        %1169 = vmatmul.mubr.bf16.gmra.mrb[0].mxu0 %v1131
        %v1170 = vpop.f32.mrb[0].mxu0
        %v1171 = vadd.f32 0.0, %v1170
        %v1172 = vpop.f32.mrb[0].mxu0
        %v1173 = vpop.f32.mrb[0].mxu0
        %v1174 = vpop.f32.mrb[0].mxu0
        %1175 = vdwg.mxu0
        %v1177 = vsel %vm1083, %v1077, 0
        %v1180 = vsel %vm1083, %v1081, 0
        %1182 = vmatprep.subr.bf16.mxu0 0
        %1183 = vmatpush1.bf16.xpose.msra.mxu0 %v1180
        %1184 = vmatprep.subr.bf16.mxu0 0
        %1185 = vmatpush1.bf16.xpose.msra.mxu0 0
        %1186 = vmatprep.subr.bf16.mxu0 0
        %1187 = vmatpush1.bf16.xpose.msra.mxu0 0
        %1188 = vmatprep.subr.bf16.mxu0 0
        %1189 = vmatpush1.bf16.xpose.msra.mxu0 0
        %1190 = vmatprep.subr.bf16.mxu0 0
        %1191 = vmatpush1.bf16.xpose.msra.mxu0 0
        %1192 = vmatprep.subr.bf16.mxu0 0
        %1193 = vmatpush1.bf16.xpose.msra.mxu0 0
        %1194 = vmatprep.subr.bf16.mxu0 0
        %1195 = vmatpush1.bf16.xpose.msra.mxu0 0
        %1196 = vmatprep.subr.bf16.mxu0 0
        %1197 = vmatpush1.bf16.xpose.msra.mxu0 0
        %1198 = vmatprep.subr.bf16.mxu0 0
        %1199 = vmatpush1.bf16.xpose.msra.mxu0 0
        %1200 = vmatprep.subr.bf16.mxu0 0
        %1201 = vmatpush1.bf16.xpose.msra.mxu0 0
        %1202 = vmatprep.subr.bf16.mxu0 0
        %1203 = vmatpush1.bf16.xpose.msra.mxu0 0
        %1204 = vmatprep.subr.bf16.mxu0 0
        %1205 = vmatpush1.bf16.xpose.msra.mxu0 0
        %1206 = vmatprep.subr.bf16.mxu0 0
        %1207 = vmatpush1.bf16.xpose.msra.mxu0 0
        %1208 = vmatprep.subr.bf16.mxu0 0
        %1209 = vmatpush1.bf16.xpose.msra.mxu0 0
        %1210 = vmatprep.subr.bf16.mxu0 0
        %1211 = vmatpush1.bf16.xpose.msra.mxu0 0
        %1212 = vmatprep.subr.bf16.mxu0 0
        %1213 = vmatpush1.bf16.xpose.msra.mxu0 0
        %1214 = vmatprep.mubr.bf16.mxu0 0
        %1215 = vmatmul.mubr.bf16.gmra.mrb[0].mxu0 %v1177
        %v1216 = vpop.f32.mrb[0].mxu0
        %v1217 = vadd.f32 0.0, %v1216
        %v1218 = vpop.f32.mrb[0].mxu0
        %v1219 = vpop.f32.mrb[0].mxu0
        %v1220 = vpop.f32.mrb[0].mxu0
        %1221 = vdwg.mxu0
        %v1223 = vsel %vm1083, %v1078, 0
        %v1226 = vsel %vm1083, %v1082, 0
        %1228 = vmatprep.subr.bf16.mxu0 0
        %1229 = vmatpush1.bf16.xpose.msra.mxu0 %v1226
        %1230 = vmatprep.subr.bf16.mxu0 0
        %1231 = vmatpush1.bf16.xpose.msra.mxu0 0
        %1232 = vmatprep.subr.bf16.mxu0 0
        %1233 = vmatpush1.bf16.xpose.msra.mxu0 0
        %1234 = vmatprep.subr.bf16.mxu0 0
        %1235 = vmatpush1.bf16.xpose.msra.mxu0 0
        %1236 = vmatprep.subr.bf16.mxu0 0
        %1237 = vmatpush1.bf16.xpose.msra.mxu0 0
        %1238 = vmatprep.subr.bf16.mxu0 0
        %1239 = vmatpush1.bf16.xpose.msra.mxu0 0
        %1240 = vmatprep.subr.bf16.mxu0 0
        %1241 = vmatpush1.bf16.xpose.msra.mxu0 0
        %1242 = vmatprep.subr.bf16.mxu0 0
        %1243 = vmatpush1.bf16.xpose.msra.mxu0 0
        %1244 = vmatprep.subr.bf16.mxu0 0
        %1245 = vmatpush1.bf16.xpose.msra.mxu0 0
        %1246 = vmatprep.subr.bf16.mxu0 0
        %1247 = vmatpush1.bf16.xpose.msra.mxu0 0
        %1248 = vmatprep.subr.bf16.mxu0 0
        %1249 = vmatpush1.bf16.xpose.msra.mxu0 0
        %1250 = vmatprep.subr.bf16.mxu0 0
        %1251 = vmatpush1.bf16.xpose.msra.mxu0 0
        %1252 = vmatprep.subr.bf16.mxu0 0
        %1253 = vmatpush1.bf16.xpose.msra.mxu0 0
        %1254 = vmatprep.subr.bf16.mxu0 0
        %1255 = vmatpush1.bf16.xpose.msra.mxu0 0
        %1256 = vmatprep.subr.bf16.mxu0 0
        %1257 = vmatpush1.bf16.xpose.msra.mxu0 0
        %1258 = vmatprep.subr.bf16.mxu0 0
        %1259 = vmatpush1.bf16.xpose.msra.mxu0 0
        %1260 = vmatprep.mubr.bf16.mxu0 0
        %1261 = vmatmul.mubr.bf16.gmra.mrb[0].mxu0 %v1223
        %v1262 = vpop.f32.mrb[0].mxu0
        %v1263 = vadd.f32 0.0, %v1262
        %v1264 = vpop.f32.mrb[0].mxu0
        %v1265 = vpop.f32.mrb[0].mxu0
        %v1266 = vpop.f32.mrb[0].mxu0
        %1267 = vdwg.mxu0
        %v1268 = vsel %vm1083, %v1125, -inf
        %1269 = vmax.xlane.f32.xlu0 %v1268
        %v1270 = vpop.xlane.xlu0 %1269
        %v1271 = vsel %vm1083, %v1171, -inf
        %1272 = vmax.xlane.f32.xlu0 %v1271
        %v1273 = vpop.xlane.xlu0 %1272
        %v1274 = vsel %vm1083, %v1217, -inf
        %1275 = vmax.xlane.f32.xlu0 %v1274
        %v1276 = vpop.xlane.xlu0 %1275
        %v1277 = vsel %vm1083, %v1263, -inf
        %1278 = vmax.xlane.f32.xlu0 %v1277
        %v1279 = vpop.xlane.xlu0 %1278
        %v1280 = vsub.f32 %v1125, %v1270
        %v1281 = vsub.f32 %v1171, %v1273
        %v1282 = vsub.f32 %v1217, %v1276
        %v1283 = vsub.f32 %v1263, %v1279
        %v1284 = vmul.f32 %v1280, 1.442695
        %v1285 = vpow.pop %v1284
        %v1286 = vmul.f32 %v1281, 1.442695
        %v1287 = vpow.pop %v1286
        %v1288 = vmul.f32 %v1282, 1.442695
        %v1289 = vpow.pop %v1288
        %v1290 = vmul.f32 %v1283, 1.442695
        %v1291 = vpow.pop %v1290
        %v1292 = vsel %vm1083, %v1285, 0.0
        %1293 = vadd.xlane.f32.xlu0 %v1292
        %v1294 = vpop.xlane.xlu0 %1293
        %v1295 = vsel %vm1083, %v1287, 0.0
        %1296 = vadd.xlane.f32.xlu0 %v1295
        %v1297 = vpop.xlane.xlu0 %1296
        %v1298 = vsel %vm1083, %v1289, 0.0
        %1299 = vadd.xlane.f32.xlu0 %v1298
        %v1300 = vpop.xlane.xlu0 %1299
        %v1301 = vsel %vm1083, %v1291, 0.0
        %1302 = vadd.xlane.f32.xlu0 %v1301
        %v1303 = vpop.xlane.xlu0 %1302
        %v1304 = vrcp.pop %v1294
        %v1305 = vmul.f32 %v1285, %v1304
        %v1306 = vrcp.pop %v1297
        %v1307 = vmul.f32 %v1287, %v1306
        %v1308 = vrcp.pop %v1300
        %v1309 = vmul.f32 %v1289, %v1308
        %v1310 = vrcp.pop %v1303
        %v1311 = vmul.f32 %v1291, %v1310
        %v1312 = vpack.c.bf16 %v1305, %v1305
        %v1313 = vpack.c.bf16 %v1307, %v1307
        %v1314 = vpack.c.bf16 %v1309, %v1309
        %v1315 = vpack.c.bf16 %v1311, %v1311
        %v1316 = vpack.c.bf16 %v1036, %v1036
        %v1317 = vpack.c.bf16 %v1067, %v1067
        %v1318 = vpack.c.bf16 %v1070, %v1070
        %v1319 = vpack.c.bf16 %v1073, %v1073
        %v1321 = vsel %vm1083, %v1312, 0
        %vm1323 = vcmask 1043456
        %v1325 = vsel %vm1323, %v1316, 0
        %1327 = vmatprep.subr.bf16.mxu0 0
        %1328 = vmatpush1.bf16.msra.mxu0 %v1325
        %1329 = vmatprep.subr.bf16.mxu0 0
        %1330 = vmatpush1.bf16.msra.mxu0 0
        %1331 = vmatprep.subr.bf16.mxu0 0
        %1332 = vmatpush1.bf16.msra.mxu0 0
        %1333 = vmatprep.subr.bf16.mxu0 0
        %1334 = vmatpush1.bf16.msra.mxu0 0
        %1335 = vmatprep.subr.bf16.mxu0 0
        %1336 = vmatpush1.bf16.msra.mxu0 0
        %1337 = vmatprep.subr.bf16.mxu0 0
        %1338 = vmatpush1.bf16.msra.mxu0 0
        %1339 = vmatprep.subr.bf16.mxu0 0
        %1340 = vmatpush1.bf16.msra.mxu0 0
        %1341 = vmatprep.subr.bf16.mxu0 0
        %1342 = vmatpush1.bf16.msra.mxu0 0
        %1343 = vmatprep.subr.bf16.mxu0 0
        %1344 = vmatpush1.bf16.msra.mxu0 0
        %1345 = vmatprep.subr.bf16.mxu0 0
        %1346 = vmatpush1.bf16.msra.mxu0 0
        %1347 = vmatprep.subr.bf16.mxu0 0
        %1348 = vmatpush1.bf16.msra.mxu0 0
        %1349 = vmatprep.subr.bf16.mxu0 0
        %1350 = vmatpush1.bf16.msra.mxu0 0
        %1351 = vmatprep.subr.bf16.mxu0 0
        %1352 = vmatpush1.bf16.msra.mxu0 0
        %1353 = vmatprep.subr.bf16.mxu0 0
        %1354 = vmatpush1.bf16.msra.mxu0 0
        %1355 = vmatprep.subr.bf16.mxu0 0
        %1356 = vmatpush1.bf16.msra.mxu0 0
        %1357 = vmatprep.subr.bf16.mxu0 0
        %1358 = vmatpush1.bf16.msra.mxu0 0
        %1359 = vmatprep.mubr.bf16.mxu0 0
        %1360 = vmatmul.mubr.bf16.gmra.mrb[0].mxu0 %v1321
        %v1361 = vpop.f32.mrb[0].mxu0
        %v1362 = vadd.f32 0.0, %v1361
        %v1363 = vpop.f32.mrb[0].mxu0
        %v1364 = vpop.f32.mrb[0].mxu0
        %v1365 = vpop.f32.mrb[0].mxu0
        %1366 = vdwg.mxu0
        %v1368 = vsel %vm1083, %v1313, 0
        %v1371 = vsel %vm1323, %v1317, 0
        %1373 = vmatprep.subr.bf16.mxu0 0
        %1374 = vmatpush1.bf16.msra.mxu0 %v1371
        %1375 = vmatprep.subr.bf16.mxu0 0
        %1376 = vmatpush1.bf16.msra.mxu0 0
        %1377 = vmatprep.subr.bf16.mxu0 0
        %1378 = vmatpush1.bf16.msra.mxu0 0
        %1379 = vmatprep.subr.bf16.mxu0 0
        %1380 = vmatpush1.bf16.msra.mxu0 0
        %1381 = vmatprep.subr.bf16.mxu0 0
        %1382 = vmatpush1.bf16.msra.mxu0 0
        %1383 = vmatprep.subr.bf16.mxu0 0
        %1384 = vmatpush1.bf16.msra.mxu0 0
        %1385 = vmatprep.subr.bf16.mxu0 0
        %1386 = vmatpush1.bf16.msra.mxu0 0
        %1387 = vmatprep.subr.bf16.mxu0 0
        %1388 = vmatpush1.bf16.msra.mxu0 0
        %1389 = vmatprep.subr.bf16.mxu0 0
        %1390 = vmatpush1.bf16.msra.mxu0 0
        %1391 = vmatprep.subr.bf16.mxu0 0
        %1392 = vmatpush1.bf16.msra.mxu0 0
        %1393 = vmatprep.subr.bf16.mxu0 0
        %1394 = vmatpush1.bf16.msra.mxu0 0
        %1395 = vmatprep.subr.bf16.mxu0 0
        %1396 = vmatpush1.bf16.msra.mxu0 0
        %1397 = vmatprep.subr.bf16.mxu0 0
        %1398 = vmatpush1.bf16.msra.mxu0 0
        %1399 = vmatprep.subr.bf16.mxu0 0
        %1400 = vmatpush1.bf16.msra.mxu0 0
        %1401 = vmatprep.subr.bf16.mxu0 0
        %1402 = vmatpush1.bf16.msra.mxu0 0
        %1403 = vmatprep.subr.bf16.mxu0 0
        %1404 = vmatpush1.bf16.msra.mxu0 0
        %1405 = vmatprep.mubr.bf16.mxu0 0
        %1406 = vmatmul.mubr.bf16.gmra.mrb[0].mxu0 %v1368
        %v1407 = vpop.f32.mrb[0].mxu0
        %v1408 = vadd.f32 0.0, %v1407
        %v1409 = vpop.f32.mrb[0].mxu0
        %v1410 = vpop.f32.mrb[0].mxu0
        %v1411 = vpop.f32.mrb[0].mxu0
        %1412 = vdwg.mxu0
        %v1414 = vsel %vm1083, %v1314, 0
        %v1417 = vsel %vm1323, %v1318, 0
        %1419 = vmatprep.subr.bf16.mxu0 0
        %1420 = vmatpush1.bf16.msra.mxu0 %v1417
        %1421 = vmatprep.subr.bf16.mxu0 0
        %1422 = vmatpush1.bf16.msra.mxu0 0
        %1423 = vmatprep.subr.bf16.mxu0 0
        %1424 = vmatpush1.bf16.msra.mxu0 0
        %1425 = vmatprep.subr.bf16.mxu0 0
        %1426 = vmatpush1.bf16.msra.mxu0 0
        %1427 = vmatprep.subr.bf16.mxu0 0
        %1428 = vmatpush1.bf16.msra.mxu0 0
        %1429 = vmatprep.subr.bf16.mxu0 0
        %1430 = vmatpush1.bf16.msra.mxu0 0
        %1431 = vmatprep.subr.bf16.mxu0 0
        %1432 = vmatpush1.bf16.msra.mxu0 0
        %1433 = vmatprep.subr.bf16.mxu0 0
        %1434 = vmatpush1.bf16.msra.mxu0 0
        %1435 = vmatprep.subr.bf16.mxu0 0
        %1436 = vmatpush1.bf16.msra.mxu0 0
        %1437 = vmatprep.subr.bf16.mxu0 0
        %1438 = vmatpush1.bf16.msra.mxu0 0
        %1439 = vmatprep.subr.bf16.mxu0 0
        %1440 = vmatpush1.bf16.msra.mxu0 0
        %1441 = vmatprep.subr.bf16.mxu0 0
        %1442 = vmatpush1.bf16.msra.mxu0 0
        %1443 = vmatprep.subr.bf16.mxu0 0
        %1444 = vmatpush1.bf16.msra.mxu0 0
        %1445 = vmatprep.subr.bf16.mxu0 0
        %1446 = vmatpush1.bf16.msra.mxu0 0
        %1447 = vmatprep.subr.bf16.mxu0 0
        %1448 = vmatpush1.bf16.msra.mxu0 0
        %1449 = vmatprep.subr.bf16.mxu0 0
        %1450 = vmatpush1.bf16.msra.mxu0 0
        %1451 = vmatprep.mubr.bf16.mxu0 0
        %1452 = vmatmul.mubr.bf16.gmra.mrb[0].mxu0 %v1414
        %v1453 = vpop.f32.mrb[0].mxu0
        %v1454 = vadd.f32 0.0, %v1453
        %v1455 = vpop.f32.mrb[0].mxu0
        %v1456 = vpop.f32.mrb[0].mxu0
        %v1457 = vpop.f32.mrb[0].mxu0
        %1458 = vdwg.mxu0
        %v1460 = vsel %vm1083, %v1315, 0
        %v1463 = vsel %vm1323, %v1319, 0
        %1465 = vmatprep.subr.bf16.mxu0 0
        %1466 = vmatpush1.bf16.msra.mxu0 %v1463
        %1467 = vmatprep.subr.bf16.mxu0 0
        %1468 = vmatpush1.bf16.msra.mxu0 0
        %1469 = vmatprep.subr.bf16.mxu0 0
        %1470 = vmatpush1.bf16.msra.mxu0 0
        %1471 = vmatprep.subr.bf16.mxu0 0
        %1472 = vmatpush1.bf16.msra.mxu0 0
        %1473 = vmatprep.subr.bf16.mxu0 0
        %1474 = vmatpush1.bf16.msra.mxu0 0
        %1475 = vmatprep.subr.bf16.mxu0 0
        %1476 = vmatpush1.bf16.msra.mxu0 0
        %1477 = vmatprep.subr.bf16.mxu0 0
        %1478 = vmatpush1.bf16.msra.mxu0 0
        %1479 = vmatprep.subr.bf16.mxu0 0
        %1480 = vmatpush1.bf16.msra.mxu0 0
        %1481 = vmatprep.subr.bf16.mxu0 0
        %1482 = vmatpush1.bf16.msra.mxu0 0
        %1483 = vmatprep.subr.bf16.mxu0 0
        %1484 = vmatpush1.bf16.msra.mxu0 0
        %1485 = vmatprep.subr.bf16.mxu0 0
        %1486 = vmatpush1.bf16.msra.mxu0 0
        %1487 = vmatprep.subr.bf16.mxu0 0
        %1488 = vmatpush1.bf16.msra.mxu0 0
        %1489 = vmatprep.subr.bf16.mxu0 0
        %1490 = vmatpush1.bf16.msra.mxu0 0
        %1491 = vmatprep.subr.bf16.mxu0 0
        %1492 = vmatpush1.bf16.msra.mxu0 0
        %1493 = vmatprep.subr.bf16.mxu0 0
        %1494 = vmatpush1.bf16.msra.mxu0 0
        %1495 = vmatprep.subr.bf16.mxu0 0
        %1496 = vmatpush1.bf16.msra.mxu0 0
        %1497 = vmatprep.mubr.bf16.mxu0 0
        %1498 = vmatmul.mubr.bf16.gmra.mrb[0].mxu0 %v1460
        %v1499 = vpop.f32.mrb[0].mxu0
        %v1500 = vadd.f32 0.0, %v1499
        %v1501 = vpop.f32.mrb[0].mxu0
        %v1502 = vpop.f32.mrb[0].mxu0
        %v1503 = vpop.f32.mrb[0].mxu0
        %1504 = vdwg.mxu0
        %1505 = vst.msk [vmem:[#allocation2] sm:$0xff] %vm1083, %v1362
        %1507 = vrot.lane.b32.xlu0 %v1408, 8
        %v1508 = vpop.permute.xlu0 %1507
        %vm1510 = vcmask 130112
        %1511 = vst.msk [vmem:[#allocation2] sm:$0xff] %vm1510, %v1508
        %1513 = vrot.lane.b32.xlu0 %v1454, 16
        %v1514 = vpop.permute.xlu0 %1513
        %vm1516 = vcmask 195712
        %1517 = vst.msk [vmem:[#allocation2] sm:$0xff] %vm1516, %v1514
        %1519 = vrot.lane.b32.xlu0 %v1500, 24
        %v1520 = vpop.permute.xlu0 %1519
        %vm1522 = vcmask 261312
        %1523 = vst.msk [vmem:[#allocation2] sm:$0xff] %vm1522, %v1520
        %v1524 = vld [vmem:[#allocation2] sm:$0xff]
        %v1525 = vpack.c.bf16 %v1524, %v1524
        %v1526 = vld [vmem:[%s812] sm:$0xf]
        %v1527 = vld [vmem:[%s812 + $0x4] sm:$0xf]
        %v1528 = vld [vmem:[%s812 + $0x8] sm:$0xf]
        %v1529 = vld [vmem:[%s812 + $0xc] sm:$0xf]
        %v1530 = vld [vmem:[%s816] sm:$0x1]
        %v1532 = vlaneseq
        %v1533 = vshrl.u32 %v1532, 7
        %v1534 = vsub.s32 0, %v1533
        %v1535 = vrot.slane %v1530, %v1534
        %v1541 = vunpack.c.l.b16 %v1526
        %v1542 = vunpack.c.l.b16 %v1527
        %v1543 = vunpack.c.l.b16 %v1528
        %v1544 = vunpack.c.l.b16 %v1529
        %v1545 = vpack.c.b16 %v1542, %v1541
        %v1546 = vpack.c.b16 %v1544, %v1543
        %v1550 = vsel %vm863, %v1525, 0
        %1552 = vmatprep.subr.bf16.mxu0 0
        %1553 = vmatpush1.bf16.msra.mxu0 %v1545
        %1554 = vmatprep.subr.bf16.mxu0 0
        %1555 = vmatpush1.bf16.msra.mxu0 %v1546
        %1556 = vmatprep.subr.bf16.mxu0 0
        %1557 = vmatpush1.bf16.msra.mxu0 0
        %1558 = vmatprep.subr.bf16.mxu0 0
        %1559 = vmatpush1.bf16.msra.mxu0 0
        %1560 = vmatprep.subr.bf16.mxu0 0
        %1561 = vmatpush1.bf16.msra.mxu0 0
        %1562 = vmatprep.subr.bf16.mxu0 0
        %1563 = vmatpush1.bf16.msra.mxu0 0
        %1564 = vmatprep.subr.bf16.mxu0 0
        %1565 = vmatpush1.bf16.msra.mxu0 0
        %1566 = vmatprep.subr.bf16.mxu0 0
        %1567 = vmatpush1.bf16.msra.mxu0 0
        %1568 = vmatprep.subr.bf16.mxu0 0
        %1569 = vmatpush1.bf16.msra.mxu0 0
        %1570 = vmatprep.subr.bf16.mxu0 0
        %1571 = vmatpush1.bf16.msra.mxu0 0
        %1572 = vmatprep.subr.bf16.mxu0 0
        %1573 = vmatpush1.bf16.msra.mxu0 0
        %1574 = vmatprep.subr.bf16.mxu0 0
        %1575 = vmatpush1.bf16.msra.mxu0 0
        %1576 = vmatprep.subr.bf16.mxu0 0
        %1577 = vmatpush1.bf16.msra.mxu0 0
        %1578 = vmatprep.subr.bf16.mxu0 0
        %1579 = vmatpush1.bf16.msra.mxu0 0
        %1580 = vmatprep.subr.bf16.mxu0 0
        %1581 = vmatpush1.bf16.msra.mxu0 0
        %1582 = vmatprep.subr.bf16.mxu0 0
        %1583 = vmatpush1.bf16.msra.mxu0 0
        %1584 = vmatprep.mubr.bf16.mxu0 0
        %1585 = vmatmul.mubr.bf16.gmra.mrb[0].mxu0 %v1550
        %v1586 = vpop.f32.mrb[0].mxu0
        %v1587 = vadd.f32 %v1535, %v1586
        %v1588 = vpop.f32.mrb[0].mxu0
        %v1589 = vpop.f32.mrb[0].mxu0
        %v1590 = vpop.f32.mrb[0].mxu0
        %1591 = vdwg.mxu0
        %v1592 = vadd.f32 %v836, %v1587
        %v1593 = vld [vmem:[%s694] sm:$0x1]
        %s1594 = scalar_lea.vmem %s694, 1 [#allocation12]
        %v1595 = vld [vmem:[%s1594] sm:$0x1]
        %v1596 = vsel %vm863, %v1592, 0.0
        %1597 = vadd.xlane.f32.xlu0 %v1596
        %v1598 = vpop.xlane.xlu0 %1597
        %v1599 = vrcp.pop 32.0
        %v1600 = vmul.f32 %v1598, %v1599
        %v1601 = vsub.f32 %v1592, %v1600
        %v1602 = vmul.f32 %v1601, %v1601
        %v1603 = vsel %vm863, %v1602, 0.0
        %1604 = vadd.xlane.f32.xlu0 %v1603
        %v1605 = vpop.xlane.xlu0 %1604
        %v1606 = vmul.f32 %v1605, %v1599
        %v1607 = vadd.f32 %v1606, 1e-05
        %v1608 = vrsqrt.pop %v1607
        %v1609 = vmul.f32 %v1601, %v1608
        %v1611 = vlaneseq
        %v1612 = vshrl.u32 %v1611, 7
        %v1613 = vsub.s32 0, %v1612
        %v1614 = vrot.slane %v1593, %v1613
        %v1616 = vmul.f32 %v1609, %v1614
        %v1618 = vlaneseq
        %v1619 = vshrl.u32 %v1618, 7
        %v1620 = vsub.s32 0, %v1619
        %v1621 = vrot.slane %v1595, %v1620
        %v1623 = vadd.f32 %v1616, %v1621
        %v1624 = vld [vmem:[%s807] sm:$0xff]
        %v1625 = vld [vmem:[%s807 + $0x8] sm:$0xff]
        %v1626 = vld [vmem:[%s667] sm:$0xff]
        %v1627 = vld [vmem:[%s667 + $0x8] sm:$0xff]
        %v1628 = vadd.f32 %v1624, %v1626
        %v1629 = vadd.f32 %v1625, %v1627
        %v1630 = vadd.f32 %v1623, %v837
        %v1631 = vpack.c.bf16 %v1630, %v1630
        %s1632 = scalar_lea.vmem %s676, 48 [#allocation9]
        %v1633 = vld [vmem:[%s1632] sm:$0xf]
        %v1634 = vld [vmem:[%s1632 + $0x4] sm:$0xf]
        %v1635 = vld [vmem:[%s1632 + $0x8] sm:$0xf]
        %v1636 = vld [vmem:[%s1632 + $0xc] sm:$0xf]
        %s1637 = scalar_lea.vmem %s685, 3 [#allocation11]
        %v1638 = vld [vmem:[%s1637] sm:$0x1]
        %v1640 = vlaneseq
        %v1641 = vshrl.u32 %v1640, 7
        %v1642 = vsub.s32 0, %v1641
        %v1643 = vrot.slane %v1638, %v1642
        %v1649 = vunpack.c.l.b16 %v1633
        %v1650 = vunpack.c.l.b16 %v1634
        %v1651 = vunpack.c.l.b16 %v1635
        %v1652 = vunpack.c.l.b16 %v1636
        %v1653 = vpack.c.b16 %v1650, %v1649
        %v1654 = vpack.c.b16 %v1652, %v1651
        %v1658 = vsel %vm863, %v1631, 0
        %1660 = vmatprep.subr.bf16.mxu0 0
        %1661 = vmatpush1.bf16.msra.mxu0 %v1653
        %1662 = vmatprep.subr.bf16.mxu0 0
        %1663 = vmatpush1.bf16.msra.mxu0 %v1654
        %1664 = vmatprep.subr.bf16.mxu0 0
        %1665 = vmatpush1.bf16.msra.mxu0 0
        %1666 = vmatprep.subr.bf16.mxu0 0
        %1667 = vmatpush1.bf16.msra.mxu0 0
        %1668 = vmatprep.subr.bf16.mxu0 0
        %1669 = vmatpush1.bf16.msra.mxu0 0
        %1670 = vmatprep.subr.bf16.mxu0 0
        %1671 = vmatpush1.bf16.msra.mxu0 0
        %1672 = vmatprep.subr.bf16.mxu0 0
        %1673 = vmatpush1.bf16.msra.mxu0 0
        %1674 = vmatprep.subr.bf16.mxu0 0
        %1675 = vmatpush1.bf16.msra.mxu0 0
        %1676 = vmatprep.subr.bf16.mxu0 0
        %1677 = vmatpush1.bf16.msra.mxu0 0
        %1678 = vmatprep.subr.bf16.mxu0 0
        %1679 = vmatpush1.bf16.msra.mxu0 0
        %1680 = vmatprep.subr.bf16.mxu0 0
        %1681 = vmatpush1.bf16.msra.mxu0 0
        %1682 = vmatprep.subr.bf16.mxu0 0
        %1683 = vmatpush1.bf16.msra.mxu0 0
        %1684 = vmatprep.subr.bf16.mxu0 0
        %1685 = vmatpush1.bf16.msra.mxu0 0
        %1686 = vmatprep.subr.bf16.mxu0 0
        %1687 = vmatpush1.bf16.msra.mxu0 0
        %1688 = vmatprep.subr.bf16.mxu0 0
        %1689 = vmatpush1.bf16.msra.mxu0 0
        %1690 = vmatprep.subr.bf16.mxu0 0
        %1691 = vmatpush1.bf16.msra.mxu0 0
        %1692 = vmatprep.mubr.bf16.mxu0 0
        %1693 = vmatmul.mubr.bf16.gmra.mrb[0].mxu0 %v1658
        %v1694 = vpop.f32.mrb[0].mxu0
        %v1695 = vadd.f32 %v1643, %v1694
        %v1696 = vpop.f32.mrb[0].mxu0
        %v1697 = vpop.f32.mrb[0].mxu0
        %v1698 = vpop.f32.mrb[0].mxu0
        %1699 = vdwg.mxu0
        %v1700 = vpack.c.bf16 %v1629, %v1628
        %s1701 = scalar_lea.vmem %s676, 64 [#allocation9]
        %v1702 = vld [vmem:[%s1701] sm:$0xf]
        %v1703 = vld [vmem:[%s1701 + $0x4] sm:$0xf]
        %v1704 = vld [vmem:[%s1701 + $0x8] sm:$0xf]
        %v1705 = vld [vmem:[%s1701 + $0xc] sm:$0xf]
        %s1706 = scalar_lea.vmem %s685, 4 [#allocation11]
        %v1707 = vld [vmem:[%s1706] sm:$0x1]
        %v1709 = vlaneseq
        %v1710 = vshrl.u32 %v1709, 7
        %v1711 = vsub.s32 0, %v1710
        %v1712 = vrot.slane %v1707, %v1711
        %v1718 = vunpack.c.l.b16 %v1702
        %v1719 = vunpack.c.l.b16 %v1703
        %v1720 = vunpack.c.l.b16 %v1704
        %v1721 = vunpack.c.l.b16 %v1705
        %v1722 = vpack.c.b16 %v1719, %v1718
        %v1723 = vpack.c.b16 %v1721, %v1720
        %v1727 = vsel %vm863, %v1700, 0
        %1729 = vmatprep.subr.bf16.mxu0 0
        %1730 = vmatpush1.bf16.msra.mxu0 %v1722
        %1731 = vmatprep.subr.bf16.mxu0 0
        %1732 = vmatpush1.bf16.msra.mxu0 %v1723
        %1733 = vmatprep.subr.bf16.mxu0 0
        %1734 = vmatpush1.bf16.msra.mxu0 0
        %1735 = vmatprep.subr.bf16.mxu0 0
        %1736 = vmatpush1.bf16.msra.mxu0 0
        %1737 = vmatprep.subr.bf16.mxu0 0
        %1738 = vmatpush1.bf16.msra.mxu0 0
        %1739 = vmatprep.subr.bf16.mxu0 0
        %1740 = vmatpush1.bf16.msra.mxu0 0
        %1741 = vmatprep.subr.bf16.mxu0 0
        %1742 = vmatpush1.bf16.msra.mxu0 0
        %1743 = vmatprep.subr.bf16.mxu0 0
        %1744 = vmatpush1.bf16.msra.mxu0 0
        %1745 = vmatprep.subr.bf16.mxu0 0
        %1746 = vmatpush1.bf16.msra.mxu0 0
        %1747 = vmatprep.subr.bf16.mxu0 0
        %1748 = vmatpush1.bf16.msra.mxu0 0
        %1749 = vmatprep.subr.bf16.mxu0 0
        %1750 = vmatpush1.bf16.msra.mxu0 0
        %1751 = vmatprep.subr.bf16.mxu0 0
        %1752 = vmatpush1.bf16.msra.mxu0 0
        %1753 = vmatprep.subr.bf16.mxu0 0
        %1754 = vmatpush1.bf16.msra.mxu0 0
        %1755 = vmatprep.subr.bf16.mxu0 0
        %1756 = vmatpush1.bf16.msra.mxu0 0
        %1757 = vmatprep.subr.bf16.mxu0 0
        %1758 = vmatpush1.bf16.msra.mxu0 0
        %1759 = vmatprep.subr.bf16.mxu0 0
        %1760 = vmatpush1.bf16.msra.mxu0 0
        %1761 = vmatprep.mubr.bf16.mxu0 0
        %1762 = vmatmul.mubr.bf16.gmra.mrb[0].mxu0 %v1727
        %v1763 = vpop.f32.mrb[0].mxu0
        %v1764 = vadd.f32 %v1712, %v1763
        %v1765 = vpop.f32.mrb[0].mxu0
        %v1766 = vpop.f32.mrb[0].mxu0
        %v1767 = vadd.f32 %v1712, %v1766
        %v1768 = vpop.f32.mrb[0].mxu0
        %1769 = vdwg.mxu0
        %v1770 = vpack.c.bf16 %v1625, %v1624
        %s1771 = scalar_lea.vmem %s676, 80 [#allocation9]
        %v1772 = vld [vmem:[%s1771] sm:$0xf]
        %v1773 = vld [vmem:[%s1771 + $0x4] sm:$0xf]
        %v1774 = vld [vmem:[%s1771 + $0x8] sm:$0xf]
        %v1775 = vld [vmem:[%s1771 + $0xc] sm:$0xf]
        %s1776 = scalar_lea.vmem %s685, 5 [#allocation11]
        %v1777 = vld [vmem:[%s1776] sm:$0x1]
        %v1779 = vlaneseq
        %v1780 = vshrl.u32 %v1779, 7
        %v1781 = vsub.s32 0, %v1780
        %v1782 = vrot.slane %v1777, %v1781
        %v1788 = vunpack.c.l.b16 %v1772
        %v1789 = vunpack.c.l.b16 %v1773
        %v1790 = vunpack.c.l.b16 %v1774
        %v1791 = vunpack.c.l.b16 %v1775
        %v1792 = vpack.c.b16 %v1789, %v1788
        %v1793 = vpack.c.b16 %v1791, %v1790
        %v1797 = vsel %vm863, %v1770, 0
        %1799 = vmatprep.subr.bf16.mxu0 0
        %1800 = vmatpush1.bf16.msra.mxu0 %v1792
        %1801 = vmatprep.subr.bf16.mxu0 0
        %1802 = vmatpush1.bf16.msra.mxu0 %v1793
        %1803 = vmatprep.subr.bf16.mxu0 0
        %1804 = vmatpush1.bf16.msra.mxu0 0
        %1805 = vmatprep.subr.bf16.mxu0 0
        %1806 = vmatpush1.bf16.msra.mxu0 0
        %1807 = vmatprep.subr.bf16.mxu0 0
        %1808 = vmatpush1.bf16.msra.mxu0 0
        %1809 = vmatprep.subr.bf16.mxu0 0
        %1810 = vmatpush1.bf16.msra.mxu0 0
        %1811 = vmatprep.subr.bf16.mxu0 0
        %1812 = vmatpush1.bf16.msra.mxu0 0
        %1813 = vmatprep.subr.bf16.mxu0 0
        %1814 = vmatpush1.bf16.msra.mxu0 0
        %1815 = vmatprep.subr.bf16.mxu0 0
        %1816 = vmatpush1.bf16.msra.mxu0 0
        %1817 = vmatprep.subr.bf16.mxu0 0
        %1818 = vmatpush1.bf16.msra.mxu0 0
        %1819 = vmatprep.subr.bf16.mxu0 0
        %1820 = vmatpush1.bf16.msra.mxu0 0
        %1821 = vmatprep.subr.bf16.mxu0 0
        %1822 = vmatpush1.bf16.msra.mxu0 0
        %1823 = vmatprep.subr.bf16.mxu0 0
        %1824 = vmatpush1.bf16.msra.mxu0 0
        %1825 = vmatprep.subr.bf16.mxu0 0
        %1826 = vmatpush1.bf16.msra.mxu0 0
        %1827 = vmatprep.subr.bf16.mxu0 0
        %1828 = vmatpush1.bf16.msra.mxu0 0
        %1829 = vmatprep.subr.bf16.mxu0 0
        %1830 = vmatpush1.bf16.msra.mxu0 0
        %1831 = vmatprep.mubr.bf16.mxu0 0
        %1832 = vmatmul.mubr.bf16.gmra.mrb[0].mxu0 %v1797
        %v1833 = vpop.f32.mrb[0].mxu0
        %v1834 = vadd.f32 %v1782, %v1833
        %v1835 = vpop.f32.mrb[0].mxu0
        %v1836 = vpop.f32.mrb[0].mxu0
        %v1837 = vadd.f32 %v1782, %v1836
        %v1838 = vpop.f32.mrb[0].mxu0
        %1839 = vdwg.mxu0
        %1841 = vrot.lane.b32.xlu0 %v1695, 120
        %v1842 = vpop.permute.xlu0 %1841
        %1844 = vrot.lane.b32.xlu0 %v1695, 112
        %v1845 = vpop.permute.xlu0 %1844
        %1847 = vrot.lane.b32.xlu0 %v1695, 104
        %v1848 = vpop.permute.xlu0 %1847
        %v1850 = vmul.f32 %v1695, 0.35355338
        %v1851 = vmul.f32 %v1842, 0.35355338
        %v1852 = vmul.f32 %v1845, 0.35355338
        %v1853 = vmul.f32 %v1848, 0.35355338
        %1856 = vrot.lane.b32.xlu0 %v1764, 120
        %v1857 = vpop.permute.xlu0 %1856
        %1858 = vrot.lane.b32.xlu0 %v1767, 120
        %v1859 = vpop.permute.xlu0 %1858
        %1862 = vrot.lane.b32.xlu0 %v1764, 112
        %v1863 = vpop.permute.xlu0 %1862
        %1864 = vrot.lane.b32.xlu0 %v1767, 112
        %v1865 = vpop.permute.xlu0 %1864
        %1868 = vrot.lane.b32.xlu0 %v1764, 104
        %v1869 = vpop.permute.xlu0 %1868
        %1870 = vrot.lane.b32.xlu0 %v1767, 104
        %v1871 = vpop.permute.xlu0 %1870
        %1876 = vrot.lane.b32.xlu0 %v1834, 120
        %v1877 = vpop.permute.xlu0 %1876
        %1878 = vrot.lane.b32.xlu0 %v1837, 120
        %v1879 = vpop.permute.xlu0 %1878
        %1882 = vrot.lane.b32.xlu0 %v1834, 112
        %v1883 = vpop.permute.xlu0 %1882
        %1884 = vrot.lane.b32.xlu0 %v1837, 112
        %v1885 = vpop.permute.xlu0 %1884
        %1888 = vrot.lane.b32.xlu0 %v1834, 104
        %v1889 = vpop.permute.xlu0 %1888
        %1890 = vrot.lane.b32.xlu0 %v1837, 104
        %v1891 = vpop.permute.xlu0 %1890
        %v1894 = vpack.c.bf16 %v1850, %v1850
        %v1895 = vpack.c.bf16 %v1851, %v1851
        %v1896 = vpack.c.bf16 %v1852, %v1852
        %v1897 = vpack.c.bf16 %v1853, %v1853
        %v1898 = vpack.c.bf16 %v1767, %v1764
        %v1899 = vpack.c.bf16 %v1859, %v1857
        %v1900 = vpack.c.bf16 %v1865, %v1863
        %v1901 = vpack.c.bf16 %v1871, %v1869
        %v1903 = vsel %vm1083, %v1894, 0
        %v1906 = vsel %vm1083, %v1898, 0
        %1908 = vmatprep.subr.bf16.mxu0 0
        %1909 = vmatpush1.bf16.xpose.msra.mxu0 %v1906
        %1910 = vmatprep.subr.bf16.mxu0 0
        %1911 = vmatpush1.bf16.xpose.msra.mxu0 0
        %1912 = vmatprep.subr.bf16.mxu0 0
        %1913 = vmatpush1.bf16.xpose.msra.mxu0 0
        %1914 = vmatprep.subr.bf16.mxu0 0
        %1915 = vmatpush1.bf16.xpose.msra.mxu0 0
        %1916 = vmatprep.subr.bf16.mxu0 0
        %1917 = vmatpush1.bf16.xpose.msra.mxu0 0
        %1918 = vmatprep.subr.bf16.mxu0 0
        %1919 = vmatpush1.bf16.xpose.msra.mxu0 0
        %1920 = vmatprep.subr.bf16.mxu0 0
        %1921 = vmatpush1.bf16.xpose.msra.mxu0 0
        %1922 = vmatprep.subr.bf16.mxu0 0
        %1923 = vmatpush1.bf16.xpose.msra.mxu0 0
        %1924 = vmatprep.subr.bf16.mxu0 0
        %1925 = vmatpush1.bf16.xpose.msra.mxu0 0
        %1926 = vmatprep.subr.bf16.mxu0 0
        %1927 = vmatpush1.bf16.xpose.msra.mxu0 0
        %1928 = vmatprep.subr.bf16.mxu0 0
        %1929 = vmatpush1.bf16.xpose.msra.mxu0 0
        %1930 = vmatprep.subr.bf16.mxu0 0
        %1931 = vmatpush1.bf16.xpose.msra.mxu0 0
        %1932 = vmatprep.subr.bf16.mxu0 0
        %1933 = vmatpush1.bf16.xpose.msra.mxu0 0
        %1934 = vmatprep.subr.bf16.mxu0 0
        %1935 = vmatpush1.bf16.xpose.msra.mxu0 0
        %1936 = vmatprep.subr.bf16.mxu0 0
        %1937 = vmatpush1.bf16.xpose.msra.mxu0 0
        %1938 = vmatprep.subr.bf16.mxu0 0
        %1939 = vmatpush1.bf16.xpose.msra.mxu0 0
        %1940 = vmatprep.mubr.bf16.mxu0 0
        %1941 = vmatmul.mubr.bf16.gmra.mrb[0].mxu0 %v1903
        %v1942 = vpop.f32.mrb[0].mxu0
        %v1943 = vadd.f32 0.0, %v1942
        %v1944 = vpop.f32.mrb[0].mxu0
        %v1945 = vpop.f32.mrb[0].mxu0
        %v1946 = vpop.f32.mrb[0].mxu0
        %1947 = vdwg.mxu0
        %v1949 = vsel %vm1083, %v1895, 0
        %v1952 = vsel %vm1083, %v1899, 0
        %1954 = vmatprep.subr.bf16.mxu0 0
        %1955 = vmatpush1.bf16.xpose.msra.mxu0 %v1952
        %1956 = vmatprep.subr.bf16.mxu0 0
        %1957 = vmatpush1.bf16.xpose.msra.mxu0 0
        %1958 = vmatprep.subr.bf16.mxu0 0
        %1959 = vmatpush1.bf16.xpose.msra.mxu0 0
        %1960 = vmatprep.subr.bf16.mxu0 0
        %1961 = vmatpush1.bf16.xpose.msra.mxu0 0
        %1962 = vmatprep.subr.bf16.mxu0 0
        %1963 = vmatpush1.bf16.xpose.msra.mxu0 0
        %1964 = vmatprep.subr.bf16.mxu0 0
        %1965 = vmatpush1.bf16.xpose.msra.mxu0 0
        %1966 = vmatprep.subr.bf16.mxu0 0
        %1967 = vmatpush1.bf16.xpose.msra.mxu0 0
        %1968 = vmatprep.subr.bf16.mxu0 0
        %1969 = vmatpush1.bf16.xpose.msra.mxu0 0
        %1970 = vmatprep.subr.bf16.mxu0 0
        %1971 = vmatpush1.bf16.xpose.msra.mxu0 0
        %1972 = vmatprep.subr.bf16.mxu0 0
        %1973 = vmatpush1.bf16.xpose.msra.mxu0 0
        %1974 = vmatprep.subr.bf16.mxu0 0
        %1975 = vmatpush1.bf16.xpose.msra.mxu0 0
        %1976 = vmatprep.subr.bf16.mxu0 0
        %1977 = vmatpush1.bf16.xpose.msra.mxu0 0
        %1978 = vmatprep.subr.bf16.mxu0 0
        %1979 = vmatpush1.bf16.xpose.msra.mxu0 0
        %1980 = vmatprep.subr.bf16.mxu0 0
        %1981 = vmatpush1.bf16.xpose.msra.mxu0 0
        %1982 = vmatprep.subr.bf16.mxu0 0
        %1983 = vmatpush1.bf16.xpose.msra.mxu0 0
        %1984 = vmatprep.subr.bf16.mxu0 0
        %1985 = vmatpush1.bf16.xpose.msra.mxu0 0
        %1986 = vmatprep.mubr.bf16.mxu0 0
        %1987 = vmatmul.mubr.bf16.gmra.mrb[0].mxu0 %v1949
        %v1988 = vpop.f32.mrb[0].mxu0
        %v1989 = vadd.f32 0.0, %v1988
        %v1990 = vpop.f32.mrb[0].mxu0
        %v1991 = vpop.f32.mrb[0].mxu0
        %v1992 = vpop.f32.mrb[0].mxu0
        %1993 = vdwg.mxu0
        %v1995 = vsel %vm1083, %v1896, 0
        %v1998 = vsel %vm1083, %v1900, 0
        %2000 = vmatprep.subr.bf16.mxu0 0
        %2001 = vmatpush1.bf16.xpose.msra.mxu0 %v1998
        %2002 = vmatprep.subr.bf16.mxu0 0
        %2003 = vmatpush1.bf16.xpose.msra.mxu0 0
        %2004 = vmatprep.subr.bf16.mxu0 0
        %2005 = vmatpush1.bf16.xpose.msra.mxu0 0
        %2006 = vmatprep.subr.bf16.mxu0 0
        %2007 = vmatpush1.bf16.xpose.msra.mxu0 0
        %2008 = vmatprep.subr.bf16.mxu0 0
        %2009 = vmatpush1.bf16.xpose.msra.mxu0 0
        %2010 = vmatprep.subr.bf16.mxu0 0
        %2011 = vmatpush1.bf16.xpose.msra.mxu0 0
        %2012 = vmatprep.subr.bf16.mxu0 0
        %2013 = vmatpush1.bf16.xpose.msra.mxu0 0
        %2014 = vmatprep.subr.bf16.mxu0 0
        %2015 = vmatpush1.bf16.xpose.msra.mxu0 0
        %2016 = vmatprep.subr.bf16.mxu0 0
        %2017 = vmatpush1.bf16.xpose.msra.mxu0 0
        %2018 = vmatprep.subr.bf16.mxu0 0
        %2019 = vmatpush1.bf16.xpose.msra.mxu0 0
        %2020 = vmatprep.subr.bf16.mxu0 0
        %2021 = vmatpush1.bf16.xpose.msra.mxu0 0
        %2022 = vmatprep.subr.bf16.mxu0 0
        %2023 = vmatpush1.bf16.xpose.msra.mxu0 0
        %2024 = vmatprep.subr.bf16.mxu0 0
        %2025 = vmatpush1.bf16.xpose.msra.mxu0 0
        %2026 = vmatprep.subr.bf16.mxu0 0
        %2027 = vmatpush1.bf16.xpose.msra.mxu0 0
        %2028 = vmatprep.subr.bf16.mxu0 0
        %2029 = vmatpush1.bf16.xpose.msra.mxu0 0
        %2030 = vmatprep.subr.bf16.mxu0 0
        %2031 = vmatpush1.bf16.xpose.msra.mxu0 0
        %2032 = vmatprep.mubr.bf16.mxu0 0
        %2033 = vmatmul.mubr.bf16.gmra.mrb[0].mxu0 %v1995
        %v2034 = vpop.f32.mrb[0].mxu0
        %v2035 = vadd.f32 0.0, %v2034
        %v2036 = vpop.f32.mrb[0].mxu0
        %v2037 = vpop.f32.mrb[0].mxu0
        %v2038 = vpop.f32.mrb[0].mxu0
        %2039 = vdwg.mxu0
        %v2041 = vsel %vm1083, %v1897, 0
        %v2044 = vsel %vm1083, %v1901, 0
        %2046 = vmatprep.subr.bf16.mxu0 0
        %2047 = vmatpush1.bf16.xpose.msra.mxu0 %v2044
        %2048 = vmatprep.subr.bf16.mxu0 0
        %2049 = vmatpush1.bf16.xpose.msra.mxu0 0
        %2050 = vmatprep.subr.bf16.mxu0 0
        %2051 = vmatpush1.bf16.xpose.msra.mxu0 0
        %2052 = vmatprep.subr.bf16.mxu0 0
        %2053 = vmatpush1.bf16.xpose.msra.mxu0 0
        %2054 = vmatprep.subr.bf16.mxu0 0
        %2055 = vmatpush1.bf16.xpose.msra.mxu0 0
        %2056 = vmatprep.subr.bf16.mxu0 0
        %2057 = vmatpush1.bf16.xpose.msra.mxu0 0
        %2058 = vmatprep.subr.bf16.mxu0 0
        %2059 = vmatpush1.bf16.xpose.msra.mxu0 0
        %2060 = vmatprep.subr.bf16.mxu0 0
        %2061 = vmatpush1.bf16.xpose.msra.mxu0 0
        %2062 = vmatprep.subr.bf16.mxu0 0
        %2063 = vmatpush1.bf16.xpose.msra.mxu0 0
        %2064 = vmatprep.subr.bf16.mxu0 0
        %2065 = vmatpush1.bf16.xpose.msra.mxu0 0
        %2066 = vmatprep.subr.bf16.mxu0 0
        %2067 = vmatpush1.bf16.xpose.msra.mxu0 0
        %2068 = vmatprep.subr.bf16.mxu0 0
        %2069 = vmatpush1.bf16.xpose.msra.mxu0 0
        %2070 = vmatprep.subr.bf16.mxu0 0
        %2071 = vmatpush1.bf16.xpose.msra.mxu0 0
        %2072 = vmatprep.subr.bf16.mxu0 0
        %2073 = vmatpush1.bf16.xpose.msra.mxu0 0
        %2074 = vmatprep.subr.bf16.mxu0 0
        %2075 = vmatpush1.bf16.xpose.msra.mxu0 0
        %2076 = vmatprep.subr.bf16.mxu0 0
        %2077 = vmatpush1.bf16.xpose.msra.mxu0 0
        %2078 = vmatprep.mubr.bf16.mxu0 0
        %2079 = vmatmul.mubr.bf16.gmra.mrb[0].mxu0 %v2041
        %v2080 = vpop.f32.mrb[0].mxu0
        %v2081 = vadd.f32 0.0, %v2080
        %v2082 = vpop.f32.mrb[0].mxu0
        %v2083 = vpop.f32.mrb[0].mxu0
        %v2084 = vpop.f32.mrb[0].mxu0
        %2085 = vdwg.mxu0
        %vm2086 = vcmask 130048
        %v2087 = vsel %vm2086, %v1943, -inf
        %2088 = vmax.xlane.f32.xlu0 %v2087
        %v2089 = vpop.xlane.xlu0 %2088
        %v2090 = vsel %vm2086, %v1989, -inf
        %2091 = vmax.xlane.f32.xlu0 %v2090
        %v2092 = vpop.xlane.xlu0 %2091
        %v2093 = vsel %vm2086, %v2035, -inf
        %2094 = vmax.xlane.f32.xlu0 %v2093
        %v2095 = vpop.xlane.xlu0 %2094
        %v2096 = vsel %vm2086, %v2081, -inf
        %2097 = vmax.xlane.f32.xlu0 %v2096
        %v2098 = vpop.xlane.xlu0 %2097
        %v2099 = vsub.f32 %v1943, %v2089
        %v2100 = vsub.f32 %v1989, %v2092
        %v2101 = vsub.f32 %v2035, %v2095
        %v2102 = vsub.f32 %v2081, %v2098
        %v2103 = vmul.f32 %v2099, 1.442695
        %v2104 = vpow.pop %v2103
        %v2105 = vmul.f32 %v2100, 1.442695
        %v2106 = vpow.pop %v2105
        %v2107 = vmul.f32 %v2101, 1.442695
        %v2108 = vpow.pop %v2107
        %v2109 = vmul.f32 %v2102, 1.442695
        %v2110 = vpow.pop %v2109
        %v2111 = vsel %vm2086, %v2104, 0.0
        %2112 = vadd.xlane.f32.xlu0 %v2111
        %v2113 = vpop.xlane.xlu0 %2112
        %v2114 = vsel %vm2086, %v2106, 0.0
        %2115 = vadd.xlane.f32.xlu0 %v2114
        %v2116 = vpop.xlane.xlu0 %2115
        %v2117 = vsel %vm2086, %v2108, 0.0
        %2118 = vadd.xlane.f32.xlu0 %v2117
        %v2119 = vpop.xlane.xlu0 %2118
        %v2120 = vsel %vm2086, %v2110, 0.0
        %2121 = vadd.xlane.f32.xlu0 %v2120
        %v2122 = vpop.xlane.xlu0 %2121
        %v2123 = vrcp.pop %v2113
        %v2124 = vmul.f32 %v2104, %v2123
        %v2125 = vrcp.pop %v2116
        %v2126 = vmul.f32 %v2106, %v2125
        %v2127 = vrcp.pop %v2119
        %v2128 = vmul.f32 %v2108, %v2127
        %v2129 = vrcp.pop %v2122
        %v2130 = vmul.f32 %v2110, %v2129
        %v2131 = vpack.c.bf16 %v2124, %v2124
        %v2132 = vpack.c.bf16 %v2126, %v2126
        %v2133 = vpack.c.bf16 %v2128, %v2128
        %v2134 = vpack.c.bf16 %v2130, %v2130
        %v2135 = vpack.c.bf16 %v1837, %v1834
        %v2136 = vpack.c.bf16 %v1879, %v1877
        %v2137 = vpack.c.bf16 %v1885, %v1883
        %v2138 = vpack.c.bf16 %v1891, %v1889
        %v2140 = vsel %vm2086, %v2131, 0
        %2142 = vmatprep.subr.bf16.mxu0 0
        %2143 = vmatpush1.bf16.msra.mxu0 %v2135
        %2144 = vmatprep.subr.bf16.mxu0 0
        %2145 = vmatpush1.bf16.msra.mxu0 0
        %2146 = vmatprep.subr.bf16.mxu0 0
        %2147 = vmatpush1.bf16.msra.mxu0 0
        %2148 = vmatprep.subr.bf16.mxu0 0
        %2149 = vmatpush1.bf16.msra.mxu0 0
        %2150 = vmatprep.subr.bf16.mxu0 0
        %2151 = vmatpush1.bf16.msra.mxu0 0
        %2152 = vmatprep.subr.bf16.mxu0 0
        %2153 = vmatpush1.bf16.msra.mxu0 0
        %2154 = vmatprep.subr.bf16.mxu0 0
        %2155 = vmatpush1.bf16.msra.mxu0 0
        %2156 = vmatprep.subr.bf16.mxu0 0
        %2157 = vmatpush1.bf16.msra.mxu0 0
        %2158 = vmatprep.subr.bf16.mxu0 0
        %2159 = vmatpush1.bf16.msra.mxu0 0
        %2160 = vmatprep.subr.bf16.mxu0 0
        %2161 = vmatpush1.bf16.msra.mxu0 0
        %2162 = vmatprep.subr.bf16.mxu0 0
        %2163 = vmatpush1.bf16.msra.mxu0 0
        %2164 = vmatprep.subr.bf16.mxu0 0
        %2165 = vmatpush1.bf16.msra.mxu0 0
        %2166 = vmatprep.subr.bf16.mxu0 0
        %2167 = vmatpush1.bf16.msra.mxu0 0
        %2168 = vmatprep.subr.bf16.mxu0 0
        %2169 = vmatpush1.bf16.msra.mxu0 0
        %2170 = vmatprep.subr.bf16.mxu0 0
        %2171 = vmatpush1.bf16.msra.mxu0 0
        %2172 = vmatprep.subr.bf16.mxu0 0
        %2173 = vmatpush1.bf16.msra.mxu0 0
        %2174 = vmatprep.mubr.bf16.mxu0 0
        %2175 = vmatmul.mubr.bf16.gmra.mrb[0].mxu0 %v2140
        %v2176 = vpop.f32.mrb[0].mxu0
        %v2177 = vadd.f32 0.0, %v2176
        %v2178 = vpop.f32.mrb[0].mxu0
        %v2179 = vpop.f32.mrb[0].mxu0
        %v2180 = vpop.f32.mrb[0].mxu0
        %2181 = vdwg.mxu0
        %v2183 = vsel %vm2086, %v2132, 0
        %2185 = vmatprep.subr.bf16.mxu0 0
        %2186 = vmatpush1.bf16.msra.mxu0 %v2136
        %2187 = vmatprep.subr.bf16.mxu0 0
        %2188 = vmatpush1.bf16.msra.mxu0 0
        %2189 = vmatprep.subr.bf16.mxu0 0
        %2190 = vmatpush1.bf16.msra.mxu0 0
        %2191 = vmatprep.subr.bf16.mxu0 0
        %2192 = vmatpush1.bf16.msra.mxu0 0
        %2193 = vmatprep.subr.bf16.mxu0 0
        %2194 = vmatpush1.bf16.msra.mxu0 0
        %2195 = vmatprep.subr.bf16.mxu0 0
        %2196 = vmatpush1.bf16.msra.mxu0 0
        %2197 = vmatprep.subr.bf16.mxu0 0
        %2198 = vmatpush1.bf16.msra.mxu0 0
        %2199 = vmatprep.subr.bf16.mxu0 0
        %2200 = vmatpush1.bf16.msra.mxu0 0
        %2201 = vmatprep.subr.bf16.mxu0 0
        %2202 = vmatpush1.bf16.msra.mxu0 0
        %2203 = vmatprep.subr.bf16.mxu0 0
        %2204 = vmatpush1.bf16.msra.mxu0 0
        %2205 = vmatprep.subr.bf16.mxu0 0
        %2206 = vmatpush1.bf16.msra.mxu0 0
        %2207 = vmatprep.subr.bf16.mxu0 0
        %2208 = vmatpush1.bf16.msra.mxu0 0
        %2209 = vmatprep.subr.bf16.mxu0 0
        %2210 = vmatpush1.bf16.msra.mxu0 0
        %2211 = vmatprep.subr.bf16.mxu0 0
        %2212 = vmatpush1.bf16.msra.mxu0 0
        %2213 = vmatprep.subr.bf16.mxu0 0
        %2214 = vmatpush1.bf16.msra.mxu0 0
        %2215 = vmatprep.subr.bf16.mxu0 0
        %2216 = vmatpush1.bf16.msra.mxu0 0
        %2217 = vmatprep.mubr.bf16.mxu0 0
        %2218 = vmatmul.mubr.bf16.gmra.mrb[0].mxu0 %v2183
        %v2219 = vpop.f32.mrb[0].mxu0
        %v2220 = vadd.f32 0.0, %v2219
        %v2221 = vpop.f32.mrb[0].mxu0
        %v2222 = vpop.f32.mrb[0].mxu0
        %v2223 = vpop.f32.mrb[0].mxu0
        %2224 = vdwg.mxu0
        %v2226 = vsel %vm2086, %v2133, 0
        %2228 = vmatprep.subr.bf16.mxu0 0
        %2229 = vmatpush1.bf16.msra.mxu0 %v2137
        %2230 = vmatprep.subr.bf16.mxu0 0
        %2231 = vmatpush1.bf16.msra.mxu0 0
        %2232 = vmatprep.subr.bf16.mxu0 0
        %2233 = vmatpush1.bf16.msra.mxu0 0
        %2234 = vmatprep.subr.bf16.mxu0 0
        %2235 = vmatpush1.bf16.msra.mxu0 0
        %2236 = vmatprep.subr.bf16.mxu0 0
        %2237 = vmatpush1.bf16.msra.mxu0 0
        %2238 = vmatprep.subr.bf16.mxu0 0
        %2239 = vmatpush1.bf16.msra.mxu0 0
        %2240 = vmatprep.subr.bf16.mxu0 0
        %2241 = vmatpush1.bf16.msra.mxu0 0
        %2242 = vmatprep.subr.bf16.mxu0 0
        %2243 = vmatpush1.bf16.msra.mxu0 0
        %2244 = vmatprep.subr.bf16.mxu0 0
        %2245 = vmatpush1.bf16.msra.mxu0 0
        %2246 = vmatprep.subr.bf16.mxu0 0
        %2247 = vmatpush1.bf16.msra.mxu0 0
        %2248 = vmatprep.subr.bf16.mxu0 0
        %2249 = vmatpush1.bf16.msra.mxu0 0
        %2250 = vmatprep.subr.bf16.mxu0 0
        %2251 = vmatpush1.bf16.msra.mxu0 0
        %2252 = vmatprep.subr.bf16.mxu0 0
        %2253 = vmatpush1.bf16.msra.mxu0 0
        %2254 = vmatprep.subr.bf16.mxu0 0
        %2255 = vmatpush1.bf16.msra.mxu0 0
        %2256 = vmatprep.subr.bf16.mxu0 0
        %2257 = vmatpush1.bf16.msra.mxu0 0
        %2258 = vmatprep.subr.bf16.mxu0 0
        %2259 = vmatpush1.bf16.msra.mxu0 0
        %2260 = vmatprep.mubr.bf16.mxu0 0
        %2261 = vmatmul.mubr.bf16.gmra.mrb[0].mxu0 %v2226
        %v2262 = vpop.f32.mrb[0].mxu0
        %v2263 = vadd.f32 0.0, %v2262
        %v2264 = vpop.f32.mrb[0].mxu0
        %v2265 = vpop.f32.mrb[0].mxu0
        %v2266 = vpop.f32.mrb[0].mxu0
        %2267 = vdwg.mxu0
        %v2269 = vsel %vm2086, %v2134, 0
        %2271 = vmatprep.subr.bf16.mxu0 0
        %2272 = vmatpush1.bf16.msra.mxu0 %v2138
        %2273 = vmatprep.subr.bf16.mxu0 0
        %2274 = vmatpush1.bf16.msra.mxu0 0
        %2275 = vmatprep.subr.bf16.mxu0 0
        %2276 = vmatpush1.bf16.msra.mxu0 0
        %2277 = vmatprep.subr.bf16.mxu0 0
        %2278 = vmatpush1.bf16.msra.mxu0 0
        %2279 = vmatprep.subr.bf16.mxu0 0
        %2280 = vmatpush1.bf16.msra.mxu0 0
        %2281 = vmatprep.subr.bf16.mxu0 0
        %2282 = vmatpush1.bf16.msra.mxu0 0
        %2283 = vmatprep.subr.bf16.mxu0 0
        %2284 = vmatpush1.bf16.msra.mxu0 0
        %2285 = vmatprep.subr.bf16.mxu0 0
        %2286 = vmatpush1.bf16.msra.mxu0 0
        %2287 = vmatprep.subr.bf16.mxu0 0
        %2288 = vmatpush1.bf16.msra.mxu0 0
        %2289 = vmatprep.subr.bf16.mxu0 0
        %2290 = vmatpush1.bf16.msra.mxu0 0
        %2291 = vmatprep.subr.bf16.mxu0 0
        %2292 = vmatpush1.bf16.msra.mxu0 0
        %2293 = vmatprep.subr.bf16.mxu0 0
        %2294 = vmatpush1.bf16.msra.mxu0 0
        %2295 = vmatprep.subr.bf16.mxu0 0
        %2296 = vmatpush1.bf16.msra.mxu0 0
        %2297 = vmatprep.subr.bf16.mxu0 0
        %2298 = vmatpush1.bf16.msra.mxu0 0
        %2299 = vmatprep.subr.bf16.mxu0 0
        %2300 = vmatpush1.bf16.msra.mxu0 0
        %2301 = vmatprep.subr.bf16.mxu0 0
        %2302 = vmatpush1.bf16.msra.mxu0 0
        %2303 = vmatprep.mubr.bf16.mxu0 0
        %2304 = vmatmul.mubr.bf16.gmra.mrb[0].mxu0 %v2269
        %v2305 = vpop.f32.mrb[0].mxu0
        %v2306 = vadd.f32 0.0, %v2305
        %v2307 = vpop.f32.mrb[0].mxu0
        %v2308 = vpop.f32.mrb[0].mxu0
        %v2309 = vpop.f32.mrb[0].mxu0
        %2310 = vdwg.mxu0
        %2311 = vst.msk [vmem:[#allocation2] sm:$0xff] %vm1083, %v2177
        %2313 = vrot.lane.b32.xlu0 %v2220, 8
        %v2314 = vpop.permute.xlu0 %2313
        %2316 = vst.msk [vmem:[#allocation2] sm:$0xff] %vm1510, %v2314
        %2318 = vrot.lane.b32.xlu0 %v2263, 16
        %v2319 = vpop.permute.xlu0 %2318
        %2321 = vst.msk [vmem:[#allocation2] sm:$0xff] %vm1516, %v2319
        %2323 = vrot.lane.b32.xlu0 %v2306, 24
        %v2324 = vpop.permute.xlu0 %2323
        %2326 = vst.msk [vmem:[#allocation2] sm:$0xff] %vm1522, %v2324
        %v2327 = vld [vmem:[#allocation2] sm:$0xff]
        %v2328 = vpack.c.bf16 %v2327, %v2327
        %s2329 = scalar_lea.vmem %s812, 16
        %v2330 = vld [vmem:[%s2329] sm:$0xf]
        %v2331 = vld [vmem:[%s2329 + $0x4] sm:$0xf]
        %v2332 = vld [vmem:[%s2329 + $0x8] sm:$0xf]
        %v2333 = vld [vmem:[%s2329 + $0xc] sm:$0xf]
        %s2334 = scalar_lea.vmem %s816, 1
        %v2335 = vld [vmem:[%s2334] sm:$0x1]
        %v2337 = vlaneseq
        %v2338 = vshrl.u32 %v2337, 7
        %v2339 = vsub.s32 0, %v2338
        %v2340 = vrot.slane %v2335, %v2339
        %v2346 = vunpack.c.l.b16 %v2330
        %v2347 = vunpack.c.l.b16 %v2331
        %v2348 = vunpack.c.l.b16 %v2332
        %v2349 = vunpack.c.l.b16 %v2333
        %v2350 = vpack.c.b16 %v2347, %v2346
        %v2351 = vpack.c.b16 %v2349, %v2348
        %v2355 = vsel %vm863, %v2328, 0
        %2357 = vmatprep.subr.bf16.mxu0 0
        %2358 = vmatpush1.bf16.msra.mxu0 %v2350
        %2359 = vmatprep.subr.bf16.mxu0 0
        %2360 = vmatpush1.bf16.msra.mxu0 %v2351
        %2361 = vmatprep.subr.bf16.mxu0 0
        %2362 = vmatpush1.bf16.msra.mxu0 0
        %2363 = vmatprep.subr.bf16.mxu0 0
        %2364 = vmatpush1.bf16.msra.mxu0 0
        %2365 = vmatprep.subr.bf16.mxu0 0
        %2366 = vmatpush1.bf16.msra.mxu0 0
        %2367 = vmatprep.subr.bf16.mxu0 0
        %2368 = vmatpush1.bf16.msra.mxu0 0
        %2369 = vmatprep.subr.bf16.mxu0 0
        %2370 = vmatpush1.bf16.msra.mxu0 0
        %2371 = vmatprep.subr.bf16.mxu0 0
        %2372 = vmatpush1.bf16.msra.mxu0 0
        %2373 = vmatprep.subr.bf16.mxu0 0
        %2374 = vmatpush1.bf16.msra.mxu0 0
        %2375 = vmatprep.subr.bf16.mxu0 0
        %2376 = vmatpush1.bf16.msra.mxu0 0
        %2377 = vmatprep.subr.bf16.mxu0 0
        %2378 = vmatpush1.bf16.msra.mxu0 0
        %2379 = vmatprep.subr.bf16.mxu0 0
        %2380 = vmatpush1.bf16.msra.mxu0 0
        %2381 = vmatprep.subr.bf16.mxu0 0
        %2382 = vmatpush1.bf16.msra.mxu0 0
        %2383 = vmatprep.subr.bf16.mxu0 0
        %2384 = vmatpush1.bf16.msra.mxu0 0
        %2385 = vmatprep.subr.bf16.mxu0 0
        %2386 = vmatpush1.bf16.msra.mxu0 0
        %2387 = vmatprep.subr.bf16.mxu0 0
        %2388 = vmatpush1.bf16.msra.mxu0 0
        %2389 = vmatprep.mubr.bf16.mxu0 0
        %2390 = vmatmul.mubr.bf16.gmra.mrb[0].mxu0 %v2355
        %v2391 = vpop.f32.mrb[0].mxu0
        %v2392 = vadd.f32 %v2340, %v2391
        %v2393 = vpop.f32.mrb[0].mxu0
        %v2394 = vpop.f32.mrb[0].mxu0
        %v2395 = vpop.f32.mrb[0].mxu0
        %2396 = vdwg.mxu0
        %v2397 = vadd.f32 %v1623, %v2392
        %s2398 = scalar_lea.vmem %s694, 2 [#allocation12]
        %v2399 = vld [vmem:[%s2398] sm:$0x1]
        %s2400 = scalar_lea.vmem %s694, 3 [#allocation12]
        %v2401 = vld [vmem:[%s2400] sm:$0x1]
        %v2402 = vsel %vm863, %v2397, 0.0
        %2403 = vadd.xlane.f32.xlu0 %v2402
        %v2404 = vpop.xlane.xlu0 %2403
        %v2405 = vmul.f32 %v2404, %v1599
        %v2406 = vsub.f32 %v2397, %v2405
        %v2407 = vmul.f32 %v2406, %v2406
        %v2408 = vsel %vm863, %v2407, 0.0
        %2409 = vadd.xlane.f32.xlu0 %v2408
        %v2410 = vpop.xlane.xlu0 %2409
        %v2411 = vmul.f32 %v2410, %v1599
        %v2412 = vadd.f32 %v2411, 1e-05
        %v2413 = vrsqrt.pop %v2412
        %v2414 = vmul.f32 %v2406, %v2413
        %v2416 = vlaneseq
        %v2417 = vshrl.u32 %v2416, 7
        %v2418 = vsub.s32 0, %v2417
        %v2419 = vrot.slane %v2399, %v2418
        %v2421 = vmul.f32 %v2414, %v2419
        %v2423 = vlaneseq
        %v2424 = vshrl.u32 %v2423, 7
        %v2425 = vsub.s32 0, %v2424
        %v2426 = vrot.slane %v2401, %v2425
        %v2428 = vadd.f32 %v2421, %v2426
        %v2429 = vpack.c.bf16 %v2428, %v2428
        %v2430 = vld [vmem:[%s703] sm:$0xf]
        %v2431 = vld [vmem:[%s703 + $0x4] sm:$0xf]
        %v2432 = vld [vmem:[%s703 + $0x8] sm:$0xf]
        %v2433 = vld [vmem:[%s703 + $0xc] sm:$0xf]
        %v2434 = vld [vmem:[%s819] sm:$0x1]
        %v2436 = vlaneseq
        %v2437 = vshrl.u32 %v2436, 7
        %v2438 = vsub.s32 0, %v2437
        %v2439 = vrot.slane %v2434, %v2438
        %v2445 = vunpack.c.l.b16 %v2430
        %v2446 = vunpack.c.l.b16 %v2431
        %v2447 = vunpack.c.l.b16 %v2432
        %v2448 = vunpack.c.l.b16 %v2433
        %v2449 = vpack.c.b16 %v2446, %v2445
        %v2450 = vpack.c.b16 %v2448, %v2447
        %v2454 = vsel %vm863, %v2429, 0
        %2456 = vmatprep.subr.bf16.mxu0 0
        %2457 = vmatpush1.bf16.msra.mxu0 %v2449
        %2458 = vmatprep.subr.bf16.mxu0 0
        %2459 = vmatpush1.bf16.msra.mxu0 %v2450
        %2460 = vmatprep.subr.bf16.mxu0 0
        %2461 = vmatpush1.bf16.msra.mxu0 0
        %2462 = vmatprep.subr.bf16.mxu0 0
        %2463 = vmatpush1.bf16.msra.mxu0 0
        %2464 = vmatprep.subr.bf16.mxu0 0
        %2465 = vmatpush1.bf16.msra.mxu0 0
        %2466 = vmatprep.subr.bf16.mxu0 0
        %2467 = vmatpush1.bf16.msra.mxu0 0
        %2468 = vmatprep.subr.bf16.mxu0 0
        %2469 = vmatpush1.bf16.msra.mxu0 0
        %2470 = vmatprep.subr.bf16.mxu0 0
        %2471 = vmatpush1.bf16.msra.mxu0 0
        %2472 = vmatprep.subr.bf16.mxu0 0
        %2473 = vmatpush1.bf16.msra.mxu0 0
        %2474 = vmatprep.subr.bf16.mxu0 0
        %2475 = vmatpush1.bf16.msra.mxu0 0
        %2476 = vmatprep.subr.bf16.mxu0 0
        %2477 = vmatpush1.bf16.msra.mxu0 0
        %2478 = vmatprep.subr.bf16.mxu0 0
        %2479 = vmatpush1.bf16.msra.mxu0 0
        %2480 = vmatprep.subr.bf16.mxu0 0
        %2481 = vmatpush1.bf16.msra.mxu0 0
        %2482 = vmatprep.subr.bf16.mxu0 0
        %2483 = vmatpush1.bf16.msra.mxu0 0
        %2484 = vmatprep.subr.bf16.mxu0 0
        %2485 = vmatpush1.bf16.msra.mxu0 0
        %2486 = vmatprep.subr.bf16.mxu0 0
        %2487 = vmatpush1.bf16.msra.mxu0 0
        %2488 = vmatprep.mubr.bf16.mxu0 0
        %2489 = vmatmul.mubr.bf16.gmra.mrb[0].mxu0 %v2454
        %v2490 = vpop.f32.mrb[0].mxu0
        %v2491 = vadd.f32 %v2439, %v2490
        %v2492 = vpop.f32.mrb[0].mxu0
        %v2493 = vpop.f32.mrb[0].mxu0
        %v2494 = vpop.f32.mrb[0].mxu0
        %2495 = vdwg.mxu0
        %v2496 = vmax.f32 %v2491, 0.0
        %v2497 = vpack.c.bf16 %v2496, %v2496
        %v2498 = vld [vmem:[%s824] sm:$0xf]
        %v2499 = vld [vmem:[%s824 + $0x4] sm:$0xf]
        %v2500 = vld [vmem:[%s824 + $0x8] sm:$0xf]
        %v2501 = vld [vmem:[%s824 + $0xc] sm:$0xf]
        %v2502 = vld [vmem:[%s824 + $0x10] sm:$0xf]
        %v2503 = vld [vmem:[%s824 + $0x14] sm:$0xf]
        %v2504 = vld [vmem:[%s824 + $0x18] sm:$0xf]
        %v2505 = vld [vmem:[%s824 + $0x1c] sm:$0xf]
        %v2506 = vld [vmem:[%s827] sm:$0x1]
        %v2508 = vlaneseq
        %v2509 = vshrl.u32 %v2508, 7
        %v2510 = vsub.s32 0, %v2509
        %v2511 = vrot.slane %v2506, %v2510
        %v2521 = vunpack.c.l.b16 %v2498
        %v2522 = vunpack.c.l.b16 %v2499
        %v2523 = vunpack.c.l.b16 %v2500
        %v2524 = vunpack.c.l.b16 %v2501
        %v2525 = vunpack.c.l.b16 %v2502
        %v2526 = vunpack.c.l.b16 %v2503
        %v2527 = vunpack.c.l.b16 %v2504
        %v2528 = vunpack.c.l.b16 %v2505
        %v2529 = vpack.c.b16 %v2522, %v2521
        %v2530 = vpack.c.b16 %v2524, %v2523
        %v2531 = vpack.c.b16 %v2526, %v2525
        %v2532 = vpack.c.b16 %v2528, %v2527
        %vm2537 = vcmask 523264
        %v2539 = vsel %vm2537, %v2497, 0
        %2541 = vmatprep.subr.bf16.mxu0 0
        %2542 = vmatpush1.bf16.msra.mxu0 %v2529
        %2543 = vmatprep.subr.bf16.mxu0 0
        %2544 = vmatpush1.bf16.msra.mxu0 %v2530
        %2545 = vmatprep.subr.bf16.mxu0 0
        %2546 = vmatpush1.bf16.msra.mxu0 %v2531
        %2547 = vmatprep.subr.bf16.mxu0 0
        %2548 = vmatpush1.bf16.msra.mxu0 %v2532
        %2549 = vmatprep.subr.bf16.mxu0 0
        %2550 = vmatpush1.bf16.msra.mxu0 0
        %2551 = vmatprep.subr.bf16.mxu0 0
        %2552 = vmatpush1.bf16.msra.mxu0 0
        %2553 = vmatprep.subr.bf16.mxu0 0
        %2554 = vmatpush1.bf16.msra.mxu0 0
        %2555 = vmatprep.subr.bf16.mxu0 0
        %2556 = vmatpush1.bf16.msra.mxu0 0
        %2557 = vmatprep.subr.bf16.mxu0 0
        %2558 = vmatpush1.bf16.msra.mxu0 0
        %2559 = vmatprep.subr.bf16.mxu0 0
        %2560 = vmatpush1.bf16.msra.mxu0 0
        %2561 = vmatprep.subr.bf16.mxu0 0
        %2562 = vmatpush1.bf16.msra.mxu0 0
        %2563 = vmatprep.subr.bf16.mxu0 0
        %2564 = vmatpush1.bf16.msra.mxu0 0
        %2565 = vmatprep.subr.bf16.mxu0 0
        %2566 = vmatpush1.bf16.msra.mxu0 0
        %2567 = vmatprep.subr.bf16.mxu0 0
        %2568 = vmatpush1.bf16.msra.mxu0 0
        %2569 = vmatprep.subr.bf16.mxu0 0
        %2570 = vmatpush1.bf16.msra.mxu0 0
        %2571 = vmatprep.subr.bf16.mxu0 0
        %2572 = vmatpush1.bf16.msra.mxu0 0
        %2573 = vmatprep.mubr.bf16.mxu0 0
        %2574 = vmatmul.mubr.bf16.gmra.mrb[0].mxu0 %v2539
        %v2575 = vpop.f32.mrb[0].mxu0
        %v2576 = vadd.f32 %v2511, %v2575
        %v2577 = vpop.f32.mrb[0].mxu0
        %v2578 = vpop.f32.mrb[0].mxu0
        %v2579 = vpop.f32.mrb[0].mxu0
        %2580 = vdwg.mxu0
        %v2581 = vadd.f32 %v2428, %v2576
        %s2582 = scalar_lea.vmem %s694, 4 [#allocation12]
        %v2583 = vld [vmem:[%s2582] sm:$0x1]
        %s2584 = scalar_lea.vmem %s694, 5 [#allocation12]
        %v2585 = vld [vmem:[%s2584] sm:$0x1]
        %v2586 = vsel %vm863, %v2581, 0.0
        %2587 = vadd.xlane.f32.xlu0 %v2586
        %v2588 = vpop.xlane.xlu0 %2587
        %v2589 = vmul.f32 %v2588, %v1599
        %v2590 = vsub.f32 %v2581, %v2589
        %v2591 = vmul.f32 %v2590, %v2590
        %v2592 = vsel %vm863, %v2591, 0.0
        %2593 = vadd.xlane.f32.xlu0 %v2592
        %v2594 = vpop.xlane.xlu0 %2593
        %v2595 = vmul.f32 %v2594, %v1599
        %v2596 = vadd.f32 %v2595, 1e-05
        %v2597 = vrsqrt.pop %v2596
        %v2598 = vmul.f32 %v2590, %v2597
        %v2600 = vlaneseq
        %v2601 = vshrl.u32 %v2600, 7
        %v2602 = vsub.s32 0, %v2601
        %v2603 = vrot.slane %v2583, %v2602
        %v2605 = vmul.f32 %v2598, %v2603
        %v2607 = vlaneseq
        %v2608 = vshrl.u32 %v2607, 7
        %v2609 = vsub.s32 0, %v2608
        %v2610 = vrot.slane %v2585, %v2609
        %v2612 = vadd.f32 %v2605, %v2610
        %2613 = vst.msk [vmem:[%s802] sm:$0xff] %vm863, %v2612
        %p2614 = scmp.eq.s32.totalorder %s45, 1
        // Predicated region
        $region109: #{tpu_custom_call.1} parent=75 // pred_check
          %p2615 = pneg %p2614
        $region110: #{tpu_custom_call.1} parent=75 // pred_check_branch
          %2617 = sbr.rel (%p2615) target = $region112
        $region111: #{tpu_custom_call.1} parent=75 // pred_region
          %v2618 = vld [vmem:[%s13] sm:$0x1]
          %s2619 = scalar_lea.vmem %s13, 1
          %v2620 = vld [vmem:[%s2619] sm:$0x1]
          %v2621 = vsel %vm863, %v2612, 0.0
          %2622 = vadd.xlane.f32.xlu0 %v2621
          %v2623 = vpop.xlane.xlu0 %2622
          %v2624 = vmul.f32 %v2623, %v1599
          %v2625 = vsub.f32 %v2612, %v2624
          %v2626 = vmul.f32 %v2625, %v2625
          %v2627 = vsel %vm863, %v2626, 0.0
          %2628 = vadd.xlane.f32.xlu0 %v2627
          %v2629 = vpop.xlane.xlu0 %2628
          %v2630 = vmul.f32 %v2629, %v1599
          %v2631 = vadd.f32 %v2630, 1e-05
          %v2632 = vrsqrt.pop %v2631
          %v2633 = vmul.f32 %v2625, %v2632
          %v2635 = vlaneseq
          %v2636 = vshrl.u32 %v2635, 7
          %v2637 = vsub.s32 0, %v2636
          %v2638 = vrot.slane %v2618, %v2637
          %v2640 = vmul.f32 %v2633, %v2638
          %v2642 = vlaneseq
          %v2643 = vshrl.u32 %v2642, 7
          %v2644 = vsub.s32 0, %v2643
          %v2645 = vrot.slane %v2620, %v2644
          %v2647 = vadd.f32 %v2640, %v2645
          %2648 = vst.msk [vmem:[%s802] sm:$0xff] %vm863, %v2647
        $region112: #{tpu_custom_call.1} parent=75 // pred_fallthru
          _
        %s2649 = sand.u32 %s419, 1
        %s2650 = scalar_lea.sflag [#allocation5], %s2649
        %s2651 = sand.u32 %s419, 1
        %s2652 = smul.addr %s2651, 8
        %s2653 = scalar_lea.vmem [#allocation15], %s2652
        // Predicated region
        $region113: #{tpu_custom_call.1} parent=75 // pred_check
          %p2654 = pneg %p429
        $region114: #{tpu_custom_call.1} parent=75 // pred_check_branch
          %2656 = sbr.rel (%p2654) target = $region116
        $region115: #{tpu_custom_call.1} parent=75 // pred_region
          %s2658 = ssub.s32 128, 128
          %2659 = vsyncadd %s2650, %s2658
          %s2660 = smul.addr %s44, 128
          %s2661 = scalar_lea.hbm %s14, %s2660
          %s2663 = sshll.u32 %s2653, 4
          %s2664 = int_to_ptr.vmem [resolvable:$true] %s2663
          %2666 = dma.vmem_to_hbm [thread:$0]  %s2664, 128, %s2661, %s2650
        $region116: #{tpu_custom_call.1} parent=75 // pred_fallthru
          _
      $region76: #{tpu_custom_call.1} parent=5 // pred_fallthru
        _
      %p2667 = scmp.le.s32.totalorder 2, %s35
      // Predicated region
      $region117: #{tpu_custom_call.1} parent=5 // pred_check
        %p2668 = pneg %p2667
      $region118: #{tpu_custom_call.1} parent=5 // pred_check_branch
        %2670 = sbr.rel (%p2668) target = $region120
      $region119: #{tpu_custom_call.1} parent=5 // pred_region
        %s2671 = ssub.s32 %s35, 2
        // Predicated region
        $region121: #{tpu_custom_call.1} parent=119 // pred_check
          %p2672 = pneg %p435
        $region122: #{tpu_custom_call.1} parent=119 // pred_check_branch
          %2674 = sbr.rel (%p2672) target = $region124
        $region123: #{tpu_custom_call.1} parent=119 // pred_region
          %s2675 = sand.u32 %s420, 1
          %s2676 = scalar_lea.sflag [#allocation5], %s2675
          %s2677 = sand.u32 %s420, 1
          %s2678 = smul.addr %s2677, 8
          %s2679 = scalar_lea.vmem [#allocation15], %s2678
          %2680 = dma.done %s2676, 128
        $region124: #{tpu_custom_call.1} parent=119 // pred_fallthru
          _
      $region120: #{tpu_custom_call.1} parent=5 // pred_fallthru
        _
    $region6: #{tpu_custom_call.1} parent=1 // loop_footer
      %s39 = sadd.s32 1, %s35
    $region7: #{tpu_custom_call.1} parent=1 // loop_footer_branch
      %34 = sbr.rel target = $region3
    $region8: #{tpu_custom_call.1} parent=1 // loop_exit
      _
    %2681 = vsyncpa [#allocation4], 1
    %s2682 = scalar_lea.sflag [#allocation4], 1
    %2683 = vsyncpa %s2682, 1
    %2684 = vsyncpa [#allocation7], 1
    %s2685 = scalar_lea.sflag [#allocation7], 1
    %2686 = vsyncpa %s2685, 1
    %2687 = vsyncpa [#allocation10], 1
    %s2688 = scalar_lea.sflag [#allocation10], 1
    %2689 = vsyncpa %s2688, 1
    %2690 = vsyncpa [#allocation13], 1
    %s2691 = scalar_lea.sflag [#allocation13], 1
    %2692 = vsyncpa %s2691, 1
    %2693 = vsyncpa [#allocation5], 1
    %s2694 = scalar_lea.sflag [#allocation5], 1
    %2695 = vsyncpa %s2694, 1

</llo_original>
